<compile_context>
chip_gen: v7x
topology: tpu7x:2x2x1
jax: 0.10.0
libtpu: 0.0.40
codegen_flags: <defaults>
</compile_context>

<pallas_src>
import jax
import jax.numpy as jnp
from jax.experimental import pallas as pl
from jax.experimental.pallas import tpu as pltpu

# ---- module hyper-parameters (match Encoder.__init__ defaults) --------------
IN_CH = 3        # in_ch
CH11  = 8        # out_ch_x11
CH12  = 8        # out_ch_x12
CH21  = 8        # out_ch_x21
CH22  = 1        # out_ch_x22
FC_IN = 8        # fc_in
HID   = 128      # out_ch_final

T_TRAJ   = 8             # trajectory length (fixed so sequences can be stacked)
L_CENTER = FC_IN + 2     # centerline length; Conv1d(k=3, no pad) -> FC_IN positions

NEG_SLOPE = 0.01         # PyTorch LeakyReLU default

# Batch tiles per grid step.  TB_TRAJ=128 keeps the per-gate (128,128) slices'
# vreg pressure bounded while filling the MXU M dimension on all generations;
# TB_CENTER larger since the center path is pure feedforward matmul.
TB_TRAJ   = 128
TB_CENTER = 512


# ----------------------------- kernels ---------------------------------------
def _traj_kernel(x_ref, w1_ref, b1_ref, w3_ref, b3_ref,
                 wih_ref, whh_ref, bl_ref, out_ref, gx_ref):
    B = x_ref.shape[0]

    # Front end: nn_x1_1 (k=1 conv)+Tanh and nn_x1_3 (k=3 conv, pad=1)+LeakyReLU
    # as two per-sequence block matmuls over time-flattened features; the conv
    # padding / tap structure is baked into the host-built weights.
    y1 = jnp.tanh(jnp.dot(x_ref[...], w1_ref[...],
                          preferred_element_type=jnp.float32) + b1_ref[...])
    y2 = jnp.dot(y1, w3_ref[...], preferred_element_type=jnp.float32) + b3_ref[...]
    y2 = jnp.where(y2 > 0, y2, NEG_SLOPE * y2)               # (B, T*CH12)

    # nn_x1_5 (LSTM) input projection for all T steps at once: one hoisted
    # bf16 x bf16 -> f32 MXU matmul with a block-diagonal weight, parked in
    # VMEM scratch so it is off the serial path.
    gx_ref[...] = (jnp.dot(y2.astype(jnp.bfloat16), wih_ref[...],
                           preferred_element_type=jnp.float32) + bl_ref[...])

    # Recurrence: per step only h @ W_hh (bf16 operands, f32 accumulation),
    # computed one 128-lane gate slice at a time (gate order i, f, g, o) so
    # the full (B, 4*HID) gate tensor is never live.
    h = jnp.zeros((B, HID), jnp.float32)
    c = jnp.zeros((B, HID), jnp.float32)
    for t in range(T_TRAJ):                                  # static unroll, T=8
        hb = h.astype(jnp.bfloat16)

        def gate(k, hb=hb, t=t):
            lo = (t * 4 + k) * HID
            return (gx_ref[:, lo:lo + HID]
                    + jnp.dot(hb, whh_ref[k], preferred_element_type=jnp.float32))

        acc = jax.nn.sigmoid(gate(0)) * jnp.tanh(gate(2))    # i * g
        c = jax.nn.sigmoid(gate(1)) * c + acc                # f * c + i * g
        h = jax.nn.sigmoid(gate(3)) * jnp.tanh(c)            # o * tanh(c)
    out_ref[...] = c                                         # c_n


def _center_kernel(x_ref, w1_ref, b1_ref, w3_ref, b3_ref,
                   wfc_ref, bfc_ref, out_ref):
    # Whole centerline path as three chained matmuls: nn_x2_1 (k=1 conv)+Tanh,
    # nn_x2_3 (k=3 valid conv, out_ch=1)+LeakyReLU and nn_x2_5 (Linear); the
    # convs were pre-expanded on the host into block-structured matrices.
    y1 = jnp.tanh(jnp.dot(x_ref[...], w1_ref[...],
                          preferred_element_type=jnp.float32) + b1_ref[...])
    f = jnp.dot(y1, w3_ref[...], preferred_element_type=jnp.float32) + b3_ref[...]
    f = jnp.where(f > 0, f, NEG_SLOPE * f)
    out_ref[...] = (jnp.dot(f, wfc_ref[...], preferred_element_type=jnp.float32)
                    + bfc_ref[...])


# --------------------------- host-side helpers --------------------------------
def _round_up(x, m):
    return ((x + m - 1) // m) * m


def _choose_block(n, max_block):
    # Aim for >= 2 grid steps when there is enough work so the "parallel" grid
    # axis can be sharded over both v7x TensorCores; keep blocks 8-row aligned.
    return max(8, min(max_block, _round_up(-(-n // 2), 8)))


def _pad_rows(x, multiple):
    n = x.shape[0]
    n_pad = _round_up(n, multiple)
    if n_pad != n:
        x = jnp.concatenate(
            [x, jnp.zeros((n_pad - n,) + x.shape[1:], x.dtype)], axis=0)
    return x


def _prep_traj_params(p):
    """Expand natural params into the block-matmul weights used by the kernel."""
    w1, b1, w3, b3, wih, whh4, bl = p
    T = T_TRAJ
    eye_t = jnp.eye(T, dtype=jnp.float32)
    # k=1 conv over channels, replicated per time step (block diagonal).
    w1f = jnp.einsum('ck,ts->tcsk', w1, eye_t).reshape(T * IN_CH, T * CH11)
    b1f = jnp.tile(b1, T).reshape(1, T * CH11)
    # k=3 conv with padding=1: banded block matrix over (time, channel).
    shift = jnp.stack([jnp.eye(T, T, k=a - 1, dtype=jnp.float32) for a in range(3)])
    w3f = jnp.einsum('ats,aij->sitj', shift, w3).reshape(T * CH11, T * CH12)
    b3f = jnp.tile(b3, T).reshape(1, T * CH12)
    # LSTM input projection for all steps: block-diagonal replication of W_ih.
    wihf = jnp.einsum('cj,ts->tcsj', wih.astype(jnp.float32), eye_t)
    wihf = wihf.reshape(T * CH12, T * 4 * HID).astype(jnp.bfloat16)
    blf = jnp.tile(bl, T).reshape(1, T * 4 * HID)
    return w1f, b1f, w3f, b3f, wihf, whh4, blf


def _prep_center_params(p):
    w1, b1, w3, b3, wfc, bfc = p
    L = L_CENTER
    eye_l = jnp.eye(L, dtype=jnp.float32)
    # k=1 conv over channels, replicated per position (input laid out c*L + l).
    w1f = jnp.einsum('ck,lm->clkm', w1, eye_l).reshape(L * IN_CH, L * CH21)
    b1f = jnp.repeat(b1, L).reshape(1, L * CH21)
    # k=3 valid conv to 1 output channel: (CH21*L, FC_IN) banded matrix.
    shift = jnp.stack(
        [jnp.eye(L, FC_IN, k=-a, dtype=jnp.float32) for a in range(3)])
    w3f = jnp.einsum('tc,tlj->clj', w3[:, :, 0], shift).reshape(L * CH21, FC_IN)
    b3f = jnp.broadcast_to(b3, (1, FC_IN)).astype(jnp.float32)
    return w1f, b1f, w3f, b3f, wfc, bfc.reshape(1, HID)


# --------------------------- pallas_call wrappers ------------------------------
def traj_encoder(x, params, max_block=TB_TRAJ):
    """x: (N, T_TRAJ, IN_CH) f32 -> (N, HID) (LSTM final cell state c_n)."""
    n = x.shape[0]
    block = _choose_block(n, max_block)
    xf = _pad_rows(x.reshape(n, T_TRAJ * IN_CH), block)   # lane-dense 2D blocks
    n_pad = xf.shape[0]
    kp = _prep_traj_params(params)
    out = pl.pallas_call(
        _traj_kernel,
        out_shape=jax.ShapeDtypeStruct((n_pad, HID), jnp.float32),
        grid_spec=pltpu.PrefetchScalarGridSpec(
            num_scalar_prefetch=0,
            grid=(n_pad // block,),
            in_specs=[
                pl.BlockSpec((block, T_TRAJ * IN_CH), lambda i: (i, 0)),
                pl.BlockSpec((T_TRAJ * IN_CH, T_TRAJ * CH11), lambda i: (0, 0)),
                pl.BlockSpec((1, T_TRAJ * CH11), lambda i: (0, 0)),
                pl.BlockSpec((T_TRAJ * CH11, T_TRAJ * CH12), lambda i: (0, 0)),
                pl.BlockSpec((1, T_TRAJ * CH12), lambda i: (0, 0)),
                pl.BlockSpec((T_TRAJ * CH12, T_TRAJ * 4 * HID), lambda i: (0, 0)),
                pl.BlockSpec((4, HID, HID), lambda i: (0, 0, 0)),
                pl.BlockSpec((1, T_TRAJ * 4 * HID), lambda i: (0, 0)),
            ],
            out_specs=pl.BlockSpec((block, HID), lambda i: (i, 0)),
            scratch_shapes=[pltpu.VMEM((block, T_TRAJ * 4 * HID), jnp.float32)],
        ),
        compiler_params=pltpu.CompilerParams(
            dimension_semantics=("parallel",),
            vmem_limit_bytes=32 * 1024 * 1024),   # explicit budget (v7x-safe)
    )(xf, *kp)
    return out[:n]


def center_encoder(x, params, max_block=TB_CENTER):
    """x: (N, L_CENTER, IN_CH) f32 -> (N, HID)"""
    n = x.shape[0]
    block = _choose_block(n, max_block)
    # Flatten channel-major (c * L + l) to match the expanded conv weights.
    xf = _pad_rows(jnp.transpose(x, (0, 2, 1)).reshape(n, IN_CH * L_CENTER), block)
    n_pad = xf.shape[0]
    kp = _prep_center_params(params)
    out = pl.pallas_call(
        _center_kernel,
        out_shape=jax.ShapeDtypeStruct((n_pad, HID), jnp.float32),
        grid_spec=pltpu.PrefetchScalarGridSpec(
            num_scalar_prefetch=0,
            grid=(n_pad // block,),
            in_specs=[
                pl.BlockSpec((block, IN_CH * L_CENTER), lambda i: (i, 0)),
                pl.BlockSpec((IN_CH * L_CENTER, CH21 * L_CENTER), lambda i: (0, 0)),
                pl.BlockSpec((1, CH21 * L_CENTER), lambda i: (0, 0)),
                pl.BlockSpec((CH21 * L_CENTER, FC_IN), lambda i: (0, 0)),
                pl.BlockSpec((1, FC_IN), lambda i: (0, 0)),
                pl.BlockSpec((FC_IN, HID), lambda i: (0, 0)),
                pl.BlockSpec((1, HID), lambda i: (0, 0)),
            ],
            out_specs=pl.BlockSpec((block, HID), lambda i: (i, 0)),
        ),
        compiler_params=pltpu.CompilerParams(
            dimension_semantics=("parallel",),
            vmem_limit_bytes=32 * 1024 * 1024),
    )(xf, *kp)
    return out[:n]


def encoder_forward(x1_list, x2_list, traj_params, center_params):
    """Matches Encoder.forward: returns a list (per batch element) of
    (traj_num_b + center_num_b, HID) arrays."""
    # TODO(synk): bucket stacked counts to a few fixed sizes to avoid retraces
    # when (nt, nc) varies a lot across calls.
    all_traj = jnp.concatenate(x1_list, axis=0)
    all_center = jnp.concatenate(x2_list, axis=0)
    traj_out = traj_encoder(all_traj, traj_params)
    center_out = center_encoder(all_center, center_params)
    outs = []
    t_off = c_off = 0
    for xb1, xb2 in zip(x1_list, x2_list):
        nt, nc = xb1.shape[0], xb2.shape[0]
        outs.append(jnp.concatenate(
            [traj_out[t_off:t_off + nt], center_out[c_off:c_off + nc]], axis=0))
        t_off += nt
        c_off += nc
    return outs


# --------------------------- pure-JAX references --------------------------------
def _ref_traj_one(x, w1, b1, w3, b3, wih, whh4, bl, mixed):
    """mixed=True mirrors the kernel's bf16-operand / f32-accumulate scheme;
    mixed=False is the plain f32 math of the original module."""
    y1 = jnp.tanh(x @ w1 + b1)
    yp = jnp.pad(y1, ((1, 1), (0, 0)))
    y2 = (yp[0:T_TRAJ] @ w3[0] + yp[1:T_TRAJ + 1] @ w3[1]
          + yp[2:T_TRAJ + 2] @ w3[2] + b3)
    y2 = jnp.where(y2 > 0, y2, NEG_SLOPE * y2)
    whh = jnp.concatenate([whh4[k] for k in range(4)], axis=1)
    wih_m = wih if mixed else wih.astype(jnp.float32)
    whh_m = whh if mixed else whh.astype(jnp.float32)
    cast = (lambda a: a.astype(jnp.bfloat16)) if mixed else (lambda a: a)
    h = jnp.zeros((1, HID), jnp.float32)
    c = jnp.zeros((1, HID), jnp.float32)
    for t in range(T_TRAJ):
        g = (jnp.dot(cast(y2[t:t + 1]), wih_m, preferred_element_type=jnp.float32)
             + jnp.dot(cast(h), whh_m, preferred_element_type=jnp.float32) + bl)
        i_g = jax.nn.sigmoid(g[:, :HID])
        f_g = jax.nn.sigmoid(g[:, HID:2 * HID])
        g_g = jnp.tanh(g[:, 2 * HID:3 * HID])
        o_g = jax.nn.sigmoid(g[:, 3 * HID:])
        c = f_g * c + i_g * g_g
        h = o_g * jnp.tanh(c)
    return c[0]


def _ref_center_one(x, w1, b1, w3, b3, wfc, bfc):
    y1 = jnp.tanh(x @ w1 + b1)
    y2 = (y1[0:FC_IN] @ w3[0] + y1[1:FC_IN + 1] @ w3[1]
          + y1[2:FC_IN + 2] @ w3[2] + b3)
    y2 = jnp.where(y2 > 0, y2, NEG_SLOPE * y2)
    return y2[:, 0] @ wfc + bfc


# ------------------------------------ main -------------------------------------
if __name__ == "__main__":
    key = jax.random.PRNGKey(0)
    keys = jax.random.split(key, 20)

    def nrm(k, shape, scale=0.1):
        return scale * jax.random.normal(k, shape, dtype=jnp.float32)

    # Natural (module-shaped) parameters; LSTM weights stored in bf16 for the MXU.
    traj_params = (
        nrm(keys[0], (IN_CH, CH11)),                       # nn_x1_1 weight^T
        nrm(keys[1], (CH11,)),                             # nn_x1_1 bias
        nrm(keys[2], (3, CH11, CH12)),                     # nn_x1_3 weight (tap,in,out)
        nrm(keys[3], (CH12,)),                             # nn_x1_3 bias
        nrm(keys[4], (CH12, 4 * HID)).astype(jnp.bfloat16),  # LSTM W_ih^T (i,f,g,o)
        nrm(keys[5], (4, HID, HID)).astype(jnp.bfloat16),    # LSTM W_hh^T per gate
        nrm(keys[6], (4 * HID,)),                          # LSTM b_ih + b_hh
    )
    center_params = (
        nrm(keys[7], (IN_CH, CH21)),                       # nn_x2_1 weight^T
        nrm(keys[8], (CH21,)),                             # nn_x2_1 bias
        nrm(keys[9], (3, CH21, CH22)),                     # nn_x2_3 weight (tap,in,out)
        nrm(keys[10], (CH22,)),                            # nn_x2_3 bias
        nrm(keys[11], (FC_IN, HID)),                       # nn_x2_5 weight^T
        nrm(keys[12], (HID,)),                             # nn_x2_5 bias
    )

    # Batch of 2 with variable numbers of trajectories / centerlines.
    # TODO(synk): the PyTorch module allows variable per-trajectory lengths;
    # here every trajectory uses fixed length T_TRAJ so they can be stacked.
    x1_list = [
        jax.random.normal(keys[13], (3, T_TRAJ, IN_CH), jnp.float32),
        jax.random.normal(keys[14], (2, T_TRAJ, IN_CH), jnp.float32),
    ]
    x2_list = [
        jax.random.normal(keys[15], (2, L_CENTER, IN_CH), jnp.float32),
        jax.random.normal(keys[16], (4, L_CENTER, IN_CH), jnp.float32),
    ]

    outs = encoder_forward(x1_list, x2_list, traj_params, center_params)
    outs = [jax.block_until_ready(o) for o in outs]

    for xb1, xb2, o in zip(x1_list, x2_list, outs):
        nt, nc = xb1.shape[0], xb2.shape[0]
        assert o.shape == (nt + nc, HID)
        # Tight check vs a reference using the same bf16/f32 mixed precision.
        ref_m = jnp.stack(
            [_ref_traj_one(xb1[i], *traj_params, mixed=True) for i in range(nt)]
            + [_ref_center_one(xb2[i], *center_params) for i in range(nc)])
        assert jnp.allclose(o, ref_m, atol=2e-3, rtol=2e-3), \
            "kernel mismatch vs mixed-precision reference"
        # Looser sanity check vs the plain f32 math of the original module.
        ref_f = jnp.stack(
            [_ref_traj_one(xb1[i], *traj_params, mixed=False) for i in range(nt)]
            + [_ref_center_one(xb2[i], *center_params) for i in range(nc)])
        assert jnp.allclose(o, ref_f, atol=2e-2, rtol=2e-2), \
            "kernel drifted from f32 reference"

    print("KERNEL_OK")
</pallas_src>

<mosaic_0001>
module attributes {stable_mosaic.version = 11 : i64} {
  func.func @_traj_kernel(%arg0: i32, %arg1: memref<8x24xf32, #tpu.memory_space<vmem>>, %arg2: memref<24x64xf32, #tpu.memory_space<vmem>>, %arg3: memref<1x64xf32, #tpu.memory_space<vmem>>, %arg4: memref<64x64xf32, #tpu.memory_space<vmem>>, %arg5: memref<1x64xf32, #tpu.memory_space<vmem>>, %arg6: memref<64x4096xbf16, #tpu.memory_space<vmem>>, %arg7: memref<4x128x128xbf16, #tpu.memory_space<vmem>>, %arg8: memref<1x4096xf32, #tpu.memory_space<vmem>>, %arg9: memref<8x128xf32, #tpu.memory_space<vmem>>, %arg10: memref<8x4096xf32, #tpu.memory_space<vmem>>) attributes {dimension_semantics = [#tpu.dimension_semantics<parallel>], iteration_bounds = array<i64: 1>, scalar_prefetch = 0 : i64, scratch_operands = 1 : i64, tpu.core_type = #tpu.core_type<tc>, window_params = [{transform_indices = @transform_0, window_bounds = array<i64: 8, 24>}, {pipeline_mode = #tpu.pipeline_mode<synchronous>, transform_indices = @transform_1, window_bounds = array<i64: 24, 64>}, {pipeline_mode = #tpu.pipeline_mode<synchronous>, transform_indices = @transform_2, window_bounds = array<i64: 1, 64>}, {pipeline_mode = #tpu.pipeline_mode<synchronous>, transform_indices = @transform_3, window_bounds = array<i64: 64, 64>}, {pipeline_mode = #tpu.pipeline_mode<synchronous>, transform_indices = @transform_4, window_bounds = array<i64: 1, 64>}, {pipeline_mode = #tpu.pipeline_mode<synchronous>, transform_indices = @transform_5, window_bounds = array<i64: 64, 4096>}, {pipeline_mode = #tpu.pipeline_mode<synchronous>, transform_indices = @transform_6, window_bounds = array<i64: 4, 128, 128>}, {pipeline_mode = #tpu.pipeline_mode<synchronous>, transform_indices = @transform_7, window_bounds = array<i64: 1, 4096>}, {transform_indices = @transform_8, window_bounds = array<i64: 8, 128>}]} {
    %c0 = arith.constant 0 : index
    %c0_0 = arith.constant 0 : index
    %0 = vector.load %arg1[%c0, %c0_0] : memref<8x24xf32, #tpu.memory_space<vmem>>, vector<8x24xf32>
    %c0_1 = arith.constant 0 : index
    %c0_2 = arith.constant 0 : index
    %1 = vector.load %arg2[%c0_1, %c0_2] : memref<24x64xf32, #tpu.memory_space<vmem>>, vector<24x64xf32>
    %cst = arith.constant dense<0.000000e+00> : vector<8x64xf32>
    %2 = tpu.matmul %0, %1, %cst {dimension_numbers = #tpu.dot_dimension_numbers<[1], [0], [0], [1], [0, 0, 1, 1], [], []>} : vector<8x24xf32>, vector<24x64xf32>, vector<8x64xf32> -> vector<8x64xf32>
    %c0_3 = arith.constant 0 : index
    %c0_4 = arith.constant 0 : index
    %3 = vector.load %arg3[%c0_3, %c0_4] : memref<1x64xf32, #tpu.memory_space<vmem>>, vector<1x64xf32>
    %4 = vector.broadcast %3 : vector<1x64xf32> to vector<8x64xf32>
    %5 = arith.addf %2, %4 : vector<8x64xf32>
    %6 = math.tanh %5 : vector<8x64xf32>
    %c0_5 = arith.constant 0 : index
    %c0_6 = arith.constant 0 : index
    %7 = vector.load %arg4[%c0_5, %c0_6] : memref<64x64xf32, #tpu.memory_space<vmem>>, vector<64x64xf32>
    %cst_7 = arith.constant dense<0.000000e+00> : vector<8x64xf32>
    %8 = tpu.matmul %6, %7, %cst_7 {dimension_numbers = #tpu.dot_dimension_numbers<[1], [0], [0], [1], [0, 0, 1, 1], [], []>} : vector<8x64xf32>, vector<64x64xf32>, vector<8x64xf32> -> vector<8x64xf32>
    %c0_8 = arith.constant 0 : index
    %c0_9 = arith.constant 0 : index
    %9 = vector.load %arg5[%c0_8, %c0_9] : memref<1x64xf32, #tpu.memory_space<vmem>>, vector<1x64xf32>
    %10 = vector.broadcast %9 : vector<1x64xf32> to vector<8x64xf32>
    %11 = arith.addf %8, %10 : vector<8x64xf32>
    %cst_10 = arith.constant 0.000000e+00 : f32
    %12 = vector.broadcast %cst_10 : f32 to vector<8x64xf32>
    %13 = arith.cmpf ogt, %11, %12 : vector<8x64xf32>
    %cst_11 = arith.constant 0.00999999977 : f32
    %14 = vector.broadcast %cst_11 : f32 to vector<8x64xf32>
    %15 = arith.mulf %14, %11 : vector<8x64xf32>
    %16 = arith.select %13, %11, %15 : vector<8x64xi1>, vector<8x64xf32>
    %17 = arith.truncf %16 : vector<8x64xf32> to vector<8x64xbf16>
    %c0_12 = arith.constant 0 : index
    %c0_13 = arith.constant 0 : index
    %18 = vector.load %arg6[%c0_12, %c0_13] : memref<64x4096xbf16, #tpu.memory_space<vmem>>, vector<64x4096xbf16>
    %cst_14 = arith.constant dense<0.000000e+00> : vector<8x4096xf32>
    %19 = tpu.matmul %17, %18, %cst_14 {dimension_numbers = #tpu.dot_dimension_numbers<[1], [0], [0], [1], [0, 0, 1, 1], [], []>} : vector<8x64xbf16>, vector<64x4096xbf16>, vector<8x4096xf32> -> vector<8x4096xf32>
    %c0_15 = arith.constant 0 : index
    %c0_16 = arith.constant 0 : index
    %20 = vector.load %arg8[%c0_15, %c0_16] : memref<1x4096xf32, #tpu.memory_space<vmem>>, vector<1x4096xf32>
    %21 = vector.broadcast %20 : vector<1x4096xf32> to vector<8x4096xf32>
    %22 = arith.addf %19, %21 : vector<8x4096xf32>
    %c0_17 = arith.constant 0 : index
    %c0_18 = arith.constant 0 : index
    %23 = vector.load %arg10[%c0_17, %c0_18] : memref<8x4096xf32, #tpu.memory_space<vmem>>, vector<8x4096xf32>
    tpu.vector_store %arg10[%c0_17, %c0_18], %22 {strides = array<i32>} : memref<8x4096xf32, #tpu.memory_space<vmem>>, vector<8x4096xf32>,
    %cst_19 = arith.constant 0.000000e+00 : f32
    %24 = vector.broadcast %cst_19 : f32 to vector<8x128xf32>
    %cst_20 = arith.constant 0.000000e+00 : f32
    %25 = vector.broadcast %cst_20 : f32 to vector<8x128xf32>
    %26 = arith.truncf %24 : vector<8x128xf32> to vector<8x128xbf16>
    %c0_21 = arith.constant 0 : index
    %c0_22 = arith.constant 0 : index
    %27 = vector.load %arg10[%c0_21, %c0_22] : memref<8x4096xf32, #tpu.memory_space<vmem>>, vector<8x128xf32>
    %c0_23 = arith.constant 0 : index
    %c0_24 = arith.constant 0 : index
    %c0_25 = arith.constant 0 : index
    %28 = vector.load %arg7[%c0_23, %c0_24, %c0_25] : memref<4x128x128xbf16, #tpu.memory_space<vmem>>, vector<1x128x128xbf16>
    %29 = vector.shape_cast %28 : vector<1x128x128xbf16> to vector<128x128xbf16>
    %cst_26 = arith.constant dense<0.000000e+00> : vector<8x128xf32>
    %30 = tpu.matmul %26, %29, %cst_26 {dimension_numbers = #tpu.dot_dimension_numbers<[1], [0], [0], [1], [0, 0, 1, 1], [], []>} : vector<8x128xbf16>, vector<128x128xbf16>, vector<8x128xf32> -> vector<8x128xf32>
    %31 = arith.addf %27, %30 : vector<8x128xf32>
    %32 = arith.negf %31 : vector<8x128xf32>
    %33 = math.exp %32 : vector<8x128xf32>
    %cst_27 = arith.constant 1.000000e+00 : f32
    %34 = vector.broadcast %cst_27 : f32 to vector<8x128xf32>
    %35 = arith.addf %34, %33 : vector<8x128xf32>
    %36 = arith.divf %34, %35 : vector<8x128xf32>
    %c0_28 = arith.constant 0 : index
    %c256 = arith.constant 256 : index
    %37 = vector.load %arg10[%c0_28, %c256] : memref<8x4096xf32, #tpu.memory_space<vmem>>, vector<8x128xf32>
    %c2 = arith.constant 2 : index
    %c0_29 = arith.constant 0 : index
    %c0_30 = arith.constant 0 : index
    %38 = vector.load %arg7[%c2, %c0_29, %c0_30] : memref<4x128x128xbf16, #tpu.memory_space<vmem>>, vector<1x128x128xbf16>
    %39 = vector.shape_cast %38 : vector<1x128x128xbf16> to vector<128x128xbf16>
    %cst_31 = arith.constant dense<0.000000e+00> : vector<8x128xf32>
    %40 = tpu.matmul %26, %39, %cst_31 {dimension_numbers = #tpu.dot_dimension_numbers<[1], [0], [0], [1], [0, 0, 1, 1], [], []>} : vector<8x128xbf16>, vector<128x128xbf16>, vector<8x128xf32> -> vector<8x128xf32>
    %41 = arith.addf %37, %40 : vector<8x128xf32>
    %42 = math.tanh %41 : vector<8x128xf32>
    %43 = arith.mulf %36, %42 : vector<8x128xf32>
    %c0_32 = arith.constant 0 : index
    %c128 = arith.constant 128 : index
    %44 = vector.load %arg10[%c0_32, %c128] : memref<8x4096xf32, #tpu.memory_space<vmem>>, vector<8x128xf32>
    %c1 = arith.constant 1 : index
    %c0_33 = arith.constant 0 : index
    %c0_34 = arith.constant 0 : index
    %45 = vector.load %arg7[%c1, %c0_33, %c0_34] : memref<4x128x128xbf16, #tpu.memory_space<vmem>>, vector<1x128x128xbf16>
    %46 = vector.shape_cast %45 : vector<1x128x128xbf16> to vector<128x128xbf16>
    %cst_35 = arith.constant dense<0.000000e+00> : vector<8x128xf32>
    %47 = tpu.matmul %26, %46, %cst_35 {dimension_numbers = #tpu.dot_dimension_numbers<[1], [0], [0], [1], [0, 0, 1, 1], [], []>} : vector<8x128xbf16>, vector<128x128xbf16>, vector<8x128xf32> -> vector<8x128xf32>
    %48 = arith.addf %44, %47 : vector<8x128xf32>
    %49 = arith.negf %48 : vector<8x128xf32>
    %50 = math.exp %49 : vector<8x128xf32>
    %cst_36 = arith.constant 1.000000e+00 : f32
    %51 = vector.broadcast %cst_36 : f32 to vector<8x128xf32>
    %52 = arith.addf %51, %50 : vector<8x128xf32>
    %53 = arith.divf %51, %52 : vector<8x128xf32>
    %54 = arith.mulf %53, %25 : vector<8x128xf32>
    %55 = arith.addf %54, %43 : vector<8x128xf32>
    %c0_37 = arith.constant 0 : index
    %c384 = arith.constant 384 : index
    %56 = vector.load %arg10[%c0_37, %c384] : memref<8x4096xf32, #tpu.memory_space<vmem>>, vector<8x128xf32>
    %c3 = arith.constant 3 : index
    %c0_38 = arith.constant 0 : index
    %c0_39 = arith.constant 0 : index
    %57 = vector.load %arg7[%c3, %c0_38, %c0_39] : memref<4x128x128xbf16, #tpu.memory_space<vmem>>, vector<1x128x128xbf16>
    %58 = vector.shape_cast %57 : vector<1x128x128xbf16> to vector<128x128xbf16>
    %cst_40 = arith.constant dense<0.000000e+00> : vector<8x128xf32>
    %59 = tpu.matmul %26, %58, %cst_40 {dimension_numbers = #tpu.dot_dimension_numbers<[1], [0], [0], [1], [0, 0, 1, 1], [], []>} : vector<8x128xbf16>, vector<128x128xbf16>, vector<8x128xf32> -> vector<8x128xf32>
    %60 = arith.addf %56, %59 : vector<8x128xf32>
    %61 = arith.negf %60 : vector<8x128xf32>
    %62 = math.exp %61 : vector<8x128xf32>
    %cst_41 = arith.constant 1.000000e+00 : f32
    %63 = vector.broadcast %cst_41 : f32 to vector<8x128xf32>
    %64 = arith.addf %63, %62 : vector<8x128xf32>
    %65 = arith.divf %63, %64 : vector<8x128xf32>
    %66 = math.tanh %55 : vector<8x128xf32>
    %67 = arith.mulf %65, %66 : vector<8x128xf32>
    %68 = arith.truncf %67 : vector<8x128xf32> to vector<8x128xbf16>
    %c0_42 = arith.constant 0 : index
    %c512 = arith.constant 512 : index
    %69 = vector.load %arg10[%c0_42, %c512] : memref<8x4096xf32, #tpu.memory_space<vmem>>, vector<8x128xf32>
    %c0_43 = arith.constant 0 : index
    %c0_44 = arith.constant 0 : index
    %c0_45 = arith.constant 0 : index
    %70 = vector.load %arg7[%c0_43, %c0_44, %c0_45] : memref<4x128x128xbf16, #tpu.memory_space<vmem>>, vector<1x128x128xbf16>
    %71 = vector.shape_cast %70 : vector<1x128x128xbf16> to vector<128x128xbf16>
    %cst_46 = arith.constant dense<0.000000e+00> : vector<8x128xf32>
    %72 = tpu.matmul %68, %71, %cst_46 {dimension_numbers = #tpu.dot_dimension_numbers<[1], [0], [0], [1], [0, 0, 1, 1], [], []>} : vector<8x128xbf16>, vector<128x128xbf16>, vector<8x128xf32> -> vector<8x128xf32>
    %73 = arith.addf %69, %72 : vector<8x128xf32>
    %74 = arith.negf %73 : vector<8x128xf32>
    %75 = math.exp %74 : vector<8x128xf32>
    %cst_47 = arith.constant 1.000000e+00 : f32
    %76 = vector.broadcast %cst_47 : f32 to vector<8x128xf32>
    %77 = arith.addf %76, %75 : vector<8x128xf32>
    %78 = arith.divf %76, %77 : vector<8x128xf32>
    %c0_48 = arith.constant 0 : index
    %c768 = arith.constant 768 : index
    %79 = vector.load %arg10[%c0_48, %c768] : memref<8x4096xf32, #tpu.memory_space<vmem>>, vector<8x128xf32>
    %c2_49 = arith.constant 2 : index
    %c0_50 = arith.constant 0 : index
    %c0_51 = arith.constant 0 : index
    %80 = vector.load %arg7[%c2_49, %c0_50, %c0_51] : memref<4x128x128xbf16, #tpu.memory_space<vmem>>, vector<1x128x128xbf16>
    %81 = vector.shape_cast %80 : vector<1x128x128xbf16> to vector<128x128xbf16>
    %cst_52 = arith.constant dense<0.000000e+00> : vector<8x128xf32>
    %82 = tpu.matmul %68, %81, %cst_52 {dimension_numbers = #tpu.dot_dimension_numbers<[1], [0], [0], [1], [0, 0, 1, 1], [], []>} : vector<8x128xbf16>, vector<128x128xbf16>, vector<8x128xf32> -> vector<8x128xf32>
    %83 = arith.addf %79, %82 : vector<8x128xf32>
    %84 = math.tanh %83 : vector<8x128xf32>
    %85 = arith.mulf %78, %84 : vector<8x128xf32>
    %c0_53 = arith.constant 0 : index
    %c640 = arith.constant 640 : index
    %86 = vector.load %arg10[%c0_53, %c640] : memref<8x4096xf32, #tpu.memory_space<vmem>>, vector<8x128xf32>
    %c1_54 = arith.constant 1 : index
    %c0_55 = arith.constant 0 : index
    %c0_56 = arith.constant 0 : index
    %87 = vector.load %arg7[%c1_54, %c0_55, %c0_56] : memref<4x128x128xbf16, #tpu.memory_space<vmem>>, vector<1x128x128xbf16>
    %88 = vector.shape_cast %87 : vector<1x128x128xbf16> to vector<128x128xbf16>
    %cst_57 = arith.constant dense<0.000000e+00> : vector<8x128xf32>
    %89 = tpu.matmul %68, %88, %cst_57 {dimension_numbers = #tpu.dot_dimension_numbers<[1], [0], [0], [1], [0, 0, 1, 1], [], []>} : vector<8x128xbf16>, vector<128x128xbf16>, vector<8x128xf32> -> vector<8x128xf32>
    %90 = arith.addf %86, %89 : vector<8x128xf32>
    %91 = arith.negf %90 : vector<8x128xf32>
    %92 = math.exp %91 : vector<8x128xf32>
    %cst_58 = arith.constant 1.000000e+00 : f32
    %93 = vector.broadcast %cst_58 : f32 to vector<8x128xf32>
    %94 = arith.addf %93, %92 : vector<8x128xf32>
    %95 = arith.divf %93, %94 : vector<8x128xf32>
    %96 = arith.mulf %95, %55 : vector<8x128xf32>
    %97 = arith.addf %96, %85 : vector<8x128xf32>
    %c0_59 = arith.constant 0 : index
    %c896 = arith.constant 896 : index
    %98 = vector.load %arg10[%c0_59, %c896] : memref<8x4096xf32, #tpu.memory_space<vmem>>, vector<8x128xf32>
    %c3_60 = arith.constant 3 : index
    %c0_61 = arith.constant 0 : index
    %c0_62 = arith.constant 0 : index
    %99 = vector.load %arg7[%c3_60, %c0_61, %c0_62] : memref<4x128x128xbf16, #tpu.memory_space<vmem>>, vector<1x128x128xbf16>
    %100 = vector.shape_cast %99 : vector<1x128x128xbf16> to vector<128x128xbf16>
    %cst_63 = arith.constant dense<0.000000e+00> : vector<8x128xf32>
    %101 = tpu.matmul %68, %100, %cst_63 {dimension_numbers = #tpu.dot_dimension_numbers<[1], [0], [0], [1], [0, 0, 1, 1], [], []>} : vector<8x128xbf16>, vector<128x128xbf16>, vector<8x128xf32> -> vector<8x128xf32>
    %102 = arith.addf %98, %101 : vector<8x128xf32>
    %103 = arith.negf %102 : vector<8x128xf32>
    %104 = math.exp %103 : vector<8x128xf32>
    %cst_64 = arith.constant 1.000000e+00 : f32
    %105 = vector.broadcast %cst_64 : f32 to vector<8x128xf32>
    %106 = arith.addf %105, %104 : vector<8x128xf32>
    %107 = arith.divf %105, %106 : vector<8x128xf32>
    %108 = math.tanh %97 : vector<8x128xf32>
    %109 = arith.mulf %107, %108 : vector<8x128xf32>
    %110 = arith.truncf %109 : vector<8x128xf32> to vector<8x128xbf16>
    %c0_65 = arith.constant 0 : index
    %c1024 = arith.constant 1024 : index
    %111 = vector.load %arg10[%c0_65, %c1024] : memref<8x4096xf32, #tpu.memory_space<vmem>>, vector<8x128xf32>
    %c0_66 = arith.constant 0 : index
    %c0_67 = arith.constant 0 : index
    %c0_68 = arith.constant 0 : index
    %112 = vector.load %arg7[%c0_66, %c0_67, %c0_68] : memref<4x128x128xbf16, #tpu.memory_space<vmem>>, vector<1x128x128xbf16>
    %113 = vector.shape_cast %112 : vector<1x128x128xbf16> to vector<128x128xbf16>
    %cst_69 = arith.constant dense<0.000000e+00> : vector<8x128xf32>
    %114 = tpu.matmul %110, %113, %cst_69 {dimension_numbers = #tpu.dot_dimension_numbers<[1], [0], [0], [1], [0, 0, 1, 1], [], []>} : vector<8x128xbf16>, vector<128x128xbf16>, vector<8x128xf32> -> vector<8x128xf32>
    %115 = arith.addf %111, %114 : vector<8x128xf32>
    %116 = arith.negf %115 : vector<8x128xf32>
    %117 = math.exp %116 : vector<8x128xf32>
    %cst_70 = arith.constant 1.000000e+00 : f32
    %118 = vector.broadcast %cst_70 : f32 to vector<8x128xf32>
    %119 = arith.addf %118, %117 : vector<8x128xf32>
    %120 = arith.divf %118, %119 : vector<8x128xf32>
    %c0_71 = arith.constant 0 : index
    %c1280 = arith.constant 1280 : index
    %121 = vector.load %arg10[%c0_71, %c1280] : memref<8x4096xf32, #tpu.memory_space<vmem>>, vector<8x128xf32>
    %c2_72 = arith.constant 2 : index
    %c0_73 = arith.constant 0 : index
    %c0_74 = arith.constant 0 : index
    %122 = vector.load %arg7[%c2_72, %c0_73, %c0_74] : memref<4x128x128xbf16, #tpu.memory_space<vmem>>, vector<1x128x128xbf16>
    %123 = vector.shape_cast %122 : vector<1x128x128xbf16> to vector<128x128xbf16>
    %cst_75 = arith.constant dense<0.000000e+00> : vector<8x128xf32>
    %124 = tpu.matmul %110, %123, %cst_75 {dimension_numbers = #tpu.dot_dimension_numbers<[1], [0], [0], [1], [0, 0, 1, 1], [], []>} : vector<8x128xbf16>, vector<128x128xbf16>, vector<8x128xf32> -> vector<8x128xf32>
    %125 = arith.addf %121, %124 : vector<8x128xf32>
    %126 = math.tanh %125 : vector<8x128xf32>
    %127 = arith.mulf %120, %126 : vector<8x128xf32>
    %c0_76 = arith.constant 0 : index
    %c1152 = arith.constant 1152 : index
    %128 = vector.load %arg10[%c0_76, %c1152] : memref<8x4096xf32, #tpu.memory_space<vmem>>, vector<8x128xf32>
    %c1_77 = arith.constant 1 : index
    %c0_78 = arith.constant 0 : index
    %c0_79 = arith.constant 0 : index
    %129 = vector.load %arg7[%c1_77, %c0_78, %c0_79] : memref<4x128x128xbf16, #tpu.memory_space<vmem>>, vector<1x128x128xbf16>
    %130 = vector.shape_cast %129 : vector<1x128x128xbf16> to vector<128x128xbf16>
    %cst_80 = arith.constant dense<0.000000e+00> : vector<8x128xf32>
    %131 = tpu.matmul %110, %130, %cst_80 {dimension_numbers = #tpu.dot_dimension_numbers<[1], [0], [0], [1], [0, 0, 1, 1], [], []>} : vector<8x128xbf16>, vector<128x128xbf16>, vector<8x128xf32> -> vector<8x128xf32>
    %132 = arith.addf %128, %131 : vector<8x128xf32>
    %133 = arith.negf %132 : vector<8x128xf32>
    %134 = math.exp %133 : vector<8x128xf32>
    %cst_81 = arith.constant 1.000000e+00 : f32
    %135 = vector.broadcast %cst_81 : f32 to vector<8x128xf32>
    %136 = arith.addf %135, %134 : vector<8x128xf32>
    %137 = arith.divf %135, %136 : vector<8x128xf32>
    %138 = arith.mulf %137, %97 : vector<8x128xf32>
    %139 = arith.addf %138, %127 : vector<8x128xf32>
    %c0_82 = arith.constant 0 : index
    %c1408 = arith.constant 1408 : index
    %140 = vector.load %arg10[%c0_82, %c1408] : memref<8x4096xf32, #tpu.memory_space<vmem>>, vector<8x128xf32>
    %c3_83 = arith.constant 3 : index
    %c0_84 = arith.constant 0 : index
    %c0_85 = arith.constant 0 : index
    %141 = vector.load %arg7[%c3_83, %c0_84, %c0_85] : memref<4x128x128xbf16, #tpu.memory_space<vmem>>, vector<1x128x128xbf16>
    %142 = vector.shape_cast %141 : vector<1x128x128xbf16> to vector<128x128xbf16>
    %cst_86 = arith.constant dense<0.000000e+00> : vector<8x128xf32>
    %143 = tpu.matmul %110, %142, %cst_86 {dimension_numbers = #tpu.dot_dimension_numbers<[1], [0], [0], [1], [0, 0, 1, 1], [], []>} : vector<8x128xbf16>, vector<128x128xbf16>, vector<8x128xf32> -> vector<8x128xf32>
    %144 = arith.addf %140, %143 : vector<8x128xf32>
    %145 = arith.negf %144 : vector<8x128xf32>
    %146 = math.exp %145 : vector<8x128xf32>
    %cst_87 = arith.constant 1.000000e+00 : f32
    %147 = vector.broadcast %cst_87 : f32 to vector<8x128xf32>
    %148 = arith.addf %147, %146 : vector<8x128xf32>
    %149 = arith.divf %147, %148 : vector<8x128xf32>
    %150 = math.tanh %139 : vector<8x128xf32>
    %151 = arith.mulf %149, %150 : vector<8x128xf32>
    %152 = arith.truncf %151 : vector<8x128xf32> to vector<8x128xbf16>
    %c0_88 = arith.constant 0 : index
    %c1536 = arith.constant 1536 : index
    %153 = vector.load %arg10[%c0_88, %c1536] : memref<8x4096xf32, #tpu.memory_space<vmem>>, vector<8x128xf32>
    %c0_89 = arith.constant 0 : index
    %c0_90 = arith.constant 0 : index
    %c0_91 = arith.constant 0 : index
    %154 = vector.load %arg7[%c0_89, %c0_90, %c0_91] : memref<4x128x128xbf16, #tpu.memory_space<vmem>>, vector<1x128x128xbf16>
    %155 = vector.shape_cast %154 : vector<1x128x128xbf16> to vector<128x128xbf16>
    %cst_92 = arith.constant dense<0.000000e+00> : vector<8x128xf32>
    %156 = tpu.matmul %152, %155, %cst_92 {dimension_numbers = #tpu.dot_dimension_numbers<[1], [0], [0], [1], [0, 0, 1, 1], [], []>} : vector<8x128xbf16>, vector<128x128xbf16>, vector<8x128xf32> -> vector<8x128xf32>
    %157 = arith.addf %153, %156 : vector<8x128xf32>
    %158 = arith.negf %157 : vector<8x128xf32>
    %159 = math.exp %158 : vector<8x128xf32>
    %cst_93 = arith.constant 1.000000e+00 : f32
    %160 = vector.broadcast %cst_93 : f32 to vector<8x128xf32>
    %161 = arith.addf %160, %159 : vector<8x128xf32>
    %162 = arith.divf %160, %161 : vector<8x128xf32>
    %c0_94 = arith.constant 0 : index
    %c1792 = arith.constant 1792 : index
    %163 = vector.load %arg10[%c0_94, %c1792] : memref<8x4096xf32, #tpu.memory_space<vmem>>, vector<8x128xf32>
    %c2_95 = arith.constant 2 : index
    %c0_96 = arith.constant 0 : index
    %c0_97 = arith.constant 0 : index
    %164 = vector.load %arg7[%c2_95, %c0_96, %c0_97] : memref<4x128x128xbf16, #tpu.memory_space<vmem>>, vector<1x128x128xbf16>
    %165 = vector.shape_cast %164 : vector<1x128x128xbf16> to vector<128x128xbf16>
    %cst_98 = arith.constant dense<0.000000e+00> : vector<8x128xf32>
    %166 = tpu.matmul %152, %165, %cst_98 {dimension_numbers = #tpu.dot_dimension_numbers<[1], [0], [0], [1], [0, 0, 1, 1], [], []>} : vector<8x128xbf16>, vector<128x128xbf16>, vector<8x128xf32> -> vector<8x128xf32>
    %167 = arith.addf %163, %166 : vector<8x128xf32>
    %168 = math.tanh %167 : vector<8x128xf32>
    %169 = arith.mulf %162, %168 : vector<8x128xf32>
    %c0_99 = arith.constant 0 : index
    %c1664 = arith.constant 1664 : index
    %170 = vector.load %arg10[%c0_99, %c1664] : memref<8x4096xf32, #tpu.memory_space<vmem>>, vector<8x128xf32>
    %c1_100 = arith.constant 1 : index
    %c0_101 = arith.constant 0 : index
    %c0_102 = arith.constant 0 : index
    %171 = vector.load %arg7[%c1_100, %c0_101, %c0_102] : memref<4x128x128xbf16, #tpu.memory_space<vmem>>, vector<1x128x128xbf16>
    %172 = vector.shape_cast %171 : vector<1x128x128xbf16> to vector<128x128xbf16>
    %cst_103 = arith.constant dense<0.000000e+00> : vector<8x128xf32>
    %173 = tpu.matmul %152, %172, %cst_103 {dimension_numbers = #tpu.dot_dimension_numbers<[1], [0], [0], [1], [0, 0, 1, 1], [], []>} : vector<8x128xbf16>, vector<128x128xbf16>, vector<8x128xf32> -> vector<8x128xf32>
    %174 = arith.addf %170, %173 : vector<8x128xf32>
    %175 = arith.negf %174 : vector<8x128xf32>
    %176 = math.exp %175 : vector<8x128xf32>
    %cst_104 = arith.constant 1.000000e+00 : f32
    %177 = vector.broadcast %cst_104 : f32 to vector<8x128xf32>
    %178 = arith.addf %177, %176 : vector<8x128xf32>
    %179 = arith.divf %177, %178 : vector<8x128xf32>
    %180 = arith.mulf %179, %139 : vector<8x128xf32>
    %181 = arith.addf %180, %169 : vector<8x128xf32>
    %c0_105 = arith.constant 0 : index
    %c1920 = arith.constant 1920 : index
    %182 = vector.load %arg10[%c0_105, %c1920] : memref<8x4096xf32, #tpu.memory_space<vmem>>, vector<8x128xf32>
    %c3_106 = arith.constant 3 : index
    %c0_107 = arith.constant 0 : index
    %c0_108 = arith.constant 0 : index
    %183 = vector.load %arg7[%c3_106, %c0_107, %c0_108] : memref<4x128x128xbf16, #tpu.memory_space<vmem>>, vector<1x128x128xbf16>
    %184 = vector.shape_cast %183 : vector<1x128x128xbf16> to vector<128x128xbf16>
    %cst_109 = arith.constant dense<0.000000e+00> : vector<8x128xf32>
    %185 = tpu.matmul %152, %184, %cst_109 {dimension_numbers = #tpu.dot_dimension_numbers<[1], [0], [0], [1], [0, 0, 1, 1], [], []>} : vector<8x128xbf16>, vector<128x128xbf16>, vector<8x128xf32> -> vector<8x128xf32>
    %186 = arith.addf %182, %185 : vector<8x128xf32>
    %187 = arith.negf %186 : vector<8x128xf32>
    %188 = math.exp %187 : vector<8x128xf32>
    %cst_110 = arith.constant 1.000000e+00 : f32
    %189 = vector.broadcast %cst_110 : f32 to vector<8x128xf32>
    %190 = arith.addf %189, %188 : vector<8x128xf32>
    %191 = arith.divf %189, %190 : vector<8x128xf32>
    %192 = math.tanh %181 : vector<8x128xf32>
    %193 = arith.mulf %191, %192 : vector<8x128xf32>
    %194 = arith.truncf %193 : vector<8x128xf32> to vector<8x128xbf16>
    %c0_111 = arith.constant 0 : index
    %c2048 = arith.constant 2048 : index
    %195 = vector.load %arg10[%c0_111, %c2048] : memref<8x4096xf32, #tpu.memory_space<vmem>>, vector<8x128xf32>
    %c0_112 = arith.constant 0 : index
    %c0_113 = arith.constant 0 : index
    %c0_114 = arith.constant 0 : index
    %196 = vector.load %arg7[%c0_112, %c0_113, %c0_114] : memref<4x128x128xbf16, #tpu.memory_space<vmem>>, vector<1x128x128xbf16>
    %197 = vector.shape_cast %196 : vector<1x128x128xbf16> to vector<128x128xbf16>
    %cst_115 = arith.constant dense<0.000000e+00> : vector<8x128xf32>
    %198 = tpu.matmul %194, %197, %cst_115 {dimension_numbers = #tpu.dot_dimension_numbers<[1], [0], [0], [1], [0, 0, 1, 1], [], []>} : vector<8x128xbf16>, vector<128x128xbf16>, vector<8x128xf32> -> vector<8x128xf32>
    %199 = arith.addf %195, %198 : vector<8x128xf32>
    %200 = arith.negf %199 : vector<8x128xf32>
    %201 = math.exp %200 : vector<8x128xf32>
    %cst_116 = arith.constant 1.000000e+00 : f32
    %202 = vector.broadcast %cst_116 : f32 to vector<8x128xf32>
    %203 = arith.addf %202, %201 : vector<8x128xf32>
    %204 = arith.divf %202, %203 : vector<8x128xf32>
    %c0_117 = arith.constant 0 : index
    %c2304 = arith.constant 2304 : index
    %205 = vector.load %arg10[%c0_117, %c2304] : memref<8x4096xf32, #tpu.memory_space<vmem>>, vector<8x128xf32>
    %c2_118 = arith.constant 2 : index
    %c0_119 = arith.constant 0 : index
    %c0_120 = arith.constant 0 : index
    %206 = vector.load %arg7[%c2_118, %c0_119, %c0_120] : memref<4x128x128xbf16, #tpu.memory_space<vmem>>, vector<1x128x128xbf16>
    %207 = vector.shape_cast %206 : vector<1x128x128xbf16> to vector<128x128xbf16>
    %cst_121 = arith.constant dense<0.000000e+00> : vector<8x128xf32>
    %208 = tpu.matmul %194, %207, %cst_121 {dimension_numbers = #tpu.dot_dimension_numbers<[1], [0], [0], [1], [0, 0, 1, 1], [], []>} : vector<8x128xbf16>, vector<128x128xbf16>, vector<8x128xf32> -> vector<8x128xf32>
    %209 = arith.addf %205, %208 : vector<8x128xf32>
    %210 = math.tanh %209 : vector<8x128xf32>
    %211 = arith.mulf %204, %210 : vector<8x128xf32>
    %c0_122 = arith.constant 0 : index
    %c2176 = arith.constant 2176 : index
    %212 = vector.load %arg10[%c0_122, %c2176] : memref<8x4096xf32, #tpu.memory_space<vmem>>, vector<8x128xf32>
    %c1_123 = arith.constant 1 : index
    %c0_124 = arith.constant 0 : index
    %c0_125 = arith.constant 0 : index
    %213 = vector.load %arg7[%c1_123, %c0_124, %c0_125] : memref<4x128x128xbf16, #tpu.memory_space<vmem>>, vector<1x128x128xbf16>
    %214 = vector.shape_cast %213 : vector<1x128x128xbf16> to vector<128x128xbf16>
    %cst_126 = arith.constant dense<0.000000e+00> : vector<8x128xf32>
    %215 = tpu.matmul %194, %214, %cst_126 {dimension_numbers = #tpu.dot_dimension_numbers<[1], [0], [0], [1], [0, 0, 1, 1], [], []>} : vector<8x128xbf16>, vector<128x128xbf16>, vector<8x128xf32> -> vector<8x128xf32>
    %216 = arith.addf %212, %215 : vector<8x128xf32>
    %217 = arith.negf %216 : vector<8x128xf32>
    %218 = math.exp %217 : vector<8x128xf32>
    %cst_127 = arith.constant 1.000000e+00 : f32
    %219 = vector.broadcast %cst_127 : f32 to vector<8x128xf32>
    %220 = arith.addf %219, %218 : vector<8x128xf32>
    %221 = arith.divf %219, %220 : vector<8x128xf32>
    %222 = arith.mulf %221, %181 : vector<8x128xf32>
    %223 = arith.addf %222, %211 : vector<8x128xf32>
    %c0_128 = arith.constant 0 : index
    %c2432 = arith.constant 2432 : index
    %224 = vector.load %arg10[%c0_128, %c2432] : memref<8x4096xf32, #tpu.memory_space<vmem>>, vector<8x128xf32>
    %c3_129 = arith.constant 3 : index
    %c0_130 = arith.constant 0 : index
    %c0_131 = arith.constant 0 : index
    %225 = vector.load %arg7[%c3_129, %c0_130, %c0_131] : memref<4x128x128xbf16, #tpu.memory_space<vmem>>, vector<1x128x128xbf16>
    %226 = vector.shape_cast %225 : vector<1x128x128xbf16> to vector<128x128xbf16>
    %cst_132 = arith.constant dense<0.000000e+00> : vector<8x128xf32>
    %227 = tpu.matmul %194, %226, %cst_132 {dimension_numbers = #tpu.dot_dimension_numbers<[1], [0], [0], [1], [0, 0, 1, 1], [], []>} : vector<8x128xbf16>, vector<128x128xbf16>, vector<8x128xf32> -> vector<8x128xf32>
    %228 = arith.addf %224, %227 : vector<8x128xf32>
    %229 = arith.negf %228 : vector<8x128xf32>
    %230 = math.exp %229 : vector<8x128xf32>
    %cst_133 = arith.constant 1.000000e+00 : f32
    %231 = vector.broadcast %cst_133 : f32 to vector<8x128xf32>
    %232 = arith.addf %231, %230 : vector<8x128xf32>
    %233 = arith.divf %231, %232 : vector<8x128xf32>
    %234 = math.tanh %223 : vector<8x128xf32>
    %235 = arith.mulf %233, %234 : vector<8x128xf32>
    %236 = arith.truncf %235 : vector<8x128xf32> to vector<8x128xbf16>
    %c0_134 = arith.constant 0 : index
    %c2560 = arith.constant 2560 : index
    %237 = vector.load %arg10[%c0_134, %c2560] : memref<8x4096xf32, #tpu.memory_space<vmem>>, vector<8x128xf32>
    %c0_135 = arith.constant 0 : index
    %c0_136 = arith.constant 0 : index
    %c0_137 = arith.constant 0 : index
    %238 = vector.load %arg7[%c0_135, %c0_136, %c0_137] : memref<4x128x128xbf16, #tpu.memory_space<vmem>>, vector<1x128x128xbf16>
    %239 = vector.shape_cast %238 : vector<1x128x128xbf16> to vector<128x128xbf16>
    %cst_138 = arith.constant dense<0.000000e+00> : vector<8x128xf32>
    %240 = tpu.matmul %236, %239, %cst_138 {dimension_numbers = #tpu.dot_dimension_numbers<[1], [0], [0], [1], [0, 0, 1, 1], [], []>} : vector<8x128xbf16>, vector<128x128xbf16>, vector<8x128xf32> -> vector<8x128xf32>
    %241 = arith.addf %237, %240 : vector<8x128xf32>
    %242 = arith.negf %241 : vector<8x128xf32>
    %243 = math.exp %242 : vector<8x128xf32>
    %cst_139 = arith.constant 1.000000e+00 : f32
    %244 = vector.broadcast %cst_139 : f32 to vector<8x128xf32>
    %245 = arith.addf %244, %243 : vector<8x128xf32>
    %246 = arith.divf %244, %245 : vector<8x128xf32>
    %c0_140 = arith.constant 0 : index
    %c2816 = arith.constant 2816 : index
    %247 = vector.load %arg10[%c0_140, %c2816] : memref<8x4096xf32, #tpu.memory_space<vmem>>, vector<8x128xf32>
    %c2_141 = arith.constant 2 : index
    %c0_142 = arith.constant 0 : index
    %c0_143 = arith.constant 0 : index
    %248 = vector.load %arg7[%c2_141, %c0_142, %c0_143] : memref<4x128x128xbf16, #tpu.memory_space<vmem>>, vector<1x128x128xbf16>
    %249 = vector.shape_cast %248 : vector<1x128x128xbf16> to vector<128x128xbf16>
    %cst_144 = arith.constant dense<0.000000e+00> : vector<8x128xf32>
    %250 = tpu.matmul %236, %249, %cst_144 {dimension_numbers = #tpu.dot_dimension_numbers<[1], [0], [0], [1], [0, 0, 1, 1], [], []>} : vector<8x128xbf16>, vector<128x128xbf16>, vector<8x128xf32> -> vector<8x128xf32>
    %251 = arith.addf %247, %250 : vector<8x128xf32>
    %252 = math.tanh %251 : vector<8x128xf32>
    %253 = arith.mulf %246, %252 : vector<8x128xf32>
    %c0_145 = arith.constant 0 : index
    %c2688 = arith.constant 2688 : index
    %254 = vector.load %arg10[%c0_145, %c2688] : memref<8x4096xf32, #tpu.memory_space<vmem>>, vector<8x128xf32>
    %c1_146 = arith.constant 1 : index
    %c0_147 = arith.constant 0 : index
    %c0_148 = arith.constant 0 : index
    %255 = vector.load %arg7[%c1_146, %c0_147, %c0_148] : memref<4x128x128xbf16, #tpu.memory_space<vmem>>, vector<1x128x128xbf16>
    %256 = vector.shape_cast %255 : vector<1x128x128xbf16> to vector<128x128xbf16>
    %cst_149 = arith.constant dense<0.000000e+00> : vector<8x128xf32>
    %257 = tpu.matmul %236, %256, %cst_149 {dimension_numbers = #tpu.dot_dimension_numbers<[1], [0], [0], [1], [0, 0, 1, 1], [], []>} : vector<8x128xbf16>, vector<128x128xbf16>, vector<8x128xf32> -> vector<8x128xf32>
    %258 = arith.addf %254, %257 : vector<8x128xf32>
    %259 = arith.negf %258 : vector<8x128xf32>
    %260 = math.exp %259 : vector<8x128xf32>
    %cst_150 = arith.constant 1.000000e+00 : f32
    %261 = vector.broadcast %cst_150 : f32 to vector<8x128xf32>
    %262 = arith.addf %261, %260 : vector<8x128xf32>
    %263 = arith.divf %261, %262 : vector<8x128xf32>
    %264 = arith.mulf %263, %223 : vector<8x128xf32>
    %265 = arith.addf %264, %253 : vector<8x128xf32>
    %c0_151 = arith.constant 0 : index
    %c2944 = arith.constant 2944 : index
    %266 = vector.load %arg10[%c0_151, %c2944] : memref<8x4096xf32, #tpu.memory_space<vmem>>, vector<8x128xf32>
    %c3_152 = arith.constant 3 : index
    %c0_153 = arith.constant 0 : index
    %c0_154 = arith.constant 0 : index
    %267 = vector.load %arg7[%c3_152, %c0_153, %c0_154] : memref<4x128x128xbf16, #tpu.memory_space<vmem>>, vector<1x128x128xbf16>
    %268 = vector.shape_cast %267 : vector<1x128x128xbf16> to vector<128x128xbf16>
    %cst_155 = arith.constant dense<0.000000e+00> : vector<8x128xf32>
    %269 = tpu.matmul %236, %268, %cst_155 {dimension_numbers = #tpu.dot_dimension_numbers<[1], [0], [0], [1], [0, 0, 1, 1], [], []>} : vector<8x128xbf16>, vector<128x128xbf16>, vector<8x128xf32> -> vector<8x128xf32>
    %270 = arith.addf %266, %269 : vector<8x128xf32>
    %271 = arith.negf %270 : vector<8x128xf32>
    %272 = math.exp %271 : vector<8x128xf32>
    %cst_156 = arith.constant 1.000000e+00 : f32
    %273 = vector.broadcast %cst_156 : f32 to vector<8x128xf32>
    %274 = arith.addf %273, %272 : vector<8x128xf32>
    %275 = arith.divf %273, %274 : vector<8x128xf32>
    %276 = math.tanh %265 : vector<8x128xf32>
    %277 = arith.mulf %275, %276 : vector<8x128xf32>
    %278 = arith.truncf %277 : vector<8x128xf32> to vector<8x128xbf16>
    %c0_157 = arith.constant 0 : index
    %c3072 = arith.constant 3072 : index
    %279 = vector.load %arg10[%c0_157, %c3072] : memref<8x4096xf32, #tpu.memory_space<vmem>>, vector<8x128xf32>
    %c0_158 = arith.constant 0 : index
    %c0_159 = arith.constant 0 : index
    %c0_160 = arith.constant 0 : index
    %280 = vector.load %arg7[%c0_158, %c0_159, %c0_160] : memref<4x128x128xbf16, #tpu.memory_space<vmem>>, vector<1x128x128xbf16>
    %281 = vector.shape_cast %280 : vector<1x128x128xbf16> to vector<128x128xbf16>
    %cst_161 = arith.constant dense<0.000000e+00> : vector<8x128xf32>
    %282 = tpu.matmul %278, %281, %cst_161 {dimension_numbers = #tpu.dot_dimension_numbers<[1], [0], [0], [1], [0, 0, 1, 1], [], []>} : vector<8x128xbf16>, vector<128x128xbf16>, vector<8x128xf32> -> vector<8x128xf32>
    %283 = arith.addf %279, %282 : vector<8x128xf32>
    %284 = arith.negf %283 : vector<8x128xf32>
    %285 = math.exp %284 : vector<8x128xf32>
    %cst_162 = arith.constant 1.000000e+00 : f32
    %286 = vector.broadcast %cst_162 : f32 to vector<8x128xf32>
    %287 = arith.addf %286, %285 : vector<8x128xf32>
    %288 = arith.divf %286, %287 : vector<8x128xf32>
    %c0_163 = arith.constant 0 : index
    %c3328 = arith.constant 3328 : index
    %289 = vector.load %arg10[%c0_163, %c3328] : memref<8x4096xf32, #tpu.memory_space<vmem>>, vector<8x128xf32>
    %c2_164 = arith.constant 2 : index
    %c0_165 = arith.constant 0 : index
    %c0_166 = arith.constant 0 : index
    %290 = vector.load %arg7[%c2_164, %c0_165, %c0_166] : memref<4x128x128xbf16, #tpu.memory_space<vmem>>, vector<1x128x128xbf16>
    %291 = vector.shape_cast %290 : vector<1x128x128xbf16> to vector<128x128xbf16>
    %cst_167 = arith.constant dense<0.000000e+00> : vector<8x128xf32>
    %292 = tpu.matmul %278, %291, %cst_167 {dimension_numbers = #tpu.dot_dimension_numbers<[1], [0], [0], [1], [0, 0, 1, 1], [], []>} : vector<8x128xbf16>, vector<128x128xbf16>, vector<8x128xf32> -> vector<8x128xf32>
    %293 = arith.addf %289, %292 : vector<8x128xf32>
    %294 = math.tanh %293 : vector<8x128xf32>
    %295 = arith.mulf %288, %294 : vector<8x128xf32>
    %c0_168 = arith.constant 0 : index
    %c3200 = arith.constant 3200 : index
    %296 = vector.load %arg10[%c0_168, %c3200] : memref<8x4096xf32, #tpu.memory_space<vmem>>, vector<8x128xf32>
    %c1_169 = arith.constant 1 : index
    %c0_170 = arith.constant 0 : index
    %c0_171 = arith.constant 0 : index
    %297 = vector.load %arg7[%c1_169, %c0_170, %c0_171] : memref<4x128x128xbf16, #tpu.memory_space<vmem>>, vector<1x128x128xbf16>
    %298 = vector.shape_cast %297 : vector<1x128x128xbf16> to vector<128x128xbf16>
    %cst_172 = arith.constant dense<0.000000e+00> : vector<8x128xf32>
    %299 = tpu.matmul %278, %298, %cst_172 {dimension_numbers = #tpu.dot_dimension_numbers<[1], [0], [0], [1], [0, 0, 1, 1], [], []>} : vector<8x128xbf16>, vector<128x128xbf16>, vector<8x128xf32> -> vector<8x128xf32>
    %300 = arith.addf %296, %299 : vector<8x128xf32>
    %301 = arith.negf %300 : vector<8x128xf32>
    %302 = math.exp %301 : vector<8x128xf32>
    %cst_173 = arith.constant 1.000000e+00 : f32
    %303 = vector.broadcast %cst_173 : f32 to vector<8x128xf32>
    %304 = arith.addf %303, %302 : vector<8x128xf32>
    %305 = arith.divf %303, %304 : vector<8x128xf32>
    %306 = arith.mulf %305, %265 : vector<8x128xf32>
    %307 = arith.addf %306, %295 : vector<8x128xf32>
    %c0_174 = arith.constant 0 : index
    %c3456 = arith.constant 3456 : index
    %308 = vector.load %arg10[%c0_174, %c3456] : memref<8x4096xf32, #tpu.memory_space<vmem>>, vector<8x128xf32>
    %c3_175 = arith.constant 3 : index
    %c0_176 = arith.constant 0 : index
    %c0_177 = arith.constant 0 : index
    %309 = vector.load %arg7[%c3_175, %c0_176, %c0_177] : memref<4x128x128xbf16, #tpu.memory_space<vmem>>, vector<1x128x128xbf16>
    %310 = vector.shape_cast %309 : vector<1x128x128xbf16> to vector<128x128xbf16>
    %cst_178 = arith.constant dense<0.000000e+00> : vector<8x128xf32>
    %311 = tpu.matmul %278, %310, %cst_178 {dimension_numbers = #tpu.dot_dimension_numbers<[1], [0], [0], [1], [0, 0, 1, 1], [], []>} : vector<8x128xbf16>, vector<128x128xbf16>, vector<8x128xf32> -> vector<8x128xf32>
    %312 = arith.addf %308, %311 : vector<8x128xf32>
    %313 = arith.negf %312 : vector<8x128xf32>
    %314 = math.exp %313 : vector<8x128xf32>
    %cst_179 = arith.constant 1.000000e+00 : f32
    %315 = vector.broadcast %cst_179 : f32 to vector<8x128xf32>
    %316 = arith.addf %315, %314 : vector<8x128xf32>
    %317 = arith.divf %315, %316 : vector<8x128xf32>
    %318 = math.tanh %307 : vector<8x128xf32>
    %319 = arith.mulf %317, %318 : vector<8x128xf32>
    %320 = arith.truncf %319 : vector<8x128xf32> to vector<8x128xbf16>
    %c0_180 = arith.constant 0 : index
    %c3584 = arith.constant 3584 : index
    %321 = vector.load %arg10[%c0_180, %c3584] : memref<8x4096xf32, #tpu.memory_space<vmem>>, vector<8x128xf32>
    %c0_181 = arith.constant 0 : index
    %c0_182 = arith.constant 0 : index
    %c0_183 = arith.constant 0 : index
    %322 = vector.load %arg7[%c0_181, %c0_182, %c0_183] : memref<4x128x128xbf16, #tpu.memory_space<vmem>>, vector<1x128x128xbf16>
    %323 = vector.shape_cast %322 : vector<1x128x128xbf16> to vector<128x128xbf16>
    %cst_184 = arith.constant dense<0.000000e+00> : vector<8x128xf32>
    %324 = tpu.matmul %320, %323, %cst_184 {dimension_numbers = #tpu.dot_dimension_numbers<[1], [0], [0], [1], [0, 0, 1, 1], [], []>} : vector<8x128xbf16>, vector<128x128xbf16>, vector<8x128xf32> -> vector<8x128xf32>
    %325 = arith.addf %321, %324 : vector<8x128xf32>
    %326 = arith.negf %325 : vector<8x128xf32>
    %327 = math.exp %326 : vector<8x128xf32>
    %cst_185 = arith.constant 1.000000e+00 : f32
    %328 = vector.broadcast %cst_185 : f32 to vector<8x128xf32>
    %329 = arith.addf %328, %327 : vector<8x128xf32>
    %330 = arith.divf %328, %329 : vector<8x128xf32>
    %c0_186 = arith.constant 0 : index
    %c3840 = arith.constant 3840 : index
    %331 = vector.load %arg10[%c0_186, %c3840] : memref<8x4096xf32, #tpu.memory_space<vmem>>, vector<8x128xf32>
    %c2_187 = arith.constant 2 : index
    %c0_188 = arith.constant 0 : index
    %c0_189 = arith.constant 0 : index
    %332 = vector.load %arg7[%c2_187, %c0_188, %c0_189] : memref<4x128x128xbf16, #tpu.memory_space<vmem>>, vector<1x128x128xbf16>
    %333 = vector.shape_cast %332 : vector<1x128x128xbf16> to vector<128x128xbf16>
    %cst_190 = arith.constant dense<0.000000e+00> : vector<8x128xf32>
    %334 = tpu.matmul %320, %333, %cst_190 {dimension_numbers = #tpu.dot_dimension_numbers<[1], [0], [0], [1], [0, 0, 1, 1], [], []>} : vector<8x128xbf16>, vector<128x128xbf16>, vector<8x128xf32> -> vector<8x128xf32>
    %335 = arith.addf %331, %334 : vector<8x128xf32>
    %336 = math.tanh %335 : vector<8x128xf32>
    %337 = arith.mulf %330, %336 : vector<8x128xf32>
    %c0_191 = arith.constant 0 : index
    %c3712 = arith.constant 3712 : index
    %338 = vector.load %arg10[%c0_191, %c3712] : memref<8x4096xf32, #tpu.memory_space<vmem>>, vector<8x128xf32>
    %c1_192 = arith.constant 1 : index
    %c0_193 = arith.constant 0 : index
    %c0_194 = arith.constant 0 : index
    %339 = vector.load %arg7[%c1_192, %c0_193, %c0_194] : memref<4x128x128xbf16, #tpu.memory_space<vmem>>, vector<1x128x128xbf16>
    %340 = vector.shape_cast %339 : vector<1x128x128xbf16> to vector<128x128xbf16>
    %cst_195 = arith.constant dense<0.000000e+00> : vector<8x128xf32>
    %341 = tpu.matmul %320, %340, %cst_195 {dimension_numbers = #tpu.dot_dimension_numbers<[1], [0], [0], [1], [0, 0, 1, 1], [], []>} : vector<8x128xbf16>, vector<128x128xbf16>, vector<8x128xf32> -> vector<8x128xf32>
    %342 = arith.addf %338, %341 : vector<8x128xf32>
    %343 = arith.negf %342 : vector<8x128xf32>
    %344 = math.exp %343 : vector<8x128xf32>
    %cst_196 = arith.constant 1.000000e+00 : f32
    %345 = vector.broadcast %cst_196 : f32 to vector<8x128xf32>
    %346 = arith.addf %345, %344 : vector<8x128xf32>
    %347 = arith.divf %345, %346 : vector<8x128xf32>
    %348 = arith.mulf %347, %307 : vector<8x128xf32>
    %349 = arith.addf %348, %337 : vector<8x128xf32>
    %c0_197 = arith.constant 0 : index
    %c0_198 = arith.constant 0 : index
    %350 = vector.load %arg9[%c0_197, %c0_198] : memref<8x128xf32, #tpu.memory_space<vmem>>, vector<8x128xf32>
    tpu.vector_store %arg9[%c0_197, %c0_198], %349 {strides = array<i32>} : memref<8x128xf32, #tpu.memory_space<vmem>>, vector<8x128xf32>,
    return
  }
  func.func @transform_0(%arg0: i32) -> (i32, i32) {
    %c0_i32 = arith.constant 0 : i32
    %c0_i32_0 = arith.constant 0 : i32
    return %arg0, %c0_i32 : i32, i32
  }
  func.func @transform_1(%arg0: i32) -> (i32, i32) {
    %c0_i32 = arith.constant 0 : i32
    %c0_i32_0 = arith.constant 0 : i32
    %c0_i32_1 = arith.constant 0 : i32
    return %c0_i32, %c0_i32_0 : i32, i32
  }
  func.func @transform_2(%arg0: i32) -> (i32, i32) {
    %c0_i32 = arith.constant 0 : i32
    %c0_i32_0 = arith.constant 0 : i32
    %c0_i32_1 = arith.constant 0 : i32
    return %c0_i32, %c0_i32_0 : i32, i32
  }
  func.func @transform_3(%arg0: i32) -> (i32, i32) {
    %c0_i32 = arith.constant 0 : i32
    %c0_i32_0 = arith.constant 0 : i32
    %c0_i32_1 = arith.constant 0 : i32
    return %c0_i32, %c0_i32_0 : i32, i32
  }
  func.func @transform_4(%arg0: i32) -> (i32, i32) {
    %c0_i32 = arith.constant 0 : i32
    %c0_i32_0 = arith.constant 0 : i32
    %c0_i32_1 = arith.constant 0 : i32
    return %c0_i32, %c0_i32_0 : i32, i32
  }
  func.func @transform_5(%arg0: i32) -> (i32, i32) {
    %c0_i32 = arith.constant 0 : i32
    %c0_i32_0 = arith.constant 0 : i32
    %c0_i32_1 = arith.constant 0 : i32
    return %c0_i32, %c0_i32_0 : i32, i32
  }
  func.func @transform_6(%arg0: i32) -> (i32, i32, i32) {
    %c0_i32 = arith.constant 0 : i32
    %c0_i32_0 = arith.constant 0 : i32
    %c0_i32_1 = arith.constant 0 : i32
    %c0_i32_2 = arith.constant 0 : i32
    return %c0_i32, %c0_i32_0, %c0_i32_1 : i32, i32, i32
  }
  func.func @transform_7(%arg0: i32) -> (i32, i32) {
    %c0_i32 = arith.constant 0 : i32
    %c0_i32_0 = arith.constant 0 : i32
    %c0_i32_1 = arith.constant 0 : i32
    return %c0_i32, %c0_i32_0 : i32, i32
  }
  func.func @transform_8(%arg0: i32) -> (i32, i32) {
    %c0_i32 = arith.constant 0 : i32
    %c0_i32_0 = arith.constant 0 : i32
    return %arg0, %c0_i32 : i32, i32
  }
}

</mosaic_0001>

<llo_original>
// kernel: tpu_custom_call.1
$region0: #{tpu_custom_call.1}
  #allocation0 [shape = 'u32[]', space=smem, size = 0x4, offset = 0x4, fixed_abs, tag = 'smem constant byte address 0x4 - core index']
  #allocation1 [shape = 'u32[144,128]{1,0:T(1,128)}', space=vmem, size = 0x12000, scoped, tag = 'internal scratch']
  #allocation2 [shape = 'f32[8,4096]{1,0:T(8,128)}', space=vmem, size = 0x20000, scoped, tag = 'scratch operand']
  %s0 = inlined_call_operand.hbm [shape: f32[8,24], index: 0, kind: input, shape index: {}]
  %s1 = inlined_call_operand.hbm [shape: f32[24,64], index: 1, kind: input, shape index: {}]
  %s2 = inlined_call_operand.vmem [shape: f32[1,64], index: 2, kind: input, shape index: {}]
  %s3 = inlined_call_operand.hbm [shape: f32[64,64], index: 3, kind: input, shape index: {}]
  %s4 = inlined_call_operand.vmem [shape: f32[1,64], index: 4, kind: input, shape index: {}]
  %s5 = inlined_call_operand.hbm [shape: bf16[64,4096], index: 5, kind: input, shape index: {}]
  %s6 = inlined_call_operand.hbm [shape: bf16[4,128,128], index: 6, kind: input, shape index: {}]
  %s7 = inlined_call_operand.hbm [shape: f32[1,4096], index: 7, kind: input, shape index: {}]
  %s8 = inlined_call_operand.hbm [shape: f32[8,128], index: 8, kind: output, shape index: {}]
  %s9 = sld [smem:[#allocation0]]
  $region66: #{tpu_custom_call.1} parent=0
    _
  %s11 = ssub.s32 1, %s9
  %s12 = scalar_select 0, %s11, %s9
  $region1: #{tpu_custom_call.1} parent=0
    #allocation3 [shape = 'u8[4096]{0}', space=vmem, size = 0x1000, scoped, tag = 'input window, operand 0, single buffered']
    #allocation4 [shape = 's32[1]{0}', space=sflag, size = 0x4, scoped, tag = 'scoped memory for tpu_custom_call.1']
    #allocation5 [shape = 's32[1]{0}', space=sflag, size = 0x4, scoped, tag = 'scoped memory for tpu_custom_call.1']
    #allocation6 [shape = 'u8[12288]{0}', space=vmem, size = 0x3000, scoped, tag = 'input window, operand 1, single buffered']
    #allocation7 [shape = 's32[1]{0}', space=sflag, size = 0x4, scoped, tag = 'scoped memory for tpu_custom_call.1']
    #allocation8 [shape = 'u8[32768]{0}', space=vmem, size = 0x8000, scoped, tag = 'input window, operand 3, single buffered']
    #allocation9 [shape = 'u8[524288]{0}', space=vmem, size = 0x80000, scoped, tag = 'input window, operand 5, single buffered']
    #allocation10 [shape = 's32[1]{0}', space=sflag, size = 0x4, scoped, tag = 'scoped memory for tpu_custom_call.1']
    #allocation11 [shape = 'u8[131072]{0}', space=vmem, size = 0x20000, scoped, tag = 'input window, operand 6, single buffered']
    #allocation12 [shape = 'u8[16384]{0}', space=vmem, size = 0x4000, scoped, tag = 'input window, operand 7, single buffered']
    #allocation13 [shape = 's32[1]{0}', space=sflag, size = 0x4, scoped, tag = 'scoped memory for tpu_custom_call.1']
    #allocation14 [shape = 'u8[4096]{0}', space=vmem, size = 0x1000, scoped, tag = 'output window, operand 0, single buffered']
    %13 = vsyncpa [#allocation4], 0
    %14 = vsyncpa [#allocation7], 0
    %15 = vsyncpa [#allocation10], 0
    %16 = vsyncpa [#allocation13], 0
    %17 = vsyncpa [#allocation5], 0
    // Predicated region
    $region2: #{tpu_custom_call.1} parent=1 // pred_check
      _
    $region3: #{tpu_custom_call.1} parent=1 // pred_check_branch
      %19 = sbr.rel (0) target = $region5
    $region4: #{tpu_custom_call.1} parent=1 // pred_region
      %s21 = ssub.s32 128, 128
      %22 = vsyncadd [#allocation4], %s21
      %s24 = sshll.u32 [#allocation3], 4
      %s25 = int_to_ptr.vmem [resolvable:$true] %s24
      %27 = dma.hbm_to_vmem [thread:$0]  %s0, 128, %s25, [#allocation4]
    $region5: #{tpu_custom_call.1} parent=1 // pred_fallthru
      _
    // Predicated region
    $region6: #{tpu_custom_call.1} parent=1 // pred_check
      _
    $region7: #{tpu_custom_call.1} parent=1 // pred_check_branch
      %29 = sbr.rel (0) target = $region9
    $region8: #{tpu_custom_call.1} parent=1 // pred_region
      %s31 = ssub.s32 384, 384
      %32 = vsyncadd [#allocation7], %s31
      %s33 = sshll.u32 [#allocation6], 4
      %s34 = int_to_ptr.vmem [resolvable:$true] %s33
      %39 = dma.hbm_to_vmem [thread:$0]  %s1, 384, %s34, [#allocation7], 128, 128, 8
    $region9: #{tpu_custom_call.1} parent=1 // pred_fallthru
      _
    // Predicated region
    $region10: #{tpu_custom_call.1} parent=1 // pred_check
      _
    $region11: #{tpu_custom_call.1} parent=1 // pred_check_branch
      %41 = sbr.rel (0) target = $region13
    $region12: #{tpu_custom_call.1} parent=1 // pred_region
      _
    $region13: #{tpu_custom_call.1} parent=1 // pred_fallthru
      _
    // Predicated region
    $region14: #{tpu_custom_call.1} parent=1 // pred_check
      _
    $region15: #{tpu_custom_call.1} parent=1 // pred_check_branch
      %43 = sbr.rel (0) target = $region17
    $region16: #{tpu_custom_call.1} parent=1 // pred_region
      %s45 = ssub.s32 1024, 1024
      %46 = vsyncadd [#allocation7], %s45
      %s47 = sshll.u32 [#allocation8], 4
      %s48 = int_to_ptr.vmem [resolvable:$true] %s47
      %53 = dma.hbm_to_vmem [thread:$0]  %s3, 1024, %s48, [#allocation7], 128, 128, 8
    $region17: #{tpu_custom_call.1} parent=1 // pred_fallthru
      _
    // Predicated region
    $region18: #{tpu_custom_call.1} parent=1 // pred_check
      _
    $region19: #{tpu_custom_call.1} parent=1 // pred_check_branch
      %55 = sbr.rel (0) target = $region21
    $region20: #{tpu_custom_call.1} parent=1 // pred_region
      _
    $region21: #{tpu_custom_call.1} parent=1 // pred_fallthru
      _
    // Predicated region
    $region22: #{tpu_custom_call.1} parent=1 // pred_check
      _
    $region23: #{tpu_custom_call.1} parent=1 // pred_check_branch
      %57 = sbr.rel (0) target = $region25
    $region24: #{tpu_custom_call.1} parent=1 // pred_region
      %s59 = ssub.s32 16384, 16384
      %60 = vsyncadd [#allocation10], %s59
      %s61 = sshll.u32 [#allocation9], 4
      %s62 = int_to_ptr.vmem [resolvable:$true] %s61
      %67 = dma.hbm_to_vmem [thread:$0]  %s5, 16384, %s62, [#allocation10], 2048, 2048, 128
    $region25: #{tpu_custom_call.1} parent=1 // pred_fallthru
      _
    // Predicated region
    $region26: #{tpu_custom_call.1} parent=1 // pred_check
      _
    $region27: #{tpu_custom_call.1} parent=1 // pred_check_branch
      %69 = sbr.rel (0) target = $region29
    $region28: #{tpu_custom_call.1} parent=1 // pred_region
      %s71 = ssub.s32 4096, 4096
      %72 = vsyncadd [#allocation10], %s71
      %s73 = sshll.u32 [#allocation11], 4
      %s74 = int_to_ptr.vmem [resolvable:$true] %s73
      %79 = dma.hbm_to_vmem [thread:$0]  %s6, 4096, %s74, [#allocation10], 64, 64, 4
    $region29: #{tpu_custom_call.1} parent=1 // pred_fallthru
      _
    // Predicated region
    $region30: #{tpu_custom_call.1} parent=1 // pred_check
      _
    $region31: #{tpu_custom_call.1} parent=1 // pred_check_branch
      %81 = sbr.rel (0) target = $region33
    $region32: #{tpu_custom_call.1} parent=1 // pred_region
      %s83 = ssub.s32 512, 512
      %84 = vsyncadd [#allocation13], %s83
      %s86 = sshll.u32 [#allocation12], 4
      %s87 = int_to_ptr.vmem [resolvable:$true] %s86
      %89 = dma.hbm_to_vmem [thread:$0]  %s7, 512, %s87, [#allocation13]
    $region33: #{tpu_custom_call.1} parent=1 // pred_fallthru
      _
    // Predicated region
    $region34: #{tpu_custom_call.1} parent=1 // pred_check
      _
    $region35: #{tpu_custom_call.1} parent=1 // pred_check_branch
      %91 = sbr.rel (0) target = $region37
    $region36: #{tpu_custom_call.1} parent=1 // pred_region
      %92 = dma.done [#allocation4], 128
    $region37: #{tpu_custom_call.1} parent=1 // pred_fallthru
      _
    // Predicated region
    $region38: #{tpu_custom_call.1} parent=1 // pred_check
      _
    $region39: #{tpu_custom_call.1} parent=1 // pred_check_branch
      %94 = sbr.rel (0) target = $region41
    $region40: #{tpu_custom_call.1} parent=1 // pred_region
      %95 = dma.done [#allocation7], 384
    $region41: #{tpu_custom_call.1} parent=1 // pred_fallthru
      _
    // Predicated region
    $region42: #{tpu_custom_call.1} parent=1 // pred_check
      _
    $region43: #{tpu_custom_call.1} parent=1 // pred_check_branch
      %97 = sbr.rel (0) target = $region45
    $region44: #{tpu_custom_call.1} parent=1 // pred_region
      %98 = dma.done [#allocation7], 1024
    $region45: #{tpu_custom_call.1} parent=1 // pred_fallthru
      _
    // Predicated region
    $region46: #{tpu_custom_call.1} parent=1 // pred_check
      _
    $region47: #{tpu_custom_call.1} parent=1 // pred_check_branch
      %100 = sbr.rel (0) target = $region49
    $region48: #{tpu_custom_call.1} parent=1 // pred_region
      %101 = dma.done [#allocation10], 16384
    $region49: #{tpu_custom_call.1} parent=1 // pred_fallthru
      _
    // Predicated region
    $region50: #{tpu_custom_call.1} parent=1 // pred_check
      _
    $region51: #{tpu_custom_call.1} parent=1 // pred_check_branch
      %103 = sbr.rel (0) target = $region53
    $region52: #{tpu_custom_call.1} parent=1 // pred_region
      %104 = dma.done [#allocation10], 4096
    $region53: #{tpu_custom_call.1} parent=1 // pred_fallthru
      _
    // Predicated region
    $region54: #{tpu_custom_call.1} parent=1 // pred_check
      _
    $region55: #{tpu_custom_call.1} parent=1 // pred_check_branch
      %106 = sbr.rel (0) target = $region57
    $region56: #{tpu_custom_call.1} parent=1 // pred_region
      %107 = dma.done [#allocation13], 512
    $region57: #{tpu_custom_call.1} parent=1 // pred_fallthru
      _
    %v109 = vld [vmem:[#allocation3] sm:$0xff]
    %v110 = vld [vmem:[#allocation6] sm:$0xff]
    %v111 = vld [vmem:[#allocation6 + $0x8] sm:$0xff]
    %v112 = vld [vmem:[#allocation6 + $0x10] sm:$0xff]
    %v113 = vld [vmem:[%s2] sm:$0x1]
    %v115 = vlaneseq
    %v116 = vshrl.u32 %v115, 7
    %v117 = vsub.s32 0, %v116
    %v118 = vrot.slane %v113, %v117
    %vm120 = vcmask 195584
    %v122 = vsel %vm120, %v109, 0
    %124 = vmatprep.subr.mxu0 0.0
    %125 = vmatpush1.msra.mxu0 %v110
    %126 = vmatprep.subr.mxu0 0.0
    %127 = vmatpush1.msra.mxu0 %v111
    %128 = vmatprep.subr.mxu0 0.0
    %129 = vmatpush1.msra.mxu0 %v112
    %130 = vmatprep.subr.mxu0 0.0
    %131 = vmatpush1.msra.mxu0 0.0
    %132 = vmatprep.subr.mxu0 0.0
    %133 = vmatpush1.msra.mxu0 0.0
    %134 = vmatprep.subr.mxu0 0.0
    %135 = vmatpush1.msra.mxu0 0.0
    %136 = vmatprep.subr.mxu0 0.0
    %137 = vmatpush1.msra.mxu0 0.0
    %138 = vmatprep.subr.mxu0 0.0
    %139 = vmatpush1.msra.mxu0 0.0
    %140 = vmatprep.subr.mxu0 0.0
    %141 = vmatpush1.msra.mxu0 0.0
    %142 = vmatprep.subr.mxu0 0.0
    %143 = vmatpush1.msra.mxu0 0.0
    %144 = vmatprep.subr.mxu0 0.0
    %145 = vmatpush1.msra.mxu0 0.0
    %146 = vmatprep.subr.mxu0 0.0
    %147 = vmatpush1.msra.mxu0 0.0
    %148 = vmatprep.subr.mxu0 0.0
    %149 = vmatpush1.msra.mxu0 0.0
    %150 = vmatprep.subr.mxu0 0.0
    %151 = vmatpush1.msra.mxu0 0.0
    %152 = vmatprep.subr.mxu0 0.0
    %153 = vmatpush1.msra.mxu0 0.0
    %154 = vmatprep.subr.mxu0 0.0
    %155 = vmatpush1.msra.mxu0 0.0
    %156 = vmatprep.subr.mxu0 0.0
    %157 = vmatpush1.msra.mxu0 0.0
    %158 = vmatprep.subr.mxu0 0.0
    %159 = vmatpush1.msra.mxu0 0.0
    %160 = vmatprep.subr.mxu0 0.0
    %161 = vmatpush1.msra.mxu0 0.0
    %162 = vmatprep.subr.mxu0 0.0
    %163 = vmatpush1.msra.mxu0 0.0
    %164 = vmatprep.subr.mxu0 0.0
    %165 = vmatpush1.msra.mxu0 0.0
    %166 = vmatprep.subr.mxu0 0.0
    %167 = vmatpush1.msra.mxu0 0.0
    %168 = vmatprep.subr.mxu0 0.0
    %169 = vmatpush1.msra.mxu0 0.0
    %170 = vmatprep.subr.mxu0 0.0
    %171 = vmatpush1.msra.mxu0 0.0
    %172 = vmatprep.subr.mxu0 0.0
    %173 = vmatpush1.msra.mxu0 0.0
    %174 = vmatprep.subr.mxu0 0.0
    %175 = vmatpush1.msra.mxu0 0.0
    %176 = vmatprep.subr.mxu0 0.0
    %177 = vmatpush1.msra.mxu0 0.0
    %178 = vmatprep.subr.mxu0 0.0
    %179 = vmatpush1.msra.mxu0 0.0
    %180 = vmatprep.subr.mxu0 0.0
    %181 = vmatpush1.msra.mxu0 0.0
    %182 = vmatprep.subr.mxu0 0.0
    %183 = vmatpush1.msra.mxu0 0.0
    %184 = vmatprep.subr.mxu0 0.0
    %185 = vmatpush1.msra.mxu0 0.0
    %186 = vmatprep.subr.mxu0 0.0
    %187 = vmatpush1.msra.mxu0 0.0
    %188 = vmatprep.mubr.f32.mxu0 0.0
    %189 = vmatmul.mubr.f32.gmra.mrb[0].mxu0 %v122
    %v190 = vpop.f32.mrb[0].mxu0
    %v191 = vadd.f32 %v118, %v190
    %v192 = vpop.f32.mrb[0].mxu0
    %193 = vdwg.mxu0
    %v194 = vtanh.pop %v191
    %v195 = vld [vmem:[#allocation8] sm:$0xff]
    %v196 = vld [vmem:[#allocation8 + $0x8] sm:$0xff]
    %v197 = vld [vmem:[#allocation8 + $0x10] sm:$0xff]
    %v198 = vld [vmem:[#allocation8 + $0x18] sm:$0xff]
    %v199 = vld [vmem:[#allocation8 + $0x20] sm:$0xff]
    %v200 = vld [vmem:[#allocation8 + $0x28] sm:$0xff]
    %v201 = vld [vmem:[#allocation8 + $0x30] sm:$0xff]
    %v202 = vld [vmem:[#allocation8 + $0x38] sm:$0xff]
    %v203 = vld [vmem:[%s4] sm:$0x1]
    %v205 = vlaneseq
    %v206 = vshrl.u32 %v205, 7
    %v207 = vsub.s32 0, %v206
    %v208 = vrot.slane %v203, %v207
    %vm210 = vcmask 523264
    %v212 = vsel %vm210, %v194, 0
    %214 = vmatprep.subr.mxu0 0.0
    %215 = vmatpush1.msra.mxu0 %v195
    %216 = vmatprep.subr.mxu0 0.0
    %217 = vmatpush1.msra.mxu0 %v196
    %218 = vmatprep.subr.mxu0 0.0
    %219 = vmatpush1.msra.mxu0 %v197
    %220 = vmatprep.subr.mxu0 0.0
    %221 = vmatpush1.msra.mxu0 %v198
    %222 = vmatprep.subr.mxu0 0.0
    %223 = vmatpush1.msra.mxu0 %v199
    %224 = vmatprep.subr.mxu0 0.0
    %225 = vmatpush1.msra.mxu0 %v200
    %226 = vmatprep.subr.mxu0 0.0
    %227 = vmatpush1.msra.mxu0 %v201
    %228 = vmatprep.subr.mxu0 0.0
    %229 = vmatpush1.msra.mxu0 %v202
    %230 = vmatprep.subr.mxu0 0.0
    %231 = vmatpush1.msra.mxu0 0.0
    %232 = vmatprep.subr.mxu0 0.0
    %233 = vmatpush1.msra.mxu0 0.0
    %234 = vmatprep.subr.mxu0 0.0
    %235 = vmatpush1.msra.mxu0 0.0
    %236 = vmatprep.subr.mxu0 0.0
    %237 = vmatpush1.msra.mxu0 0.0
    %238 = vmatprep.subr.mxu0 0.0
    %239 = vmatpush1.msra.mxu0 0.0
    %240 = vmatprep.subr.mxu0 0.0
    %241 = vmatpush1.msra.mxu0 0.0
    %242 = vmatprep.subr.mxu0 0.0
    %243 = vmatpush1.msra.mxu0 0.0
    %244 = vmatprep.subr.mxu0 0.0
    %245 = vmatpush1.msra.mxu0 0.0
    %246 = vmatprep.subr.mxu0 0.0
    %247 = vmatpush1.msra.mxu0 0.0
    %248 = vmatprep.subr.mxu0 0.0
    %249 = vmatpush1.msra.mxu0 0.0
    %250 = vmatprep.subr.mxu0 0.0
    %251 = vmatpush1.msra.mxu0 0.0
    %252 = vmatprep.subr.mxu0 0.0
    %253 = vmatpush1.msra.mxu0 0.0
    %254 = vmatprep.subr.mxu0 0.0
    %255 = vmatpush1.msra.mxu0 0.0
    %256 = vmatprep.subr.mxu0 0.0
    %257 = vmatpush1.msra.mxu0 0.0
    %258 = vmatprep.subr.mxu0 0.0
    %259 = vmatpush1.msra.mxu0 0.0
    %260 = vmatprep.subr.mxu0 0.0
    %261 = vmatpush1.msra.mxu0 0.0
    %262 = vmatprep.subr.mxu0 0.0
    %263 = vmatpush1.msra.mxu0 0.0
    %264 = vmatprep.subr.mxu0 0.0
    %265 = vmatpush1.msra.mxu0 0.0
    %266 = vmatprep.subr.mxu0 0.0
    %267 = vmatpush1.msra.mxu0 0.0
    %268 = vmatprep.subr.mxu0 0.0
    %269 = vmatpush1.msra.mxu0 0.0
    %270 = vmatprep.subr.mxu0 0.0
    %271 = vmatpush1.msra.mxu0 0.0
    %272 = vmatprep.subr.mxu0 0.0
    %273 = vmatpush1.msra.mxu0 0.0
    %274 = vmatprep.subr.mxu0 0.0
    %275 = vmatpush1.msra.mxu0 0.0
    %276 = vmatprep.subr.mxu0 0.0
    %277 = vmatpush1.msra.mxu0 0.0
    %278 = vmatprep.mubr.f32.mxu0 0.0
    %279 = vmatmul.mubr.f32.gmra.mrb[0].mxu0 %v212
    %v280 = vpop.f32.mrb[0].mxu0
    %v281 = vadd.f32 %v208, %v280
    %v282 = vpop.f32.mrb[0].mxu0
    %283 = vdwg.mxu0
    %vm284 = vcmp.gt.f32.partialorder %v281, 0.0
    %v285 = vmul.f32 %v281, 0.01
    %v286 = vsel %vm284, %v281, %v285
    %v287 = vpack.c.bf16 %v286, %v286
    %v288 = vld [vmem:[#allocation9] sm:$0xff]
    %v289 = vld [vmem:[#allocation9 + $0x8] sm:$0xff]
    %v290 = vld [vmem:[#allocation9 + $0x10] sm:$0xff]
    %v291 = vld [vmem:[#allocation9 + $0x18] sm:$0xff]
    %v292 = vld [vmem:[#allocation9 + $0x20] sm:$0xff]
    %v293 = vld [vmem:[#allocation9 + $0x28] sm:$0xff]
    %v294 = vld [vmem:[#allocation9 + $0x30] sm:$0xff]
    %v295 = vld [vmem:[#allocation9 + $0x38] sm:$0xff]
    %v296 = vld [vmem:[#allocation9 + $0x40] sm:$0xff]
    %v297 = vld [vmem:[#allocation9 + $0x48] sm:$0xff]
    %v298 = vld [vmem:[#allocation9 + $0x50] sm:$0xff]
    %v299 = vld [vmem:[#allocation9 + $0x58] sm:$0xff]
    %v300 = vld [vmem:[#allocation9 + $0x60] sm:$0xff]
    %v301 = vld [vmem:[#allocation9 + $0x68] sm:$0xff]
    %v302 = vld [vmem:[#allocation9 + $0x70] sm:$0xff]
    %v303 = vld [vmem:[#allocation9 + $0x78] sm:$0xff]
    %v304 = vld [vmem:[#allocation9 + $0x80] sm:$0xff]
    %v305 = vld [vmem:[#allocation9 + $0x88] sm:$0xff]
    %v306 = vld [vmem:[#allocation9 + $0x90] sm:$0xff]
    %v307 = vld [vmem:[#allocation9 + $0x98] sm:$0xff]
    %v308 = vld [vmem:[#allocation9 + $0xa0] sm:$0xff]
    %v309 = vld [vmem:[#allocation9 + $0xa8] sm:$0xff]
    %v310 = vld [vmem:[#allocation9 + $0xb0] sm:$0xff]
    %v311 = vld [vmem:[#allocation9 + $0xb8] sm:$0xff]
    %v312 = vld [vmem:[#allocation9 + $0xc0] sm:$0xff]
    %v313 = vld [vmem:[#allocation9 + $0xc8] sm:$0xff]
    %v314 = vld [vmem:[#allocation9 + $0xd0] sm:$0xff]
    %v315 = vld [vmem:[#allocation9 + $0xd8] sm:$0xff]
    %v316 = vld [vmem:[#allocation9 + $0xe0] sm:$0xff]
    %v317 = vld [vmem:[#allocation9 + $0xe8] sm:$0xff]
    %v318 = vld [vmem:[#allocation9 + $0xf0] sm:$0xff]
    %v319 = vld [vmem:[#allocation9 + $0xf8] sm:$0xff]
    %v320 = vld [vmem:[#allocation9 + $0x100] sm:$0xff]
    %v321 = vld [vmem:[#allocation9 + $0x108] sm:$0xff]
    %v322 = vld [vmem:[#allocation9 + $0x110] sm:$0xff]
    %v323 = vld [vmem:[#allocation9 + $0x118] sm:$0xff]
    %v324 = vld [vmem:[#allocation9 + $0x120] sm:$0xff]
    %v325 = vld [vmem:[#allocation9 + $0x128] sm:$0xff]
    %v326 = vld [vmem:[#allocation9 + $0x130] sm:$0xff]
    %v327 = vld [vmem:[#allocation9 + $0x138] sm:$0xff]
    %v328 = vld [vmem:[#allocation9 + $0x140] sm:$0xff]
    %v329 = vld [vmem:[#allocation9 + $0x148] sm:$0xff]
    %v330 = vld [vmem:[#allocation9 + $0x150] sm:$0xff]
    %v331 = vld [vmem:[#allocation9 + $0x158] sm:$0xff]
    %v332 = vld [vmem:[#allocation9 + $0x160] sm:$0xff]
    %v333 = vld [vmem:[#allocation9 + $0x168] sm:$0xff]
    %v334 = vld [vmem:[#allocation9 + $0x170] sm:$0xff]
    %v335 = vld [vmem:[#allocation9 + $0x178] sm:$0xff]
    %v336 = vld [vmem:[#allocation9 + $0x180] sm:$0xff]
    %v337 = vld [vmem:[#allocation9 + $0x188] sm:$0xff]
    %v338 = vld [vmem:[#allocation9 + $0x190] sm:$0xff]
    %v339 = vld [vmem:[#allocation9 + $0x198] sm:$0xff]
    %v340 = vld [vmem:[#allocation9 + $0x1a0] sm:$0xff]
    %v341 = vld [vmem:[#allocation9 + $0x1a8] sm:$0xff]
    %v342 = vld [vmem:[#allocation9 + $0x1b0] sm:$0xff]
    %v343 = vld [vmem:[#allocation9 + $0x1b8] sm:$0xff]
    %v344 = vld [vmem:[#allocation9 + $0x1c0] sm:$0xff]
    %v345 = vld [vmem:[#allocation9 + $0x1c8] sm:$0xff]
    %v346 = vld [vmem:[#allocation9 + $0x1d0] sm:$0xff]
    %v347 = vld [vmem:[#allocation9 + $0x1d8] sm:$0xff]
    %v348 = vld [vmem:[#allocation9 + $0x1e0] sm:$0xff]
    %v349 = vld [vmem:[#allocation9 + $0x1e8] sm:$0xff]
    %v350 = vld [vmem:[#allocation9 + $0x1f0] sm:$0xff]
    %v351 = vld [vmem:[#allocation9 + $0x1f8] sm:$0xff]
    %v352 = vld [vmem:[#allocation9 + $0x200] sm:$0xff]
    %v353 = vld [vmem:[#allocation9 + $0x208] sm:$0xff]
    %v354 = vld [vmem:[#allocation9 + $0x210] sm:$0xff]
    %v355 = vld [vmem:[#allocation9 + $0x218] sm:$0xff]
    %v356 = vld [vmem:[#allocation9 + $0x220] sm:$0xff]
    %v357 = vld [vmem:[#allocation9 + $0x228] sm:$0xff]
    %v358 = vld [vmem:[#allocation9 + $0x230] sm:$0xff]
    %v359 = vld [vmem:[#allocation9 + $0x238] sm:$0xff]
    %v360 = vld [vmem:[#allocation9 + $0x240] sm:$0xff]
    %v361 = vld [vmem:[#allocation9 + $0x248] sm:$0xff]
    %v362 = vld [vmem:[#allocation9 + $0x250] sm:$0xff]
    %v363 = vld [vmem:[#allocation9 + $0x258] sm:$0xff]
    %v364 = vld [vmem:[#allocation9 + $0x260] sm:$0xff]
    %v365 = vld [vmem:[#allocation9 + $0x268] sm:$0xff]
    %v366 = vld [vmem:[#allocation9 + $0x270] sm:$0xff]
    %v367 = vld [vmem:[#allocation9 + $0x278] sm:$0xff]
    %v368 = vld [vmem:[#allocation9 + $0x280] sm:$0xff]
    %v369 = vld [vmem:[#allocation9 + $0x288] sm:$0xff]
    %v370 = vld [vmem:[#allocation9 + $0x290] sm:$0xff]
    %v371 = vld [vmem:[#allocation9 + $0x298] sm:$0xff]
    %v372 = vld [vmem:[#allocation9 + $0x2a0] sm:$0xff]
    %v373 = vld [vmem:[#allocation9 + $0x2a8] sm:$0xff]
    %v374 = vld [vmem:[#allocation9 + $0x2b0] sm:$0xff]
    %v375 = vld [vmem:[#allocation9 + $0x2b8] sm:$0xff]
    %v376 = vld [vmem:[#allocation9 + $0x2c0] sm:$0xff]
    %v377 = vld [vmem:[#allocation9 + $0x2c8] sm:$0xff]
    %v378 = vld [vmem:[#allocation9 + $0x2d0] sm:$0xff]
    %v379 = vld [vmem:[#allocation9 + $0x2d8] sm:$0xff]
    %v380 = vld [vmem:[#allocation9 + $0x2e0] sm:$0xff]
    %v381 = vld [vmem:[#allocation9 + $0x2e8] sm:$0xff]
    %v382 = vld [vmem:[#allocation9 + $0x2f0] sm:$0xff]
    %v383 = vld [vmem:[#allocation9 + $0x2f8] sm:$0xff]
    %v384 = vld [vmem:[#allocation9 + $0x300] sm:$0xff]
    %v385 = vld [vmem:[#allocation9 + $0x308] sm:$0xff]
    %v386 = vld [vmem:[#allocation9 + $0x310] sm:$0xff]
    %v387 = vld [vmem:[#allocation9 + $0x318] sm:$0xff]
    %v388 = vld [vmem:[#allocation9 + $0x320] sm:$0xff]
    %v389 = vld [vmem:[#allocation9 + $0x328] sm:$0xff]
    %v390 = vld [vmem:[#allocation9 + $0x330] sm:$0xff]
    %v391 = vld [vmem:[#allocation9 + $0x338] sm:$0xff]
    %v392 = vld [vmem:[#allocation9 + $0x340] sm:$0xff]
    %v393 = vld [vmem:[#allocation9 + $0x348] sm:$0xff]
    %v394 = vld [vmem:[#allocation9 + $0x350] sm:$0xff]
    %v395 = vld [vmem:[#allocation9 + $0x358] sm:$0xff]
    %v396 = vld [vmem:[#allocation9 + $0x360] sm:$0xff]
    %v397 = vld [vmem:[#allocation9 + $0x368] sm:$0xff]
    %v398 = vld [vmem:[#allocation9 + $0x370] sm:$0xff]
    %v399 = vld [vmem:[#allocation9 + $0x378] sm:$0xff]
    %v400 = vld [vmem:[#allocation9 + $0x380] sm:$0xff]
    %v401 = vld [vmem:[#allocation9 + $0x388] sm:$0xff]
    %v402 = vld [vmem:[#allocation9 + $0x390] sm:$0xff]
    %v403 = vld [vmem:[#allocation9 + $0x398] sm:$0xff]
    %v404 = vld [vmem:[#allocation9 + $0x3a0] sm:$0xff]
    %v405 = vld [vmem:[#allocation9 + $0x3a8] sm:$0xff]
    %v406 = vld [vmem:[#allocation9 + $0x3b0] sm:$0xff]
    %v407 = vld [vmem:[#allocation9 + $0x3b8] sm:$0xff]
    %v408 = vld [vmem:[#allocation9 + $0x3c0] sm:$0xff]
    %v409 = vld [vmem:[#allocation9 + $0x3c8] sm:$0xff]
    %v410 = vld [vmem:[#allocation9 + $0x3d0] sm:$0xff]
    %v411 = vld [vmem:[#allocation9 + $0x3d8] sm:$0xff]
    %v412 = vld [vmem:[#allocation9 + $0x3e0] sm:$0xff]
    %v413 = vld [vmem:[#allocation9 + $0x3e8] sm:$0xff]
    %v414 = vld [vmem:[#allocation9 + $0x3f0] sm:$0xff]
    %v415 = vld [vmem:[#allocation9 + $0x3f8] sm:$0xff]
    %v416 = vld [vmem:[#allocation12] sm:$0xff]
    %v417 = vld [vmem:[#allocation12 + $0x8] sm:$0xff]
    %v418 = vld [vmem:[#allocation12 + $0x10] sm:$0xff]
    %v419 = vld [vmem:[#allocation12 + $0x18] sm:$0xff]
    %v424 = vlaneseq
    %v425 = vshrl.u32 %v424, 7
    %v426 = vsub.s32 0, %v425
    %v427 = vrot.slane %v416, %v426
    %v428 = vlaneseq
    %v429 = vshrl.u32 %v428, 7
    %v430 = vsub.s32 1, %v429
    %v431 = vrot.slane %v416, %v430
    %v432 = vlaneseq
    %v433 = vshrl.u32 %v432, 7
    %v434 = vsub.s32 2, %v433
    %v435 = vrot.slane %v416, %v434
    %v436 = vlaneseq
    %v437 = vshrl.u32 %v436, 7
    %v438 = vsub.s32 3, %v437
    %v439 = vrot.slane %v416, %v438
    %v440 = vlaneseq
    %v441 = vshrl.u32 %v440, 7
    %v442 = vsub.s32 4, %v441
    %v443 = vrot.slane %v416, %v442
    %v444 = vlaneseq
    %v445 = vshrl.u32 %v444, 7
    %v446 = vsub.s32 5, %v445
    %v447 = vrot.slane %v416, %v446
    %v448 = vlaneseq
    %v449 = vshrl.u32 %v448, 7
    %v450 = vsub.s32 6, %v449
    %v451 = vrot.slane %v416, %v450
    %v452 = vlaneseq
    %v453 = vshrl.u32 %v452, 7
    %v454 = vsub.s32 7, %v453
    %v455 = vrot.slane %v416, %v454
    %v456 = vlaneseq
    %v457 = vshrl.u32 %v456, 7
    %v458 = vsub.s32 0, %v457
    %v459 = vrot.slane %v417, %v458
    %v460 = vlaneseq
    %v461 = vshrl.u32 %v460, 7
    %v462 = vsub.s32 1, %v461
    %v463 = vrot.slane %v417, %v462
    %v464 = vlaneseq
    %v465 = vshrl.u32 %v464, 7
    %v466 = vsub.s32 2, %v465
    %v467 = vrot.slane %v417, %v466
    %v468 = vlaneseq
    %v469 = vshrl.u32 %v468, 7
    %v470 = vsub.s32 3, %v469
    %v471 = vrot.slane %v417, %v470
    %v472 = vlaneseq
    %v473 = vshrl.u32 %v472, 7
    %v474 = vsub.s32 4, %v473
    %v475 = vrot.slane %v417, %v474
    %v476 = vlaneseq
    %v477 = vshrl.u32 %v476, 7
    %v478 = vsub.s32 5, %v477
    %v479 = vrot.slane %v417, %v478
    %v480 = vlaneseq
    %v481 = vshrl.u32 %v480, 7
    %v482 = vsub.s32 6, %v481
    %v483 = vrot.slane %v417, %v482
    %v484 = vlaneseq
    %v485 = vshrl.u32 %v484, 7
    %v486 = vsub.s32 7, %v485
    %v487 = vrot.slane %v417, %v486
    %v488 = vlaneseq
    %v489 = vshrl.u32 %v488, 7
    %v490 = vsub.s32 0, %v489
    %v491 = vrot.slane %v418, %v490
    %v492 = vlaneseq
    %v493 = vshrl.u32 %v492, 7
    %v494 = vsub.s32 1, %v493
    %v495 = vrot.slane %v418, %v494
    %v496 = vlaneseq
    %v497 = vshrl.u32 %v496, 7
    %v498 = vsub.s32 2, %v497
    %v499 = vrot.slane %v418, %v498
    %v500 = vlaneseq
    %v501 = vshrl.u32 %v500, 7
    %v502 = vsub.s32 3, %v501
    %v503 = vrot.slane %v418, %v502
    %v504 = vlaneseq
    %v505 = vshrl.u32 %v504, 7
    %v506 = vsub.s32 4, %v505
    %v507 = vrot.slane %v418, %v506
    %v508 = vlaneseq
    %v509 = vshrl.u32 %v508, 7
    %v510 = vsub.s32 5, %v509
    %v511 = vrot.slane %v418, %v510
    %v512 = vlaneseq
    %v513 = vshrl.u32 %v512, 7
    %v514 = vsub.s32 6, %v513
    %v515 = vrot.slane %v418, %v514
    %v516 = vlaneseq
    %v517 = vshrl.u32 %v516, 7
    %v518 = vsub.s32 7, %v517
    %v519 = vrot.slane %v418, %v518
    %v520 = vlaneseq
    %v521 = vshrl.u32 %v520, 7
    %v522 = vsub.s32 0, %v521
    %v523 = vrot.slane %v419, %v522
    %v524 = vlaneseq
    %v525 = vshrl.u32 %v524, 7
    %v526 = vsub.s32 1, %v525
    %v527 = vrot.slane %v419, %v526
    %v528 = vlaneseq
    %v529 = vshrl.u32 %v528, 7
    %v530 = vsub.s32 2, %v529
    %v531 = vrot.slane %v419, %v530
    %v532 = vlaneseq
    %v533 = vshrl.u32 %v532, 7
    %v534 = vsub.s32 3, %v533
    %v535 = vrot.slane %v419, %v534
    %v536 = vlaneseq
    %v537 = vshrl.u32 %v536, 7
    %v538 = vsub.s32 4, %v537
    %v539 = vrot.slane %v419, %v538
    %v540 = vlaneseq
    %v541 = vshrl.u32 %v540, 7
    %v542 = vsub.s32 5, %v541
    %v543 = vrot.slane %v419, %v542
    %v544 = vlaneseq
    %v545 = vshrl.u32 %v544, 7
    %v546 = vsub.s32 6, %v545
    %v547 = vrot.slane %v419, %v546
    %v548 = vlaneseq
    %v549 = vshrl.u32 %v548, 7
    %v550 = vsub.s32 7, %v549
    %v551 = vrot.slane %v419, %v550
    %v712 = vunpack.c.l.b16 %v288
    %v713 = vunpack.c.h.b16 %v288
    %v714 = vunpack.c.l.b16 %v289
    %v715 = vunpack.c.h.b16 %v289
    %v716 = vunpack.c.l.b16 %v290
    %v717 = vunpack.c.h.b16 %v290
    %v718 = vunpack.c.l.b16 %v291
    %v719 = vunpack.c.h.b16 %v291
    %v720 = vunpack.c.l.b16 %v292
    %v721 = vunpack.c.h.b16 %v292
    %v722 = vunpack.c.l.b16 %v293
    %v723 = vunpack.c.h.b16 %v293
    %v724 = vunpack.c.l.b16 %v294
    %v725 = vunpack.c.h.b16 %v294
    %v726 = vunpack.c.l.b16 %v295
    %v727 = vunpack.c.h.b16 %v295
    %v728 = vunpack.c.l.b16 %v296
    %v729 = vunpack.c.h.b16 %v296
    %v730 = vunpack.c.l.b16 %v297
    %v731 = vunpack.c.h.b16 %v297
    %v732 = vunpack.c.l.b16 %v298
    %v733 = vunpack.c.h.b16 %v298
    %v734 = vunpack.c.l.b16 %v299
    %v735 = vunpack.c.h.b16 %v299
    %v736 = vunpack.c.l.b16 %v300
    %v737 = vunpack.c.h.b16 %v300
    %v738 = vunpack.c.l.b16 %v301
    %v739 = vunpack.c.h.b16 %v301
    %v740 = vunpack.c.l.b16 %v302
    %v741 = vunpack.c.h.b16 %v302
    %v742 = vunpack.c.l.b16 %v303
    %v743 = vunpack.c.h.b16 %v303
    %v744 = vunpack.c.l.b16 %v304
    %v745 = vunpack.c.h.b16 %v304
    %v746 = vunpack.c.l.b16 %v305
    %v747 = vunpack.c.h.b16 %v305
    %v748 = vunpack.c.l.b16 %v306
    %v749 = vunpack.c.h.b16 %v306
    %v750 = vunpack.c.l.b16 %v307
    %v751 = vunpack.c.h.b16 %v307
    %v752 = vunpack.c.l.b16 %v308
    %v753 = vunpack.c.h.b16 %v308
    %v754 = vunpack.c.l.b16 %v309
    %v755 = vunpack.c.h.b16 %v309
    %v756 = vunpack.c.l.b16 %v310
    %v757 = vunpack.c.h.b16 %v310
    %v758 = vunpack.c.l.b16 %v311
    %v759 = vunpack.c.h.b16 %v311
    %v760 = vunpack.c.l.b16 %v312
    %v761 = vunpack.c.h.b16 %v312
    %v762 = vunpack.c.l.b16 %v313
    %v763 = vunpack.c.h.b16 %v313
    %v764 = vunpack.c.l.b16 %v314
    %v765 = vunpack.c.h.b16 %v314
    %v766 = vunpack.c.l.b16 %v315
    %v767 = vunpack.c.h.b16 %v315
    %v768 = vunpack.c.l.b16 %v316
    %v769 = vunpack.c.h.b16 %v316
    %v770 = vunpack.c.l.b16 %v317
    %v771 = vunpack.c.h.b16 %v317
    %v772 = vunpack.c.l.b16 %v318
    %v773 = vunpack.c.h.b16 %v318
    %v774 = vunpack.c.l.b16 %v319
    %v775 = vunpack.c.h.b16 %v319
    %v776 = vunpack.c.l.b16 %v320
    %v777 = vunpack.c.h.b16 %v320
    %v778 = vunpack.c.l.b16 %v321
    %v779 = vunpack.c.h.b16 %v321
    %v780 = vunpack.c.l.b16 %v322
    %v781 = vunpack.c.h.b16 %v322
    %v782 = vunpack.c.l.b16 %v323
    %v783 = vunpack.c.h.b16 %v323
    %v784 = vunpack.c.l.b16 %v324
    %v785 = vunpack.c.h.b16 %v324
    %v786 = vunpack.c.l.b16 %v325
    %v787 = vunpack.c.h.b16 %v325
    %v788 = vunpack.c.l.b16 %v326
    %v789 = vunpack.c.h.b16 %v326
    %v790 = vunpack.c.l.b16 %v327
    %v791 = vunpack.c.h.b16 %v327
    %v792 = vunpack.c.l.b16 %v328
    %v793 = vunpack.c.h.b16 %v328
    %v794 = vunpack.c.l.b16 %v329
    %v795 = vunpack.c.h.b16 %v329
    %v796 = vunpack.c.l.b16 %v330
    %v797 = vunpack.c.h.b16 %v330
    %v798 = vunpack.c.l.b16 %v331
    %v799 = vunpack.c.h.b16 %v331
    %v800 = vunpack.c.l.b16 %v332
    %v801 = vunpack.c.h.b16 %v332
    %v802 = vunpack.c.l.b16 %v333
    %v803 = vunpack.c.h.b16 %v333
    %v804 = vunpack.c.l.b16 %v334
    %v805 = vunpack.c.h.b16 %v334
    %v806 = vunpack.c.l.b16 %v335
    %v807 = vunpack.c.h.b16 %v335
    %v808 = vunpack.c.l.b16 %v336
    %v809 = vunpack.c.h.b16 %v336
    %v810 = vunpack.c.l.b16 %v337
    %v811 = vunpack.c.h.b16 %v337
    %v812 = vunpack.c.l.b16 %v338
    %v813 = vunpack.c.h.b16 %v338
    %v814 = vunpack.c.l.b16 %v339
    %v815 = vunpack.c.h.b16 %v339
    %v816 = vunpack.c.l.b16 %v340
    %v817 = vunpack.c.h.b16 %v340
    %v818 = vunpack.c.l.b16 %v341
    %v819 = vunpack.c.h.b16 %v341
    %v820 = vunpack.c.l.b16 %v342
    %v821 = vunpack.c.h.b16 %v342
    %v822 = vunpack.c.l.b16 %v343
    %v823 = vunpack.c.h.b16 %v343
    %v824 = vunpack.c.l.b16 %v344
    %v825 = vunpack.c.h.b16 %v344
    %v826 = vunpack.c.l.b16 %v345
    %v827 = vunpack.c.h.b16 %v345
    %v828 = vunpack.c.l.b16 %v346
    %v829 = vunpack.c.h.b16 %v346
    %v830 = vunpack.c.l.b16 %v347
    %v831 = vunpack.c.h.b16 %v347
    %v832 = vunpack.c.l.b16 %v348
    %v833 = vunpack.c.h.b16 %v348
    %v834 = vunpack.c.l.b16 %v349
    %v835 = vunpack.c.h.b16 %v349
    %v836 = vunpack.c.l.b16 %v350
    %v837 = vunpack.c.h.b16 %v350
    %v838 = vunpack.c.l.b16 %v351
    %v839 = vunpack.c.h.b16 %v351
    %v840 = vunpack.c.l.b16 %v352
    %v841 = vunpack.c.h.b16 %v352
    %v842 = vunpack.c.l.b16 %v353
    %v843 = vunpack.c.h.b16 %v353
    %v844 = vunpack.c.l.b16 %v354
    %v845 = vunpack.c.h.b16 %v354
    %v846 = vunpack.c.l.b16 %v355
    %v847 = vunpack.c.h.b16 %v355
    %v848 = vunpack.c.l.b16 %v356
    %v849 = vunpack.c.h.b16 %v356
    %v850 = vunpack.c.l.b16 %v357
    %v851 = vunpack.c.h.b16 %v357
    %v852 = vunpack.c.l.b16 %v358
    %v853 = vunpack.c.h.b16 %v358
    %v854 = vunpack.c.l.b16 %v359
    %v855 = vunpack.c.h.b16 %v359
    %v856 = vunpack.c.l.b16 %v360
    %v857 = vunpack.c.h.b16 %v360
    %v858 = vunpack.c.l.b16 %v361
    %v859 = vunpack.c.h.b16 %v361
    %v860 = vunpack.c.l.b16 %v362
    %v861 = vunpack.c.h.b16 %v362
    %v862 = vunpack.c.l.b16 %v363
    %v863 = vunpack.c.h.b16 %v363
    %v864 = vunpack.c.l.b16 %v364
    %v865 = vunpack.c.h.b16 %v364
    %v866 = vunpack.c.l.b16 %v365
    %v867 = vunpack.c.h.b16 %v365
    %v868 = vunpack.c.l.b16 %v366
    %v869 = vunpack.c.h.b16 %v366
    %v870 = vunpack.c.l.b16 %v367
    %v871 = vunpack.c.h.b16 %v367
    %v872 = vunpack.c.l.b16 %v368
    %v873 = vunpack.c.h.b16 %v368
    %v874 = vunpack.c.l.b16 %v369
    %v875 = vunpack.c.h.b16 %v369
    %v876 = vunpack.c.l.b16 %v370
    %v877 = vunpack.c.h.b16 %v370
    %v878 = vunpack.c.l.b16 %v371
    %v879 = vunpack.c.h.b16 %v371
    %v880 = vunpack.c.l.b16 %v372
    %v881 = vunpack.c.h.b16 %v372
    %v882 = vunpack.c.l.b16 %v373
    %v883 = vunpack.c.h.b16 %v373
    %v884 = vunpack.c.l.b16 %v374
    %v885 = vunpack.c.h.b16 %v374
    %v886 = vunpack.c.l.b16 %v375
    %v887 = vunpack.c.h.b16 %v375
    %v888 = vunpack.c.l.b16 %v376
    %v889 = vunpack.c.h.b16 %v376
    %v890 = vunpack.c.l.b16 %v377
    %v891 = vunpack.c.h.b16 %v377
    %v892 = vunpack.c.l.b16 %v378
    %v893 = vunpack.c.h.b16 %v378
    %v894 = vunpack.c.l.b16 %v379
    %v895 = vunpack.c.h.b16 %v379
    %v896 = vunpack.c.l.b16 %v380
    %v897 = vunpack.c.h.b16 %v380
    %v898 = vunpack.c.l.b16 %v381
    %v899 = vunpack.c.h.b16 %v381
    %v900 = vunpack.c.l.b16 %v382
    %v901 = vunpack.c.h.b16 %v382
    %v902 = vunpack.c.l.b16 %v383
    %v903 = vunpack.c.h.b16 %v383
    %v904 = vunpack.c.l.b16 %v384
    %v905 = vunpack.c.h.b16 %v384
    %v906 = vunpack.c.l.b16 %v385
    %v907 = vunpack.c.h.b16 %v385
    %v908 = vunpack.c.l.b16 %v386
    %v909 = vunpack.c.h.b16 %v386
    %v910 = vunpack.c.l.b16 %v387
    %v911 = vunpack.c.h.b16 %v387
    %v912 = vunpack.c.l.b16 %v388
    %v913 = vunpack.c.h.b16 %v388
    %v914 = vunpack.c.l.b16 %v389
    %v915 = vunpack.c.h.b16 %v389
    %v916 = vunpack.c.l.b16 %v390
    %v917 = vunpack.c.h.b16 %v390
    %v918 = vunpack.c.l.b16 %v391
    %v919 = vunpack.c.h.b16 %v391
    %v920 = vunpack.c.l.b16 %v392
    %v921 = vunpack.c.h.b16 %v392
    %v922 = vunpack.c.l.b16 %v393
    %v923 = vunpack.c.h.b16 %v393
    %v924 = vunpack.c.l.b16 %v394
    %v925 = vunpack.c.h.b16 %v394
    %v926 = vunpack.c.l.b16 %v395
    %v927 = vunpack.c.h.b16 %v395
    %v928 = vunpack.c.l.b16 %v396
    %v929 = vunpack.c.h.b16 %v396
    %v930 = vunpack.c.l.b16 %v397
    %v931 = vunpack.c.h.b16 %v397
    %v932 = vunpack.c.l.b16 %v398
    %v933 = vunpack.c.h.b16 %v398
    %v934 = vunpack.c.l.b16 %v399
    %v935 = vunpack.c.h.b16 %v399
    %v936 = vunpack.c.l.b16 %v400
    %v937 = vunpack.c.h.b16 %v400
    %v938 = vunpack.c.l.b16 %v401
    %v939 = vunpack.c.h.b16 %v401
    %v940 = vunpack.c.l.b16 %v402
    %v941 = vunpack.c.h.b16 %v402
    %v942 = vunpack.c.l.b16 %v403
    %v943 = vunpack.c.h.b16 %v403
    %v944 = vunpack.c.l.b16 %v404
    %v945 = vunpack.c.h.b16 %v404
    %v946 = vunpack.c.l.b16 %v405
    %v947 = vunpack.c.h.b16 %v405
    %v948 = vunpack.c.l.b16 %v406
    %v949 = vunpack.c.h.b16 %v406
    %v950 = vunpack.c.l.b16 %v407
    %v951 = vunpack.c.h.b16 %v407
    %v952 = vunpack.c.l.b16 %v408
    %v953 = vunpack.c.h.b16 %v408
    %v954 = vunpack.c.l.b16 %v409
    %v955 = vunpack.c.h.b16 %v409
    %v956 = vunpack.c.l.b16 %v410
    %v957 = vunpack.c.h.b16 %v410
    %v958 = vunpack.c.l.b16 %v411
    %v959 = vunpack.c.h.b16 %v411
    %v960 = vunpack.c.l.b16 %v412
    %v961 = vunpack.c.h.b16 %v412
    %v962 = vunpack.c.l.b16 %v413
    %v963 = vunpack.c.h.b16 %v413
    %v964 = vunpack.c.l.b16 %v414
    %v965 = vunpack.c.h.b16 %v414
    %v966 = vunpack.c.l.b16 %v415
    %v967 = vunpack.c.h.b16 %v415
    %v968 = vpack.c.b16 %v744, %v712
    %v969 = vpack.c.b16 %v745, %v713
    %v970 = vpack.c.b16 %v746, %v714
    %v971 = vpack.c.b16 %v747, %v715
    %v972 = vpack.c.b16 %v748, %v716
    %v973 = vpack.c.b16 %v749, %v717
    %v974 = vpack.c.b16 %v750, %v718
    %v975 = vpack.c.b16 %v751, %v719
    %v976 = vpack.c.b16 %v752, %v720
    %v977 = vpack.c.b16 %v753, %v721
    %v978 = vpack.c.b16 %v754, %v722
    %v979 = vpack.c.b16 %v755, %v723
    %v980 = vpack.c.b16 %v756, %v724
    %v981 = vpack.c.b16 %v757, %v725
    %v982 = vpack.c.b16 %v758, %v726
    %v983 = vpack.c.b16 %v759, %v727
    %v984 = vpack.c.b16 %v760, %v728
    %v985 = vpack.c.b16 %v761, %v729
    %v986 = vpack.c.b16 %v762, %v730
    %v987 = vpack.c.b16 %v763, %v731
    %v988 = vpack.c.b16 %v764, %v732
    %v989 = vpack.c.b16 %v765, %v733
    %v990 = vpack.c.b16 %v766, %v734
    %v991 = vpack.c.b16 %v767, %v735
    %v992 = vpack.c.b16 %v768, %v736
    %v993 = vpack.c.b16 %v769, %v737
    %v994 = vpack.c.b16 %v770, %v738
    %v995 = vpack.c.b16 %v771, %v739
    %v996 = vpack.c.b16 %v772, %v740
    %v997 = vpack.c.b16 %v773, %v741
    %v998 = vpack.c.b16 %v774, %v742
    %v999 = vpack.c.b16 %v775, %v743
    %v1000 = vpack.c.b16 %v808, %v776
    %v1001 = vpack.c.b16 %v809, %v777
    %v1002 = vpack.c.b16 %v810, %v778
    %v1003 = vpack.c.b16 %v811, %v779
    %v1004 = vpack.c.b16 %v812, %v780
    %v1005 = vpack.c.b16 %v813, %v781
    %v1006 = vpack.c.b16 %v814, %v782
    %v1007 = vpack.c.b16 %v815, %v783
    %v1008 = vpack.c.b16 %v816, %v784
    %v1009 = vpack.c.b16 %v817, %v785
    %v1010 = vpack.c.b16 %v818, %v786
    %v1011 = vpack.c.b16 %v819, %v787
    %v1012 = vpack.c.b16 %v820, %v788
    %v1013 = vpack.c.b16 %v821, %v789
    %v1014 = vpack.c.b16 %v822, %v790
    %v1015 = vpack.c.b16 %v823, %v791
    %v1016 = vpack.c.b16 %v824, %v792
    %v1017 = vpack.c.b16 %v825, %v793
    %v1018 = vpack.c.b16 %v826, %v794
    %v1019 = vpack.c.b16 %v827, %v795
    %v1020 = vpack.c.b16 %v828, %v796
    %v1021 = vpack.c.b16 %v829, %v797
    %v1022 = vpack.c.b16 %v830, %v798
    %v1023 = vpack.c.b16 %v831, %v799
    %v1024 = vpack.c.b16 %v832, %v800
    %v1025 = vpack.c.b16 %v833, %v801
    %v1026 = vpack.c.b16 %v834, %v802
    %v1027 = vpack.c.b16 %v835, %v803
    %v1028 = vpack.c.b16 %v836, %v804
    %v1029 = vpack.c.b16 %v837, %v805
    %v1030 = vpack.c.b16 %v838, %v806
    %v1031 = vpack.c.b16 %v839, %v807
    %v1032 = vpack.c.b16 %v872, %v840
    %v1033 = vpack.c.b16 %v873, %v841
    %v1034 = vpack.c.b16 %v874, %v842
    %v1035 = vpack.c.b16 %v875, %v843
    %v1036 = vpack.c.b16 %v876, %v844
    %v1037 = vpack.c.b16 %v877, %v845
    %v1038 = vpack.c.b16 %v878, %v846
    %v1039 = vpack.c.b16 %v879, %v847
    %v1040 = vpack.c.b16 %v880, %v848
    %v1041 = vpack.c.b16 %v881, %v849
    %v1042 = vpack.c.b16 %v882, %v850
    %v1043 = vpack.c.b16 %v883, %v851
    %v1044 = vpack.c.b16 %v884, %v852
    %v1045 = vpack.c.b16 %v885, %v853
    %v1046 = vpack.c.b16 %v886, %v854
    %v1047 = vpack.c.b16 %v887, %v855
    %v1048 = vpack.c.b16 %v888, %v856
    %v1049 = vpack.c.b16 %v889, %v857
    %v1050 = vpack.c.b16 %v890, %v858
    %v1051 = vpack.c.b16 %v891, %v859
    %v1052 = vpack.c.b16 %v892, %v860
    %v1053 = vpack.c.b16 %v893, %v861
    %v1054 = vpack.c.b16 %v894, %v862
    %v1055 = vpack.c.b16 %v895, %v863
    %v1056 = vpack.c.b16 %v896, %v864
    %v1057 = vpack.c.b16 %v897, %v865
    %v1058 = vpack.c.b16 %v898, %v866
    %v1059 = vpack.c.b16 %v899, %v867
    %v1060 = vpack.c.b16 %v900, %v868
    %v1061 = vpack.c.b16 %v901, %v869
    %v1062 = vpack.c.b16 %v902, %v870
    %v1063 = vpack.c.b16 %v903, %v871
    %v1064 = vpack.c.b16 %v936, %v904
    %v1065 = vpack.c.b16 %v937, %v905
    %v1066 = vpack.c.b16 %v938, %v906
    %v1067 = vpack.c.b16 %v939, %v907
    %v1068 = vpack.c.b16 %v940, %v908
    %v1069 = vpack.c.b16 %v941, %v909
    %v1070 = vpack.c.b16 %v942, %v910
    %v1071 = vpack.c.b16 %v943, %v911
    %v1072 = vpack.c.b16 %v944, %v912
    %v1073 = vpack.c.b16 %v945, %v913
    %v1074 = vpack.c.b16 %v946, %v914
    %v1075 = vpack.c.b16 %v947, %v915
    %v1076 = vpack.c.b16 %v948, %v916
    %v1077 = vpack.c.b16 %v949, %v917
    %v1078 = vpack.c.b16 %v950, %v918
    %v1079 = vpack.c.b16 %v951, %v919
    %v1080 = vpack.c.b16 %v952, %v920
    %v1081 = vpack.c.b16 %v953, %v921
    %v1082 = vpack.c.b16 %v954, %v922
    %v1083 = vpack.c.b16 %v955, %v923
    %v1084 = vpack.c.b16 %v956, %v924
    %v1085 = vpack.c.b16 %v957, %v925
    %v1086 = vpack.c.b16 %v958, %v926
    %v1087 = vpack.c.b16 %v959, %v927
    %v1088 = vpack.c.b16 %v960, %v928
    %v1089 = vpack.c.b16 %v961, %v929
    %v1090 = vpack.c.b16 %v962, %v930
    %v1091 = vpack.c.b16 %v963, %v931
    %v1092 = vpack.c.b16 %v964, %v932
    %v1093 = vpack.c.b16 %v965, %v933
    %v1094 = vpack.c.b16 %v966, %v934
    %v1095 = vpack.c.b16 %v967, %v935
    %v1225 = vsel %vm210, %v287, 0
    %1227 = vmatprep.subr.bf16.mxu0 %v969
    %1228 = vmatpush1.bf16.msra.mxu0 %v968
    %1229 = vmatprep.subr.bf16.mxu0 %v1001
    %1230 = vmatpush1.bf16.msra.mxu0 %v1000
    %1231 = vmatprep.subr.bf16.mxu0 %v1033
    %1232 = vmatpush1.bf16.msra.mxu0 %v1032
    %1233 = vmatprep.subr.bf16.mxu0 %v1065
    %1234 = vmatpush1.bf16.msra.mxu0 %v1064
    %1235 = vmatprep.subr.bf16.mxu0 0
    %1236 = vmatpush1.bf16.msra.mxu0 0
    %1237 = vmatprep.subr.bf16.mxu0 0
    %1238 = vmatpush1.bf16.msra.mxu0 0
    %1239 = vmatprep.subr.bf16.mxu0 0
    %1240 = vmatpush1.bf16.msra.mxu0 0
    %1241 = vmatprep.subr.bf16.mxu0 0
    %1242 = vmatpush1.bf16.msra.mxu0 0
    %1243 = vmatprep.subr.bf16.mxu0 0
    %1244 = vmatpush1.bf16.msra.mxu0 0
    %1245 = vmatprep.subr.bf16.mxu0 0
    %1246 = vmatpush1.bf16.msra.mxu0 0
    %1247 = vmatprep.subr.bf16.mxu0 0
    %1248 = vmatpush1.bf16.msra.mxu0 0
    %1249 = vmatprep.subr.bf16.mxu0 0
    %1250 = vmatpush1.bf16.msra.mxu0 0
    %1251 = vmatprep.subr.bf16.mxu0 0
    %1252 = vmatpush1.bf16.msra.mxu0 0
    %1253 = vmatprep.subr.bf16.mxu0 0
    %1254 = vmatpush1.bf16.msra.mxu0 0
    %1255 = vmatprep.subr.bf16.mxu0 0
    %1256 = vmatpush1.bf16.msra.mxu0 0
    %1257 = vmatprep.subr.bf16.mxu0 0
    %1258 = vmatpush1.bf16.msra.mxu0 0
    %1259 = vmatprep.mubr.bf16.mxu0 0
    %1260 = vmatmul.mubr.bf16.gmra.mrb[0].mxu0 %v1225
    %v1261 = vpop.f32.mrb[0].mxu0
    %v1262 = vadd.f32 %v427, %v1261
    %v1263 = vpop.f32.mrb[0].mxu0
    %v1264 = vadd.f32 %v431, %v1263
    %v1265 = vpop.f32.mrb[0].mxu0
    %v1266 = vpop.f32.mrb[0].mxu0
    %1267 = vdwg.mxu0
    %1268 = vmatprep.subr.bf16.mxu0 %v971
    %1269 = vmatpush1.bf16.msra.mxu0 %v970
    %1270 = vmatprep.subr.bf16.mxu0 %v1003
    %1271 = vmatpush1.bf16.msra.mxu0 %v1002
    %1272 = vmatprep.subr.bf16.mxu0 %v1035
    %1273 = vmatpush1.bf16.msra.mxu0 %v1034
    %1274 = vmatprep.subr.bf16.mxu0 %v1067
    %1275 = vmatpush1.bf16.msra.mxu0 %v1066
    %1276 = vmatprep.subr.bf16.mxu0 0
    %1277 = vmatpush1.bf16.msra.mxu0 0
    %1278 = vmatprep.subr.bf16.mxu0 0
    %1279 = vmatpush1.bf16.msra.mxu0 0
    %1280 = vmatprep.subr.bf16.mxu0 0
    %1281 = vmatpush1.bf16.msra.mxu0 0
    %1282 = vmatprep.subr.bf16.mxu0 0
    %1283 = vmatpush1.bf16.msra.mxu0 0
    %1284 = vmatprep.subr.bf16.mxu0 0
    %1285 = vmatpush1.bf16.msra.mxu0 0
    %1286 = vmatprep.subr.bf16.mxu0 0
    %1287 = vmatpush1.bf16.msra.mxu0 0
    %1288 = vmatprep.subr.bf16.mxu0 0
    %1289 = vmatpush1.bf16.msra.mxu0 0
    %1290 = vmatprep.subr.bf16.mxu0 0
    %1291 = vmatpush1.bf16.msra.mxu0 0
    %1292 = vmatprep.subr.bf16.mxu0 0
    %1293 = vmatpush1.bf16.msra.mxu0 0
    %1294 = vmatprep.subr.bf16.mxu0 0
    %1295 = vmatpush1.bf16.msra.mxu0 0
    %1296 = vmatprep.subr.bf16.mxu0 0
    %1297 = vmatpush1.bf16.msra.mxu0 0
    %1298 = vmatprep.subr.bf16.mxu0 0
    %1299 = vmatpush1.bf16.msra.mxu0 0
    %1300 = vmatprep.mubr.bf16.mxu0 0
    %1301 = vmatmul.mubr.bf16.gmra.mrb[0].mxu0 %v1225
    %v1302 = vpop.f32.mrb[0].mxu0
    %v1303 = vadd.f32 %v435, %v1302
    %v1304 = vpop.f32.mrb[0].mxu0
    %v1305 = vadd.f32 %v439, %v1304
    %v1306 = vpop.f32.mrb[0].mxu0
    %v1307 = vpop.f32.mrb[0].mxu0
    %1308 = vdwg.mxu0
    %1309 = vmatprep.subr.bf16.mxu0 %v973
    %1310 = vmatpush1.bf16.msra.mxu0 %v972
    %1311 = vmatprep.subr.bf16.mxu0 %v1005
    %1312 = vmatpush1.bf16.msra.mxu0 %v1004
    %1313 = vmatprep.subr.bf16.mxu0 %v1037
    %1314 = vmatpush1.bf16.msra.mxu0 %v1036
    %1315 = vmatprep.subr.bf16.mxu0 %v1069
    %1316 = vmatpush1.bf16.msra.mxu0 %v1068
    %1317 = vmatprep.subr.bf16.mxu0 0
    %1318 = vmatpush1.bf16.msra.mxu0 0
    %1319 = vmatprep.subr.bf16.mxu0 0
    %1320 = vmatpush1.bf16.msra.mxu0 0
    %1321 = vmatprep.subr.bf16.mxu0 0
    %1322 = vmatpush1.bf16.msra.mxu0 0
    %1323 = vmatprep.subr.bf16.mxu0 0
    %1324 = vmatpush1.bf16.msra.mxu0 0
    %1325 = vmatprep.subr.bf16.mxu0 0
    %1326 = vmatpush1.bf16.msra.mxu0 0
    %1327 = vmatprep.subr.bf16.mxu0 0
    %1328 = vmatpush1.bf16.msra.mxu0 0
    %1329 = vmatprep.subr.bf16.mxu0 0
    %1330 = vmatpush1.bf16.msra.mxu0 0
    %1331 = vmatprep.subr.bf16.mxu0 0
    %1332 = vmatpush1.bf16.msra.mxu0 0
    %1333 = vmatprep.subr.bf16.mxu0 0
    %1334 = vmatpush1.bf16.msra.mxu0 0
    %1335 = vmatprep.subr.bf16.mxu0 0
    %1336 = vmatpush1.bf16.msra.mxu0 0
    %1337 = vmatprep.subr.bf16.mxu0 0
    %1338 = vmatpush1.bf16.msra.mxu0 0
    %1339 = vmatprep.subr.bf16.mxu0 0
    %1340 = vmatpush1.bf16.msra.mxu0 0
    %1341 = vmatprep.mubr.bf16.mxu0 0
    %1342 = vmatmul.mubr.bf16.gmra.mrb[0].mxu0 %v1225
    %v1343 = vpop.f32.mrb[0].mxu0
    %v1344 = vadd.f32 %v443, %v1343
    %v1345 = vpop.f32.mrb[0].mxu0
    %v1346 = vadd.f32 %v447, %v1345
    %v1347 = vpop.f32.mrb[0].mxu0
    %v1348 = vpop.f32.mrb[0].mxu0
    %1349 = vdwg.mxu0
    %1350 = vmatprep.subr.bf16.mxu0 %v975
    %1351 = vmatpush1.bf16.msra.mxu0 %v974
    %1352 = vmatprep.subr.bf16.mxu0 %v1007
    %1353 = vmatpush1.bf16.msra.mxu0 %v1006
    %1354 = vmatprep.subr.bf16.mxu0 %v1039
    %1355 = vmatpush1.bf16.msra.mxu0 %v1038
    %1356 = vmatprep.subr.bf16.mxu0 %v1071
    %1357 = vmatpush1.bf16.msra.mxu0 %v1070
    %1358 = vmatprep.subr.bf16.mxu0 0
    %1359 = vmatpush1.bf16.msra.mxu0 0
    %1360 = vmatprep.subr.bf16.mxu0 0
    %1361 = vmatpush1.bf16.msra.mxu0 0
    %1362 = vmatprep.subr.bf16.mxu0 0
    %1363 = vmatpush1.bf16.msra.mxu0 0
    %1364 = vmatprep.subr.bf16.mxu0 0
    %1365 = vmatpush1.bf16.msra.mxu0 0
    %1366 = vmatprep.subr.bf16.mxu0 0
    %1367 = vmatpush1.bf16.msra.mxu0 0
    %1368 = vmatprep.subr.bf16.mxu0 0
    %1369 = vmatpush1.bf16.msra.mxu0 0
    %1370 = vmatprep.subr.bf16.mxu0 0
    %1371 = vmatpush1.bf16.msra.mxu0 0
    %1372 = vmatprep.subr.bf16.mxu0 0
    %1373 = vmatpush1.bf16.msra.mxu0 0
    %1374 = vmatprep.subr.bf16.mxu0 0
    %1375 = vmatpush1.bf16.msra.mxu0 0
    %1376 = vmatprep.subr.bf16.mxu0 0
    %1377 = vmatpush1.bf16.msra.mxu0 0
    %1378 = vmatprep.subr.bf16.mxu0 0
    %1379 = vmatpush1.bf16.msra.mxu0 0
    %1380 = vmatprep.subr.bf16.mxu0 0
    %1381 = vmatpush1.bf16.msra.mxu0 0
    %1382 = vmatprep.mubr.bf16.mxu0 0
    %1383 = vmatmul.mubr.bf16.gmra.mrb[0].mxu0 %v1225
    %v1384 = vpop.f32.mrb[0].mxu0
    %v1385 = vadd.f32 %v451, %v1384
    %v1386 = vpop.f32.mrb[0].mxu0
    %v1387 = vadd.f32 %v455, %v1386
    %v1388 = vpop.f32.mrb[0].mxu0
    %v1389 = vpop.f32.mrb[0].mxu0
    %1390 = vdwg.mxu0
    %1391 = vmatprep.subr.bf16.mxu0 %v977
    %1392 = vmatpush1.bf16.msra.mxu0 %v976
    %1393 = vmatprep.subr.bf16.mxu0 %v1009
    %1394 = vmatpush1.bf16.msra.mxu0 %v1008
    %1395 = vmatprep.subr.bf16.mxu0 %v1041
    %1396 = vmatpush1.bf16.msra.mxu0 %v1040
    %1397 = vmatprep.subr.bf16.mxu0 %v1073
    %1398 = vmatpush1.bf16.msra.mxu0 %v1072
    %1399 = vmatprep.subr.bf16.mxu0 0
    %1400 = vmatpush1.bf16.msra.mxu0 0
    %1401 = vmatprep.subr.bf16.mxu0 0
    %1402 = vmatpush1.bf16.msra.mxu0 0
    %1403 = vmatprep.subr.bf16.mxu0 0
    %1404 = vmatpush1.bf16.msra.mxu0 0
    %1405 = vmatprep.subr.bf16.mxu0 0
    %1406 = vmatpush1.bf16.msra.mxu0 0
    %1407 = vmatprep.subr.bf16.mxu0 0
    %1408 = vmatpush1.bf16.msra.mxu0 0
    %1409 = vmatprep.subr.bf16.mxu0 0
    %1410 = vmatpush1.bf16.msra.mxu0 0
    %1411 = vmatprep.subr.bf16.mxu0 0
    %1412 = vmatpush1.bf16.msra.mxu0 0
    %1413 = vmatprep.subr.bf16.mxu0 0
    %1414 = vmatpush1.bf16.msra.mxu0 0
    %1415 = vmatprep.subr.bf16.mxu0 0
    %1416 = vmatpush1.bf16.msra.mxu0 0
    %1417 = vmatprep.subr.bf16.mxu0 0
    %1418 = vmatpush1.bf16.msra.mxu0 0
    %1419 = vmatprep.subr.bf16.mxu0 0
    %1420 = vmatpush1.bf16.msra.mxu0 0
    %1421 = vmatprep.subr.bf16.mxu0 0
    %1422 = vmatpush1.bf16.msra.mxu0 0
    %1423 = vmatprep.mubr.bf16.mxu0 0
    %1424 = vmatmul.mubr.bf16.gmra.mrb[0].mxu0 %v1225
    %v1425 = vpop.f32.mrb[0].mxu0
    %v1426 = vadd.f32 %v459, %v1425
    %v1427 = vpop.f32.mrb[0].mxu0
    %v1428 = vadd.f32 %v463, %v1427
    %v1429 = vpop.f32.mrb[0].mxu0
    %v1430 = vpop.f32.mrb[0].mxu0
    %1431 = vdwg.mxu0
    %1432 = vmatprep.subr.bf16.mxu0 %v979
    %1433 = vmatpush1.bf16.msra.mxu0 %v978
    %1434 = vmatprep.subr.bf16.mxu0 %v1011
    %1435 = vmatpush1.bf16.msra.mxu0 %v1010
    %1436 = vmatprep.subr.bf16.mxu0 %v1043
    %1437 = vmatpush1.bf16.msra.mxu0 %v1042
    %1438 = vmatprep.subr.bf16.mxu0 %v1075
    %1439 = vmatpush1.bf16.msra.mxu0 %v1074
    %1440 = vmatprep.subr.bf16.mxu0 0
    %1441 = vmatpush1.bf16.msra.mxu0 0
    %1442 = vmatprep.subr.bf16.mxu0 0
    %1443 = vmatpush1.bf16.msra.mxu0 0
    %1444 = vmatprep.subr.bf16.mxu0 0
    %1445 = vmatpush1.bf16.msra.mxu0 0
    %1446 = vmatprep.subr.bf16.mxu0 0
    %1447 = vmatpush1.bf16.msra.mxu0 0
    %1448 = vmatprep.subr.bf16.mxu0 0
    %1449 = vmatpush1.bf16.msra.mxu0 0
    %1450 = vmatprep.subr.bf16.mxu0 0
    %1451 = vmatpush1.bf16.msra.mxu0 0
    %1452 = vmatprep.subr.bf16.mxu0 0
    %1453 = vmatpush1.bf16.msra.mxu0 0
    %1454 = vmatprep.subr.bf16.mxu0 0
    %1455 = vmatpush1.bf16.msra.mxu0 0
    %1456 = vmatprep.subr.bf16.mxu0 0
    %1457 = vmatpush1.bf16.msra.mxu0 0
    %1458 = vmatprep.subr.bf16.mxu0 0
    %1459 = vmatpush1.bf16.msra.mxu0 0
    %1460 = vmatprep.subr.bf16.mxu0 0
    %1461 = vmatpush1.bf16.msra.mxu0 0
    %1462 = vmatprep.subr.bf16.mxu0 0
    %1463 = vmatpush1.bf16.msra.mxu0 0
    %1464 = vmatprep.mubr.bf16.mxu0 0
    %1465 = vmatmul.mubr.bf16.gmra.mrb[0].mxu0 %v1225
    %v1466 = vpop.f32.mrb[0].mxu0
    %v1467 = vadd.f32 %v467, %v1466
    %v1468 = vpop.f32.mrb[0].mxu0
    %v1469 = vadd.f32 %v471, %v1468
    %v1470 = vpop.f32.mrb[0].mxu0
    %v1471 = vpop.f32.mrb[0].mxu0
    %1472 = vdwg.mxu0
    %1473 = vmatprep.subr.bf16.mxu0 %v981
    %1474 = vmatpush1.bf16.msra.mxu0 %v980
    %1475 = vmatprep.subr.bf16.mxu0 %v1013
    %1476 = vmatpush1.bf16.msra.mxu0 %v1012
    %1477 = vmatprep.subr.bf16.mxu0 %v1045
    %1478 = vmatpush1.bf16.msra.mxu0 %v1044
    %1479 = vmatprep.subr.bf16.mxu0 %v1077
    %1480 = vmatpush1.bf16.msra.mxu0 %v1076
    %1481 = vmatprep.subr.bf16.mxu0 0
    %1482 = vmatpush1.bf16.msra.mxu0 0
    %1483 = vmatprep.subr.bf16.mxu0 0
    %1484 = vmatpush1.bf16.msra.mxu0 0
    %1485 = vmatprep.subr.bf16.mxu0 0
    %1486 = vmatpush1.bf16.msra.mxu0 0
    %1487 = vmatprep.subr.bf16.mxu0 0
    %1488 = vmatpush1.bf16.msra.mxu0 0
    %1489 = vmatprep.subr.bf16.mxu0 0
    %1490 = vmatpush1.bf16.msra.mxu0 0
    %1491 = vmatprep.subr.bf16.mxu0 0
    %1492 = vmatpush1.bf16.msra.mxu0 0
    %1493 = vmatprep.subr.bf16.mxu0 0
    %1494 = vmatpush1.bf16.msra.mxu0 0
    %1495 = vmatprep.subr.bf16.mxu0 0
    %1496 = vmatpush1.bf16.msra.mxu0 0
    %1497 = vmatprep.subr.bf16.mxu0 0
    %1498 = vmatpush1.bf16.msra.mxu0 0
    %1499 = vmatprep.subr.bf16.mxu0 0
    %1500 = vmatpush1.bf16.msra.mxu0 0
    %1501 = vmatprep.subr.bf16.mxu0 0
    %1502 = vmatpush1.bf16.msra.mxu0 0
    %1503 = vmatprep.subr.bf16.mxu0 0
    %1504 = vmatpush1.bf16.msra.mxu0 0
    %1505 = vmatprep.mubr.bf16.mxu0 0
    %1506 = vmatmul.mubr.bf16.gmra.mrb[0].mxu0 %v1225
    %v1507 = vpop.f32.mrb[0].mxu0
    %v1508 = vadd.f32 %v475, %v1507
    %v1509 = vpop.f32.mrb[0].mxu0
    %v1510 = vadd.f32 %v479, %v1509
    %v1511 = vpop.f32.mrb[0].mxu0
    %v1512 = vpop.f32.mrb[0].mxu0
    %1513 = vdwg.mxu0
    %1514 = vmatprep.subr.bf16.mxu0 %v983
    %1515 = vmatpush1.bf16.msra.mxu0 %v982
    %1516 = vmatprep.subr.bf16.mxu0 %v1015
    %1517 = vmatpush1.bf16.msra.mxu0 %v1014
    %1518 = vmatprep.subr.bf16.mxu0 %v1047
    %1519 = vmatpush1.bf16.msra.mxu0 %v1046
    %1520 = vmatprep.subr.bf16.mxu0 %v1079
    %1521 = vmatpush1.bf16.msra.mxu0 %v1078
    %1522 = vmatprep.subr.bf16.mxu0 0
    %1523 = vmatpush1.bf16.msra.mxu0 0
    %1524 = vmatprep.subr.bf16.mxu0 0
    %1525 = vmatpush1.bf16.msra.mxu0 0
    %1526 = vmatprep.subr.bf16.mxu0 0
    %1527 = vmatpush1.bf16.msra.mxu0 0
    %1528 = vmatprep.subr.bf16.mxu0 0
    %1529 = vmatpush1.bf16.msra.mxu0 0
    %1530 = vmatprep.subr.bf16.mxu0 0
    %1531 = vmatpush1.bf16.msra.mxu0 0
    %1532 = vmatprep.subr.bf16.mxu0 0
    %1533 = vmatpush1.bf16.msra.mxu0 0
    %1534 = vmatprep.subr.bf16.mxu0 0
    %1535 = vmatpush1.bf16.msra.mxu0 0
    %1536 = vmatprep.subr.bf16.mxu0 0
    %1537 = vmatpush1.bf16.msra.mxu0 0
    %1538 = vmatprep.subr.bf16.mxu0 0
    %1539 = vmatpush1.bf16.msra.mxu0 0
    %1540 = vmatprep.subr.bf16.mxu0 0
    %1541 = vmatpush1.bf16.msra.mxu0 0
    %1542 = vmatprep.subr.bf16.mxu0 0
    %1543 = vmatpush1.bf16.msra.mxu0 0
    %1544 = vmatprep.subr.bf16.mxu0 0
    %1545 = vmatpush1.bf16.msra.mxu0 0
    %1546 = vmatprep.mubr.bf16.mxu0 0
    %1547 = vmatmul.mubr.bf16.gmra.mrb[0].mxu0 %v1225
    %v1548 = vpop.f32.mrb[0].mxu0
    %v1549 = vadd.f32 %v483, %v1548
    %v1550 = vpop.f32.mrb[0].mxu0
    %v1551 = vadd.f32 %v487, %v1550
    %v1552 = vpop.f32.mrb[0].mxu0
    %v1553 = vpop.f32.mrb[0].mxu0
    %1554 = vdwg.mxu0
    %1555 = vmatprep.subr.bf16.mxu0 %v985
    %1556 = vmatpush1.bf16.msra.mxu0 %v984
    %1557 = vmatprep.subr.bf16.mxu0 %v1017
    %1558 = vmatpush1.bf16.msra.mxu0 %v1016
    %1559 = vmatprep.subr.bf16.mxu0 %v1049
    %1560 = vmatpush1.bf16.msra.mxu0 %v1048
    %1561 = vmatprep.subr.bf16.mxu0 %v1081
    %1562 = vmatpush1.bf16.msra.mxu0 %v1080
    %1563 = vmatprep.subr.bf16.mxu0 0
    %1564 = vmatpush1.bf16.msra.mxu0 0
    %1565 = vmatprep.subr.bf16.mxu0 0
    %1566 = vmatpush1.bf16.msra.mxu0 0
    %1567 = vmatprep.subr.bf16.mxu0 0
    %1568 = vmatpush1.bf16.msra.mxu0 0
    %1569 = vmatprep.subr.bf16.mxu0 0
    %1570 = vmatpush1.bf16.msra.mxu0 0
    %1571 = vmatprep.subr.bf16.mxu0 0
    %1572 = vmatpush1.bf16.msra.mxu0 0
    %1573 = vmatprep.subr.bf16.mxu0 0
    %1574 = vmatpush1.bf16.msra.mxu0 0
    %1575 = vmatprep.subr.bf16.mxu0 0
    %1576 = vmatpush1.bf16.msra.mxu0 0
    %1577 = vmatprep.subr.bf16.mxu0 0
    %1578 = vmatpush1.bf16.msra.mxu0 0
    %1579 = vmatprep.subr.bf16.mxu0 0
    %1580 = vmatpush1.bf16.msra.mxu0 0
    %1581 = vmatprep.subr.bf16.mxu0 0
    %1582 = vmatpush1.bf16.msra.mxu0 0
    %1583 = vmatprep.subr.bf16.mxu0 0
    %1584 = vmatpush1.bf16.msra.mxu0 0
    %1585 = vmatprep.subr.bf16.mxu0 0
    %1586 = vmatpush1.bf16.msra.mxu0 0
    %1587 = vmatprep.mubr.bf16.mxu0 0
    %1588 = vmatmul.mubr.bf16.gmra.mrb[0].mxu0 %v1225
    %v1589 = vpop.f32.mrb[0].mxu0
    %v1590 = vadd.f32 %v491, %v1589
    %v1591 = vpop.f32.mrb[0].mxu0
    %v1592 = vadd.f32 %v495, %v1591
    %v1593 = vpop.f32.mrb[0].mxu0
    %v1594 = vpop.f32.mrb[0].mxu0
    %1595 = vdwg.mxu0
    %1596 = vmatprep.subr.bf16.mxu0 %v987
    %1597 = vmatpush1.bf16.msra.mxu0 %v986
    %1598 = vmatprep.subr.bf16.mxu0 %v1019
    %1599 = vmatpush1.bf16.msra.mxu0 %v1018
    %1600 = vmatprep.subr.bf16.mxu0 %v1051
    %1601 = vmatpush1.bf16.msra.mxu0 %v1050
    %1602 = vmatprep.subr.bf16.mxu0 %v1083
    %1603 = vmatpush1.bf16.msra.mxu0 %v1082
    %1604 = vmatprep.subr.bf16.mxu0 0
    %1605 = vmatpush1.bf16.msra.mxu0 0
    %1606 = vmatprep.subr.bf16.mxu0 0
    %1607 = vmatpush1.bf16.msra.mxu0 0
    %1608 = vmatprep.subr.bf16.mxu0 0
    %1609 = vmatpush1.bf16.msra.mxu0 0
    %1610 = vmatprep.subr.bf16.mxu0 0
    %1611 = vmatpush1.bf16.msra.mxu0 0
    %1612 = vmatprep.subr.bf16.mxu0 0
    %1613 = vmatpush1.bf16.msra.mxu0 0
    %1614 = vmatprep.subr.bf16.mxu0 0
    %1615 = vmatpush1.bf16.msra.mxu0 0
    %1616 = vmatprep.subr.bf16.mxu0 0
    %1617 = vmatpush1.bf16.msra.mxu0 0
    %1618 = vmatprep.subr.bf16.mxu0 0
    %1619 = vmatpush1.bf16.msra.mxu0 0
    %1620 = vmatprep.subr.bf16.mxu0 0
    %1621 = vmatpush1.bf16.msra.mxu0 0
    %1622 = vmatprep.subr.bf16.mxu0 0
    %1623 = vmatpush1.bf16.msra.mxu0 0
    %1624 = vmatprep.subr.bf16.mxu0 0
    %1625 = vmatpush1.bf16.msra.mxu0 0
    %1626 = vmatprep.subr.bf16.mxu0 0
    %1627 = vmatpush1.bf16.msra.mxu0 0
    %1628 = vmatprep.mubr.bf16.mxu0 0
    %1629 = vmatmul.mubr.bf16.gmra.mrb[0].mxu0 %v1225
    %v1630 = vpop.f32.mrb[0].mxu0
    %v1631 = vadd.f32 %v499, %v1630
    %v1632 = vpop.f32.mrb[0].mxu0
    %v1633 = vadd.f32 %v503, %v1632
    %v1634 = vpop.f32.mrb[0].mxu0
    %v1635 = vpop.f32.mrb[0].mxu0
    %1636 = vdwg.mxu0
    %1637 = vmatprep.subr.bf16.mxu0 %v989
    %1638 = vmatpush1.bf16.msra.mxu0 %v988
    %1639 = vmatprep.subr.bf16.mxu0 %v1021
    %1640 = vmatpush1.bf16.msra.mxu0 %v1020
    %1641 = vmatprep.subr.bf16.mxu0 %v1053
    %1642 = vmatpush1.bf16.msra.mxu0 %v1052
    %1643 = vmatprep.subr.bf16.mxu0 %v1085
    %1644 = vmatpush1.bf16.msra.mxu0 %v1084
    %1645 = vmatprep.subr.bf16.mxu0 0
    %1646 = vmatpush1.bf16.msra.mxu0 0
    %1647 = vmatprep.subr.bf16.mxu0 0
    %1648 = vmatpush1.bf16.msra.mxu0 0
    %1649 = vmatprep.subr.bf16.mxu0 0
    %1650 = vmatpush1.bf16.msra.mxu0 0
    %1651 = vmatprep.subr.bf16.mxu0 0
    %1652 = vmatpush1.bf16.msra.mxu0 0
    %1653 = vmatprep.subr.bf16.mxu0 0
    %1654 = vmatpush1.bf16.msra.mxu0 0
    %1655 = vmatprep.subr.bf16.mxu0 0
    %1656 = vmatpush1.bf16.msra.mxu0 0
    %1657 = vmatprep.subr.bf16.mxu0 0
    %1658 = vmatpush1.bf16.msra.mxu0 0
    %1659 = vmatprep.subr.bf16.mxu0 0
    %1660 = vmatpush1.bf16.msra.mxu0 0
    %1661 = vmatprep.subr.bf16.mxu0 0
    %1662 = vmatpush1.bf16.msra.mxu0 0
    %1663 = vmatprep.subr.bf16.mxu0 0
    %1664 = vmatpush1.bf16.msra.mxu0 0
    %1665 = vmatprep.subr.bf16.mxu0 0
    %1666 = vmatpush1.bf16.msra.mxu0 0
    %1667 = vmatprep.subr.bf16.mxu0 0
    %1668 = vmatpush1.bf16.msra.mxu0 0
    %1669 = vmatprep.mubr.bf16.mxu0 0
    %1670 = vmatmul.mubr.bf16.gmra.mrb[0].mxu0 %v1225
    %v1671 = vpop.f32.mrb[0].mxu0
    %v1672 = vadd.f32 %v507, %v1671
    %v1673 = vpop.f32.mrb[0].mxu0
    %v1674 = vadd.f32 %v511, %v1673
    %v1675 = vpop.f32.mrb[0].mxu0
    %v1676 = vpop.f32.mrb[0].mxu0
    %1677 = vdwg.mxu0
    %1678 = vmatprep.subr.bf16.mxu0 %v991
    %1679 = vmatpush1.bf16.msra.mxu0 %v990
    %1680 = vmatprep.subr.bf16.mxu0 %v1023
    %1681 = vmatpush1.bf16.msra.mxu0 %v1022
    %1682 = vmatprep.subr.bf16.mxu0 %v1055
    %1683 = vmatpush1.bf16.msra.mxu0 %v1054
    %1684 = vmatprep.subr.bf16.mxu0 %v1087
    %1685 = vmatpush1.bf16.msra.mxu0 %v1086
    %1686 = vmatprep.subr.bf16.mxu0 0
    %1687 = vmatpush1.bf16.msra.mxu0 0
    %1688 = vmatprep.subr.bf16.mxu0 0
    %1689 = vmatpush1.bf16.msra.mxu0 0
    %1690 = vmatprep.subr.bf16.mxu0 0
    %1691 = vmatpush1.bf16.msra.mxu0 0
    %1692 = vmatprep.subr.bf16.mxu0 0
    %1693 = vmatpush1.bf16.msra.mxu0 0
    %1694 = vmatprep.subr.bf16.mxu0 0
    %1695 = vmatpush1.bf16.msra.mxu0 0
    %1696 = vmatprep.subr.bf16.mxu0 0
    %1697 = vmatpush1.bf16.msra.mxu0 0
    %1698 = vmatprep.subr.bf16.mxu0 0
    %1699 = vmatpush1.bf16.msra.mxu0 0
    %1700 = vmatprep.subr.bf16.mxu0 0
    %1701 = vmatpush1.bf16.msra.mxu0 0
    %1702 = vmatprep.subr.bf16.mxu0 0
    %1703 = vmatpush1.bf16.msra.mxu0 0
    %1704 = vmatprep.subr.bf16.mxu0 0
    %1705 = vmatpush1.bf16.msra.mxu0 0
    %1706 = vmatprep.subr.bf16.mxu0 0
    %1707 = vmatpush1.bf16.msra.mxu0 0
    %1708 = vmatprep.subr.bf16.mxu0 0
    %1709 = vmatpush1.bf16.msra.mxu0 0
    %1710 = vmatprep.mubr.bf16.mxu0 0
    %1711 = vmatmul.mubr.bf16.gmra.mrb[0].mxu0 %v1225
    %v1712 = vpop.f32.mrb[0].mxu0
    %v1713 = vadd.f32 %v515, %v1712
    %v1714 = vpop.f32.mrb[0].mxu0
    %v1715 = vadd.f32 %v519, %v1714
    %v1716 = vpop.f32.mrb[0].mxu0
    %v1717 = vpop.f32.mrb[0].mxu0
    %1718 = vdwg.mxu0
    %1719 = vmatprep.subr.bf16.mxu0 %v993
    %1720 = vmatpush1.bf16.msra.mxu0 %v992
    %1721 = vmatprep.subr.bf16.mxu0 %v1025
    %1722 = vmatpush1.bf16.msra.mxu0 %v1024
    %1723 = vmatprep.subr.bf16.mxu0 %v1057
    %1724 = vmatpush1.bf16.msra.mxu0 %v1056
    %1725 = vmatprep.subr.bf16.mxu0 %v1089
    %1726 = vmatpush1.bf16.msra.mxu0 %v1088
    %1727 = vmatprep.subr.bf16.mxu0 0
    %1728 = vmatpush1.bf16.msra.mxu0 0
    %1729 = vmatprep.subr.bf16.mxu0 0
    %1730 = vmatpush1.bf16.msra.mxu0 0
    %1731 = vmatprep.subr.bf16.mxu0 0
    %1732 = vmatpush1.bf16.msra.mxu0 0
    %1733 = vmatprep.subr.bf16.mxu0 0
    %1734 = vmatpush1.bf16.msra.mxu0 0
    %1735 = vmatprep.subr.bf16.mxu0 0
    %1736 = vmatpush1.bf16.msra.mxu0 0
    %1737 = vmatprep.subr.bf16.mxu0 0
    %1738 = vmatpush1.bf16.msra.mxu0 0
    %1739 = vmatprep.subr.bf16.mxu0 0
    %1740 = vmatpush1.bf16.msra.mxu0 0
    %1741 = vmatprep.subr.bf16.mxu0 0
    %1742 = vmatpush1.bf16.msra.mxu0 0
    %1743 = vmatprep.subr.bf16.mxu0 0
    %1744 = vmatpush1.bf16.msra.mxu0 0
    %1745 = vmatprep.subr.bf16.mxu0 0
    %1746 = vmatpush1.bf16.msra.mxu0 0
    %1747 = vmatprep.subr.bf16.mxu0 0
    %1748 = vmatpush1.bf16.msra.mxu0 0
    %1749 = vmatprep.subr.bf16.mxu0 0
    %1750 = vmatpush1.bf16.msra.mxu0 0
    %1751 = vmatprep.mubr.bf16.mxu0 0
    %1752 = vmatmul.mubr.bf16.gmra.mrb[0].mxu0 %v1225
    %v1753 = vpop.f32.mrb[0].mxu0
    %v1754 = vadd.f32 %v523, %v1753
    %v1755 = vpop.f32.mrb[0].mxu0
    %v1756 = vadd.f32 %v527, %v1755
    %v1757 = vpop.f32.mrb[0].mxu0
    %v1758 = vpop.f32.mrb[0].mxu0
    %1759 = vdwg.mxu0
    %1760 = vmatprep.subr.bf16.mxu0 %v995
    %1761 = vmatpush1.bf16.msra.mxu0 %v994
    %1762 = vmatprep.subr.bf16.mxu0 %v1027
    %1763 = vmatpush1.bf16.msra.mxu0 %v1026
    %1764 = vmatprep.subr.bf16.mxu0 %v1059
    %1765 = vmatpush1.bf16.msra.mxu0 %v1058
    %1766 = vmatprep.subr.bf16.mxu0 %v1091
    %1767 = vmatpush1.bf16.msra.mxu0 %v1090
    %1768 = vmatprep.subr.bf16.mxu0 0
    %1769 = vmatpush1.bf16.msra.mxu0 0
    %1770 = vmatprep.subr.bf16.mxu0 0
    %1771 = vmatpush1.bf16.msra.mxu0 0
    %1772 = vmatprep.subr.bf16.mxu0 0
    %1773 = vmatpush1.bf16.msra.mxu0 0
    %1774 = vmatprep.subr.bf16.mxu0 0
    %1775 = vmatpush1.bf16.msra.mxu0 0
    %1776 = vmatprep.subr.bf16.mxu0 0
    %1777 = vmatpush1.bf16.msra.mxu0 0
    %1778 = vmatprep.subr.bf16.mxu0 0
    %1779 = vmatpush1.bf16.msra.mxu0 0
    %1780 = vmatprep.subr.bf16.mxu0 0
    %1781 = vmatpush1.bf16.msra.mxu0 0
    %1782 = vmatprep.subr.bf16.mxu0 0
    %1783 = vmatpush1.bf16.msra.mxu0 0
    %1784 = vmatprep.subr.bf16.mxu0 0
    %1785 = vmatpush1.bf16.msra.mxu0 0
    %1786 = vmatprep.subr.bf16.mxu0 0
    %1787 = vmatpush1.bf16.msra.mxu0 0
    %1788 = vmatprep.subr.bf16.mxu0 0
    %1789 = vmatpush1.bf16.msra.mxu0 0
    %1790 = vmatprep.subr.bf16.mxu0 0
    %1791 = vmatpush1.bf16.msra.mxu0 0
    %1792 = vmatprep.mubr.bf16.mxu0 0
    %1793 = vmatmul.mubr.bf16.gmra.mrb[0].mxu0 %v1225
    %v1794 = vpop.f32.mrb[0].mxu0
    %v1795 = vadd.f32 %v531, %v1794
    %v1796 = vpop.f32.mrb[0].mxu0
    %v1797 = vadd.f32 %v535, %v1796
    %v1798 = vpop.f32.mrb[0].mxu0
    %v1799 = vpop.f32.mrb[0].mxu0
    %1800 = vdwg.mxu0
    %1801 = vmatprep.subr.bf16.mxu0 %v997
    %1802 = vmatpush1.bf16.msra.mxu0 %v996
    %1803 = vmatprep.subr.bf16.mxu0 %v1029
    %1804 = vmatpush1.bf16.msra.mxu0 %v1028
    %1805 = vmatprep.subr.bf16.mxu0 %v1061
    %1806 = vmatpush1.bf16.msra.mxu0 %v1060
    %1807 = vmatprep.subr.bf16.mxu0 %v1093
    %1808 = vmatpush1.bf16.msra.mxu0 %v1092
    %1809 = vmatprep.subr.bf16.mxu0 0
    %1810 = vmatpush1.bf16.msra.mxu0 0
    %1811 = vmatprep.subr.bf16.mxu0 0
    %1812 = vmatpush1.bf16.msra.mxu0 0
    %1813 = vmatprep.subr.bf16.mxu0 0
    %1814 = vmatpush1.bf16.msra.mxu0 0
    %1815 = vmatprep.subr.bf16.mxu0 0
    %1816 = vmatpush1.bf16.msra.mxu0 0
    %1817 = vmatprep.subr.bf16.mxu0 0
    %1818 = vmatpush1.bf16.msra.mxu0 0
    %1819 = vmatprep.subr.bf16.mxu0 0
    %1820 = vmatpush1.bf16.msra.mxu0 0
    %1821 = vmatprep.subr.bf16.mxu0 0
    %1822 = vmatpush1.bf16.msra.mxu0 0
    %1823 = vmatprep.subr.bf16.mxu0 0
    %1824 = vmatpush1.bf16.msra.mxu0 0
    %1825 = vmatprep.subr.bf16.mxu0 0
    %1826 = vmatpush1.bf16.msra.mxu0 0
    %1827 = vmatprep.subr.bf16.mxu0 0
    %1828 = vmatpush1.bf16.msra.mxu0 0
    %1829 = vmatprep.subr.bf16.mxu0 0
    %1830 = vmatpush1.bf16.msra.mxu0 0
    %1831 = vmatprep.subr.bf16.mxu0 0
    %1832 = vmatpush1.bf16.msra.mxu0 0
    %1833 = vmatprep.mubr.bf16.mxu0 0
    %1834 = vmatmul.mubr.bf16.gmra.mrb[0].mxu0 %v1225
    %v1835 = vpop.f32.mrb[0].mxu0
    %v1836 = vadd.f32 %v539, %v1835
    %v1837 = vpop.f32.mrb[0].mxu0
    %v1838 = vadd.f32 %v543, %v1837
    %v1839 = vpop.f32.mrb[0].mxu0
    %v1840 = vpop.f32.mrb[0].mxu0
    %1841 = vdwg.mxu0
    %1842 = vmatprep.subr.bf16.mxu0 %v999
    %1843 = vmatpush1.bf16.msra.mxu0 %v998
    %1844 = vmatprep.subr.bf16.mxu0 %v1031
    %1845 = vmatpush1.bf16.msra.mxu0 %v1030
    %1846 = vmatprep.subr.bf16.mxu0 %v1063
    %1847 = vmatpush1.bf16.msra.mxu0 %v1062
    %1848 = vmatprep.subr.bf16.mxu0 %v1095
    %1849 = vmatpush1.bf16.msra.mxu0 %v1094
    %1850 = vmatprep.subr.bf16.mxu0 0
    %1851 = vmatpush1.bf16.msra.mxu0 0
    %1852 = vmatprep.subr.bf16.mxu0 0
    %1853 = vmatpush1.bf16.msra.mxu0 0
    %1854 = vmatprep.subr.bf16.mxu0 0
    %1855 = vmatpush1.bf16.msra.mxu0 0
    %1856 = vmatprep.subr.bf16.mxu0 0
    %1857 = vmatpush1.bf16.msra.mxu0 0
    %1858 = vmatprep.subr.bf16.mxu0 0
    %1859 = vmatpush1.bf16.msra.mxu0 0
    %1860 = vmatprep.subr.bf16.mxu0 0
    %1861 = vmatpush1.bf16.msra.mxu0 0
    %1862 = vmatprep.subr.bf16.mxu0 0
    %1863 = vmatpush1.bf16.msra.mxu0 0
    %1864 = vmatprep.subr.bf16.mxu0 0
    %1865 = vmatpush1.bf16.msra.mxu0 0
    %1866 = vmatprep.subr.bf16.mxu0 0
    %1867 = vmatpush1.bf16.msra.mxu0 0
    %1868 = vmatprep.subr.bf16.mxu0 0
    %1869 = vmatpush1.bf16.msra.mxu0 0
    %1870 = vmatprep.subr.bf16.mxu0 0
    %1871 = vmatpush1.bf16.msra.mxu0 0
    %1872 = vmatprep.subr.bf16.mxu0 0
    %1873 = vmatpush1.bf16.msra.mxu0 0
    %1874 = vmatprep.mubr.bf16.mxu0 0
    %1875 = vmatmul.mubr.bf16.gmra.mrb[0].mxu0 %v1225
    %v1876 = vpop.f32.mrb[0].mxu0
    %v1877 = vadd.f32 %v547, %v1876
    %v1878 = vpop.f32.mrb[0].mxu0
    %v1879 = vadd.f32 %v551, %v1878
    %v1880 = vpop.f32.mrb[0].mxu0
    %v1881 = vpop.f32.mrb[0].mxu0
    %1882 = vdwg.mxu0
    %1883 = vst [vmem:[#allocation2] sm:$0xff] %v1262
    %1884 = vst [vmem:[#allocation2 + $0x8] sm:$0xff] %v1264
    %1885 = vst [vmem:[#allocation2 + $0x10] sm:$0xff] %v1303
    %1886 = vst [vmem:[#allocation2 + $0x18] sm:$0xff] %v1305
    %1887 = vst [vmem:[#allocation2 + $0x20] sm:$0xff] %v1344
    %1888 = vst [vmem:[#allocation2 + $0x28] sm:$0xff] %v1346
    %1889 = vst [vmem:[#allocation2 + $0x30] sm:$0xff] %v1385
    %1890 = vst [vmem:[#allocation2 + $0x38] sm:$0xff] %v1387
    %1891 = vst [vmem:[#allocation2 + $0x40] sm:$0xff] %v1426
    %1892 = vst [vmem:[#allocation2 + $0x48] sm:$0xff] %v1428
    %1893 = vst [vmem:[#allocation2 + $0x50] sm:$0xff] %v1467
    %1894 = vst [vmem:[#allocation2 + $0x58] sm:$0xff] %v1469
    %1895 = vst [vmem:[#allocation2 + $0x60] sm:$0xff] %v1508
    %1896 = vst [vmem:[#allocation2 + $0x68] sm:$0xff] %v1510
    %1897 = vst [vmem:[#allocation2 + $0x70] sm:$0xff] %v1549
    %1898 = vst [vmem:[#allocation2 + $0x78] sm:$0xff] %v1551
    %1899 = vst [vmem:[#allocation2 + $0x80] sm:$0xff] %v1590
    %1900 = vst [vmem:[#allocation2 + $0x88] sm:$0xff] %v1592
    %1901 = vst [vmem:[#allocation2 + $0x90] sm:$0xff] %v1631
    %1902 = vst [vmem:[#allocation2 + $0x98] sm:$0xff] %v1633
    %1903 = vst [vmem:[#allocation2 + $0xa0] sm:$0xff] %v1672
    %1904 = vst [vmem:[#allocation2 + $0xa8] sm:$0xff] %v1674
    %1905 = vst [vmem:[#allocation2 + $0xb0] sm:$0xff] %v1713
    %1906 = vst [vmem:[#allocation2 + $0xb8] sm:$0xff] %v1715
    %1907 = vst [vmem:[#allocation2 + $0xc0] sm:$0xff] %v1754
    %1908 = vst [vmem:[#allocation2 + $0xc8] sm:$0xff] %v1756
    %1909 = vst [vmem:[#allocation2 + $0xd0] sm:$0xff] %v1795
    %1910 = vst [vmem:[#allocation2 + $0xd8] sm:$0xff] %v1797
    %1911 = vst [vmem:[#allocation2 + $0xe0] sm:$0xff] %v1836
    %1912 = vst [vmem:[#allocation2 + $0xe8] sm:$0xff] %v1838
    %1913 = vst [vmem:[#allocation2 + $0xf0] sm:$0xff] %v1877
    %1914 = vst [vmem:[#allocation2 + $0xf8] sm:$0xff] %v1879
    %v1915 = vld [vmem:[#allocation2] sm:$0xff]
    %v1916 = vld [vmem:[#allocation11] sm:$0xf]
    %v1917 = vld [vmem:[#allocation11 + $0x4] sm:$0xf]
    %v1918 = vld [vmem:[#allocation11 + $0x8] sm:$0xf]
    %v1919 = vld [vmem:[#allocation11 + $0xc] sm:$0xf]
    %v1920 = vld [vmem:[#allocation11 + $0x10] sm:$0xf]
    %v1921 = vld [vmem:[#allocation11 + $0x14] sm:$0xf]
    %v1922 = vld [vmem:[#allocation11 + $0x18] sm:$0xf]
    %v1923 = vld [vmem:[#allocation11 + $0x1c] sm:$0xf]
    %v1924 = vld [vmem:[#allocation11 + $0x20] sm:$0xf]
    %v1925 = vld [vmem:[#allocation11 + $0x24] sm:$0xf]
    %v1926 = vld [vmem:[#allocation11 + $0x28] sm:$0xf]
    %v1927 = vld [vmem:[#allocation11 + $0x2c] sm:$0xf]
    %v1928 = vld [vmem:[#allocation11 + $0x30] sm:$0xf]
    %v1929 = vld [vmem:[#allocation11 + $0x34] sm:$0xf]
    %v1930 = vld [vmem:[#allocation11 + $0x38] sm:$0xf]
    %v1931 = vld [vmem:[#allocation11 + $0x3c] sm:$0xf]
    %v1948 = vunpack.c.l.b16 %v1916
    %v1949 = vunpack.c.l.b16 %v1917
    %v1950 = vunpack.c.l.b16 %v1918
    %v1951 = vunpack.c.l.b16 %v1919
    %v1952 = vunpack.c.l.b16 %v1920
    %v1953 = vunpack.c.l.b16 %v1921
    %v1954 = vunpack.c.l.b16 %v1922
    %v1955 = vunpack.c.l.b16 %v1923
    %v1956 = vunpack.c.l.b16 %v1924
    %v1957 = vunpack.c.l.b16 %v1925
    %v1958 = vunpack.c.l.b16 %v1926
    %v1959 = vunpack.c.l.b16 %v1927
    %v1960 = vunpack.c.l.b16 %v1928
    %v1961 = vunpack.c.l.b16 %v1929
    %v1962 = vunpack.c.l.b16 %v1930
    %v1963 = vunpack.c.l.b16 %v1931
    %v1964 = vpack.c.b16 %v1949, %v1948
    %v1965 = vpack.c.b16 %v1951, %v1950
    %v1966 = vpack.c.b16 %v1953, %v1952
    %v1967 = vpack.c.b16 %v1955, %v1954
    %v1968 = vpack.c.b16 %v1957, %v1956
    %v1969 = vpack.c.b16 %v1959, %v1958
    %v1970 = vpack.c.b16 %v1961, %v1960
    %v1971 = vpack.c.b16 %v1963, %v1962
    %1980 = vmatprep.subr.bf16.mxu0 0
    %1981 = vmatpush1.bf16.msra.mxu0 %v1964
    %1982 = vmatprep.subr.bf16.mxu0 0
    %1983 = vmatpush1.bf16.msra.mxu0 %v1965
    %1984 = vmatprep.subr.bf16.mxu0 0
    %1985 = vmatpush1.bf16.msra.mxu0 %v1966
    %1986 = vmatprep.subr.bf16.mxu0 0
    %1987 = vmatpush1.bf16.msra.mxu0 %v1967
    %1988 = vmatprep.subr.bf16.mxu0 0
    %1989 = vmatpush1.bf16.msra.mxu0 %v1968
    %1990 = vmatprep.subr.bf16.mxu0 0
    %1991 = vmatpush1.bf16.msra.mxu0 %v1969
    %1992 = vmatprep.subr.bf16.mxu0 0
    %1993 = vmatpush1.bf16.msra.mxu0 %v1970
    %1994 = vmatprep.subr.bf16.mxu0 0
    %1995 = vmatpush1.bf16.msra.mxu0 %v1971
    %1996 = vmatprep.subr.bf16.mxu0 0
    %1997 = vmatpush1.bf16.msra.mxu0 0
    %1998 = vmatprep.subr.bf16.mxu0 0
    %1999 = vmatpush1.bf16.msra.mxu0 0
    %2000 = vmatprep.subr.bf16.mxu0 0
    %2001 = vmatpush1.bf16.msra.mxu0 0
    %2002 = vmatprep.subr.bf16.mxu0 0
    %2003 = vmatpush1.bf16.msra.mxu0 0
    %2004 = vmatprep.subr.bf16.mxu0 0
    %2005 = vmatpush1.bf16.msra.mxu0 0
    %2006 = vmatprep.subr.bf16.mxu0 0
    %2007 = vmatpush1.bf16.msra.mxu0 0
    %2008 = vmatprep.subr.bf16.mxu0 0
    %2009 = vmatpush1.bf16.msra.mxu0 0
    %2010 = vmatprep.subr.bf16.mxu0 0
    %2011 = vmatpush1.bf16.msra.mxu0 0
    %2012 = vmatprep.mubr.bf16.mxu0 0
    %2013 = vmatmul.mubr.bf16.gmra.mrb[0].mxu0 0
    %v2014 = vpop.f32.mrb[0].mxu0
    %v2015 = vadd.f32 0.0, %v2014
    %v2016 = vpop.f32.mrb[0].mxu0
    %v2017 = vpop.f32.mrb[0].mxu0
    %v2018 = vpop.f32.mrb[0].mxu0
    %2019 = vdwg.mxu0
    %v2020 = vadd.f32 %v1915, %v2015
    %v2021 = vxor.u32 %v2020, 2147483648
    %v2022 = vmul.f32 %v2021, 1.442695
    %v2023 = vpow.pop %v2022
    %v2024 = vadd.f32 %v2023, 1.0
    %v2025 = vrcp.pop %v2024
    %v2026 = vmul.f32 1.0, %v2025
    %v2027 = vld [vmem:[#allocation2 + $0x10] sm:$0xff]
    %s2028 = scalar_lea.vmem [#allocation11], 128
    %v2029 = vld [vmem:[%s2028] sm:$0xf]
    %v2030 = vld [vmem:[%s2028 + $0x4] sm:$0xf]
    %v2031 = vld [vmem:[%s2028 + $0x8] sm:$0xf]
    %v2032 = vld [vmem:[%s2028 + $0xc] sm:$0xf]
    %v2033 = vld [vmem:[%s2028 + $0x10] sm:$0xf]
    %v2034 = vld [vmem:[%s2028 + $0x14] sm:$0xf]
    %v2035 = vld [vmem:[%s2028 + $0x18] sm:$0xf]
    %v2036 = vld [vmem:[%s2028 + $0x1c] sm:$0xf]
    %v2037 = vld [vmem:[%s2028 + $0x20] sm:$0xf]
    %v2038 = vld [vmem:[%s2028 + $0x24] sm:$0xf]
    %v2039 = vld [vmem:[%s2028 + $0x28] sm:$0xf]
    %v2040 = vld [vmem:[%s2028 + $0x2c] sm:$0xf]
    %v2041 = vld [vmem:[%s2028 + $0x30] sm:$0xf]
    %v2042 = vld [vmem:[%s2028 + $0x34] sm:$0xf]
    %v2043 = vld [vmem:[%s2028 + $0x38] sm:$0xf]
    %v2044 = vld [vmem:[%s2028 + $0x3c] sm:$0xf]
    %v2061 = vunpack.c.l.b16 %v2029
    %v2062 = vunpack.c.l.b16 %v2030
    %v2063 = vunpack.c.l.b16 %v2031
    %v2064 = vunpack.c.l.b16 %v2032
    %v2065 = vunpack.c.l.b16 %v2033
    %v2066 = vunpack.c.l.b16 %v2034
    %v2067 = vunpack.c.l.b16 %v2035
    %v2068 = vunpack.c.l.b16 %v2036
    %v2069 = vunpack.c.l.b16 %v2037
    %v2070 = vunpack.c.l.b16 %v2038
    %v2071 = vunpack.c.l.b16 %v2039
    %v2072 = vunpack.c.l.b16 %v2040
    %v2073 = vunpack.c.l.b16 %v2041
    %v2074 = vunpack.c.l.b16 %v2042
    %v2075 = vunpack.c.l.b16 %v2043
    %v2076 = vunpack.c.l.b16 %v2044
    %v2077 = vpack.c.b16 %v2062, %v2061
    %v2078 = vpack.c.b16 %v2064, %v2063
    %v2079 = vpack.c.b16 %v2066, %v2065
    %v2080 = vpack.c.b16 %v2068, %v2067
    %v2081 = vpack.c.b16 %v2070, %v2069
    %v2082 = vpack.c.b16 %v2072, %v2071
    %v2083 = vpack.c.b16 %v2074, %v2073
    %v2084 = vpack.c.b16 %v2076, %v2075
    %2093 = vmatprep.subr.bf16.mxu0 0
    %2094 = vmatpush1.bf16.msra.mxu0 %v2077
    %2095 = vmatprep.subr.bf16.mxu0 0
    %2096 = vmatpush1.bf16.msra.mxu0 %v2078
    %2097 = vmatprep.subr.bf16.mxu0 0
    %2098 = vmatpush1.bf16.msra.mxu0 %v2079
    %2099 = vmatprep.subr.bf16.mxu0 0
    %2100 = vmatpush1.bf16.msra.mxu0 %v2080
    %2101 = vmatprep.subr.bf16.mxu0 0
    %2102 = vmatpush1.bf16.msra.mxu0 %v2081
    %2103 = vmatprep.subr.bf16.mxu0 0
    %2104 = vmatpush1.bf16.msra.mxu0 %v2082
    %2105 = vmatprep.subr.bf16.mxu0 0
    %2106 = vmatpush1.bf16.msra.mxu0 %v2083
    %2107 = vmatprep.subr.bf16.mxu0 0
    %2108 = vmatpush1.bf16.msra.mxu0 %v2084
    %2109 = vmatprep.subr.bf16.mxu0 0
    %2110 = vmatpush1.bf16.msra.mxu0 0
    %2111 = vmatprep.subr.bf16.mxu0 0
    %2112 = vmatpush1.bf16.msra.mxu0 0
    %2113 = vmatprep.subr.bf16.mxu0 0
    %2114 = vmatpush1.bf16.msra.mxu0 0
    %2115 = vmatprep.subr.bf16.mxu0 0
    %2116 = vmatpush1.bf16.msra.mxu0 0
    %2117 = vmatprep.subr.bf16.mxu0 0
    %2118 = vmatpush1.bf16.msra.mxu0 0
    %2119 = vmatprep.subr.bf16.mxu0 0
    %2120 = vmatpush1.bf16.msra.mxu0 0
    %2121 = vmatprep.subr.bf16.mxu0 0
    %2122 = vmatpush1.bf16.msra.mxu0 0
    %2123 = vmatprep.subr.bf16.mxu0 0
    %2124 = vmatpush1.bf16.msra.mxu0 0
    %2125 = vmatprep.mubr.bf16.mxu0 0
    %2126 = vmatmul.mubr.bf16.gmra.mrb[0].mxu0 0
    %v2127 = vpop.f32.mrb[0].mxu0
    %v2128 = vadd.f32 0.0, %v2127
    %v2129 = vpop.f32.mrb[0].mxu0
    %v2130 = vpop.f32.mrb[0].mxu0
    %v2131 = vpop.f32.mrb[0].mxu0
    %2132 = vdwg.mxu0
    %v2133 = vadd.f32 %v2027, %v2128
    %v2134 = vtanh.pop %v2133
    %v2135 = vmul.f32 %v2026, %v2134
    %v2136 = vld [vmem:[#allocation2 + $0x8] sm:$0xff]
    %s2137 = scalar_lea.vmem [#allocation11], 64
    %v2138 = vld [vmem:[%s2137] sm:$0xf]
    %v2139 = vld [vmem:[%s2137 + $0x4] sm:$0xf]
    %v2140 = vld [vmem:[%s2137 + $0x8] sm:$0xf]
    %v2141 = vld [vmem:[%s2137 + $0xc] sm:$0xf]
    %v2142 = vld [vmem:[%s2137 + $0x10] sm:$0xf]
    %v2143 = vld [vmem:[%s2137 + $0x14] sm:$0xf]
    %v2144 = vld [vmem:[%s2137 + $0x18] sm:$0xf]
    %v2145 = vld [vmem:[%s2137 + $0x1c] sm:$0xf]
    %v2146 = vld [vmem:[%s2137 + $0x20] sm:$0xf]
    %v2147 = vld [vmem:[%s2137 + $0x24] sm:$0xf]
    %v2148 = vld [vmem:[%s2137 + $0x28] sm:$0xf]
    %v2149 = vld [vmem:[%s2137 + $0x2c] sm:$0xf]
    %v2150 = vld [vmem:[%s2137 + $0x30] sm:$0xf]
    %v2151 = vld [vmem:[%s2137 + $0x34] sm:$0xf]
    %v2152 = vld [vmem:[%s2137 + $0x38] sm:$0xf]
    %v2153 = vld [vmem:[%s2137 + $0x3c] sm:$0xf]
    %v2170 = vunpack.c.l.b16 %v2138
    %v2171 = vunpack.c.l.b16 %v2139
    %v2172 = vunpack.c.l.b16 %v2140
    %v2173 = vunpack.c.l.b16 %v2141
    %v2174 = vunpack.c.l.b16 %v2142
    %v2175 = vunpack.c.l.b16 %v2143
    %v2176 = vunpack.c.l.b16 %v2144
    %v2177 = vunpack.c.l.b16 %v2145
    %v2178 = vunpack.c.l.b16 %v2146
    %v2179 = vunpack.c.l.b16 %v2147
    %v2180 = vunpack.c.l.b16 %v2148
    %v2181 = vunpack.c.l.b16 %v2149
    %v2182 = vunpack.c.l.b16 %v2150
    %v2183 = vunpack.c.l.b16 %v2151
    %v2184 = vunpack.c.l.b16 %v2152
    %v2185 = vunpack.c.l.b16 %v2153
    %v2186 = vpack.c.b16 %v2171, %v2170
    %v2187 = vpack.c.b16 %v2173, %v2172
    %v2188 = vpack.c.b16 %v2175, %v2174
    %v2189 = vpack.c.b16 %v2177, %v2176
    %v2190 = vpack.c.b16 %v2179, %v2178
    %v2191 = vpack.c.b16 %v2181, %v2180
    %v2192 = vpack.c.b16 %v2183, %v2182
    %v2193 = vpack.c.b16 %v2185, %v2184
    %2202 = vmatprep.subr.bf16.mxu0 0
    %2203 = vmatpush1.bf16.msra.mxu0 %v2186
    %2204 = vmatprep.subr.bf16.mxu0 0
    %2205 = vmatpush1.bf16.msra.mxu0 %v2187
    %2206 = vmatprep.subr.bf16.mxu0 0
    %2207 = vmatpush1.bf16.msra.mxu0 %v2188
    %2208 = vmatprep.subr.bf16.mxu0 0
    %2209 = vmatpush1.bf16.msra.mxu0 %v2189
    %2210 = vmatprep.subr.bf16.mxu0 0
    %2211 = vmatpush1.bf16.msra.mxu0 %v2190
    %2212 = vmatprep.subr.bf16.mxu0 0
    %2213 = vmatpush1.bf16.msra.mxu0 %v2191
    %2214 = vmatprep.subr.bf16.mxu0 0
    %2215 = vmatpush1.bf16.msra.mxu0 %v2192
    %2216 = vmatprep.subr.bf16.mxu0 0
    %2217 = vmatpush1.bf16.msra.mxu0 %v2193
    %2218 = vmatprep.subr.bf16.mxu0 0
    %2219 = vmatpush1.bf16.msra.mxu0 0
    %2220 = vmatprep.subr.bf16.mxu0 0
    %2221 = vmatpush1.bf16.msra.mxu0 0
    %2222 = vmatprep.subr.bf16.mxu0 0
    %2223 = vmatpush1.bf16.msra.mxu0 0
    %2224 = vmatprep.subr.bf16.mxu0 0
    %2225 = vmatpush1.bf16.msra.mxu0 0
    %2226 = vmatprep.subr.bf16.mxu0 0
    %2227 = vmatpush1.bf16.msra.mxu0 0
    %2228 = vmatprep.subr.bf16.mxu0 0
    %2229 = vmatpush1.bf16.msra.mxu0 0
    %2230 = vmatprep.subr.bf16.mxu0 0
    %2231 = vmatpush1.bf16.msra.mxu0 0
    %2232 = vmatprep.subr.bf16.mxu0 0
    %2233 = vmatpush1.bf16.msra.mxu0 0
    %2234 = vmatprep.mubr.bf16.mxu0 0
    %2235 = vmatmul.mubr.bf16.gmra.mrb[0].mxu0 0
    %v2236 = vpop.f32.mrb[0].mxu0
    %v2237 = vadd.f32 0.0, %v2236
    %v2238 = vpop.f32.mrb[0].mxu0
    %v2239 = vpop.f32.mrb[0].mxu0
    %v2240 = vpop.f32.mrb[0].mxu0
    %2241 = vdwg.mxu0
    %v2242 = vadd.f32 %v2136, %v2237
    %v2243 = vxor.u32 %v2242, 2147483648
    %v2244 = vmul.f32 %v2243, 1.442695
    %v2245 = vpow.pop %v2244
    %v2246 = vadd.f32 %v2245, 1.0
    %v2247 = vrcp.pop %v2246
    %v2248 = vmul.f32 1.0, %v2247
    %v2249 = vmul.f32 %v2248, 0.0
    %v2250 = vadd.f32 %v2249, %v2135
    %v2251 = vld [vmem:[#allocation2 + $0x18] sm:$0xff]
    %s2252 = scalar_lea.vmem [#allocation11], 192
    %v2253 = vld [vmem:[%s2252] sm:$0xf]
    %v2254 = vld [vmem:[%s2252 + $0x4] sm:$0xf]
    %v2255 = vld [vmem:[%s2252 + $0x8] sm:$0xf]
    %v2256 = vld [vmem:[%s2252 + $0xc] sm:$0xf]
    %v2257 = vld [vmem:[%s2252 + $0x10] sm:$0xf]
    %v2258 = vld [vmem:[%s2252 + $0x14] sm:$0xf]
    %v2259 = vld [vmem:[%s2252 + $0x18] sm:$0xf]
    %v2260 = vld [vmem:[%s2252 + $0x1c] sm:$0xf]
    %v2261 = vld [vmem:[%s2252 + $0x20] sm:$0xf]
    %v2262 = vld [vmem:[%s2252 + $0x24] sm:$0xf]
    %v2263 = vld [vmem:[%s2252 + $0x28] sm:$0xf]
    %v2264 = vld [vmem:[%s2252 + $0x2c] sm:$0xf]
    %v2265 = vld [vmem:[%s2252 + $0x30] sm:$0xf]
    %v2266 = vld [vmem:[%s2252 + $0x34] sm:$0xf]
    %v2267 = vld [vmem:[%s2252 + $0x38] sm:$0xf]
    %v2268 = vld [vmem:[%s2252 + $0x3c] sm:$0xf]
    %v2285 = vunpack.c.l.b16 %v2253
    %v2286 = vunpack.c.l.b16 %v2254
    %v2287 = vunpack.c.l.b16 %v2255
    %v2288 = vunpack.c.l.b16 %v2256
    %v2289 = vunpack.c.l.b16 %v2257
    %v2290 = vunpack.c.l.b16 %v2258
    %v2291 = vunpack.c.l.b16 %v2259
    %v2292 = vunpack.c.l.b16 %v2260
    %v2293 = vunpack.c.l.b16 %v2261
    %v2294 = vunpack.c.l.b16 %v2262
    %v2295 = vunpack.c.l.b16 %v2263
    %v2296 = vunpack.c.l.b16 %v2264
    %v2297 = vunpack.c.l.b16 %v2265
    %v2298 = vunpack.c.l.b16 %v2266
    %v2299 = vunpack.c.l.b16 %v2267
    %v2300 = vunpack.c.l.b16 %v2268
    %v2301 = vpack.c.b16 %v2286, %v2285
    %v2302 = vpack.c.b16 %v2288, %v2287
    %v2303 = vpack.c.b16 %v2290, %v2289
    %v2304 = vpack.c.b16 %v2292, %v2291
    %v2305 = vpack.c.b16 %v2294, %v2293
    %v2306 = vpack.c.b16 %v2296, %v2295
    %v2307 = vpack.c.b16 %v2298, %v2297
    %v2308 = vpack.c.b16 %v2300, %v2299
    %2317 = vmatprep.subr.bf16.mxu0 0
    %2318 = vmatpush1.bf16.msra.mxu0 %v2301
    %2319 = vmatprep.subr.bf16.mxu0 0
    %2320 = vmatpush1.bf16.msra.mxu0 %v2302
    %2321 = vmatprep.subr.bf16.mxu0 0
    %2322 = vmatpush1.bf16.msra.mxu0 %v2303
    %2323 = vmatprep.subr.bf16.mxu0 0
    %2324 = vmatpush1.bf16.msra.mxu0 %v2304
    %2325 = vmatprep.subr.bf16.mxu0 0
    %2326 = vmatpush1.bf16.msra.mxu0 %v2305
    %2327 = vmatprep.subr.bf16.mxu0 0
    %2328 = vmatpush1.bf16.msra.mxu0 %v2306
    %2329 = vmatprep.subr.bf16.mxu0 0
    %2330 = vmatpush1.bf16.msra.mxu0 %v2307
    %2331 = vmatprep.subr.bf16.mxu0 0
    %2332 = vmatpush1.bf16.msra.mxu0 %v2308
    %2333 = vmatprep.subr.bf16.mxu0 0
    %2334 = vmatpush1.bf16.msra.mxu0 0
    %2335 = vmatprep.subr.bf16.mxu0 0
    %2336 = vmatpush1.bf16.msra.mxu0 0
    %2337 = vmatprep.subr.bf16.mxu0 0
    %2338 = vmatpush1.bf16.msra.mxu0 0
    %2339 = vmatprep.subr.bf16.mxu0 0
    %2340 = vmatpush1.bf16.msra.mxu0 0
    %2341 = vmatprep.subr.bf16.mxu0 0
    %2342 = vmatpush1.bf16.msra.mxu0 0
    %2343 = vmatprep.subr.bf16.mxu0 0
    %2344 = vmatpush1.bf16.msra.mxu0 0
    %2345 = vmatprep.subr.bf16.mxu0 0
    %2346 = vmatpush1.bf16.msra.mxu0 0
    %2347 = vmatprep.subr.bf16.mxu0 0
    %2348 = vmatpush1.bf16.msra.mxu0 0
    %2349 = vmatprep.mubr.bf16.mxu0 0
    %2350 = vmatmul.mubr.bf16.gmra.mrb[0].mxu0 0
    %v2351 = vpop.f32.mrb[0].mxu0
    %v2352 = vadd.f32 0.0, %v2351
    %v2353 = vpop.f32.mrb[0].mxu0
    %v2354 = vpop.f32.mrb[0].mxu0
    %v2355 = vpop.f32.mrb[0].mxu0
    %2356 = vdwg.mxu0
    %v2357 = vadd.f32 %v2251, %v2352
    %v2358 = vxor.u32 %v2357, 2147483648
    %v2359 = vmul.f32 %v2358, 1.442695
    %v2360 = vpow.pop %v2359
    %v2361 = vadd.f32 %v2360, 1.0
    %v2362 = vrcp.pop %v2361
    %v2363 = vmul.f32 1.0, %v2362
    %v2364 = vtanh.pop %v2250
    %v2365 = vmul.f32 %v2363, %v2364
    %v2366 = vpack.c.bf16 %v2365, %v2365
    %v2367 = vld [vmem:[#allocation2 + $0x20] sm:$0xff]
    %2368 = vmatprep.subr.bf16.mxu0 0
    %2369 = vmatpush1.bf16.msra.mxu0 %v1964
    %2370 = vmatprep.subr.bf16.mxu0 0
    %2371 = vmatpush1.bf16.msra.mxu0 %v1965
    %2372 = vmatprep.subr.bf16.mxu0 0
    %2373 = vmatpush1.bf16.msra.mxu0 %v1966
    %2374 = vmatprep.subr.bf16.mxu0 0
    %2375 = vmatpush1.bf16.msra.mxu0 %v1967
    %2376 = vmatprep.subr.bf16.mxu0 0
    %2377 = vmatpush1.bf16.msra.mxu0 %v1968
    %2378 = vmatprep.subr.bf16.mxu0 0
    %2379 = vmatpush1.bf16.msra.mxu0 %v1969
    %2380 = vmatprep.subr.bf16.mxu0 0
    %2381 = vmatpush1.bf16.msra.mxu0 %v1970
    %2382 = vmatprep.subr.bf16.mxu0 0
    %2383 = vmatpush1.bf16.msra.mxu0 %v1971
    %2384 = vmatprep.subr.bf16.mxu0 0
    %2385 = vmatpush1.bf16.msra.mxu0 0
    %2386 = vmatprep.subr.bf16.mxu0 0
    %2387 = vmatpush1.bf16.msra.mxu0 0
    %2388 = vmatprep.subr.bf16.mxu0 0
    %2389 = vmatpush1.bf16.msra.mxu0 0
    %2390 = vmatprep.subr.bf16.mxu0 0
    %2391 = vmatpush1.bf16.msra.mxu0 0
    %2392 = vmatprep.subr.bf16.mxu0 0
    %2393 = vmatpush1.bf16.msra.mxu0 0
    %2394 = vmatprep.subr.bf16.mxu0 0
    %2395 = vmatpush1.bf16.msra.mxu0 0
    %2396 = vmatprep.subr.bf16.mxu0 0
    %2397 = vmatpush1.bf16.msra.mxu0 0
    %2398 = vmatprep.subr.bf16.mxu0 0
    %2399 = vmatpush1.bf16.msra.mxu0 0
    %2400 = vmatprep.mubr.bf16.mxu0 0
    %2401 = vmatmul.mubr.bf16.gmra.mrb[0].mxu0 %v2366
    %v2402 = vpop.f32.mrb[0].mxu0
    %v2403 = vadd.f32 0.0, %v2402
    %v2404 = vpop.f32.mrb[0].mxu0
    %v2405 = vpop.f32.mrb[0].mxu0
    %v2406 = vpop.f32.mrb[0].mxu0
    %2407 = vdwg.mxu0
    %v2408 = vadd.f32 %v2367, %v2403
    %v2409 = vxor.u32 %v2408, 2147483648
    %v2410 = vmul.f32 %v2409, 1.442695
    %v2411 = vpow.pop %v2410
    %v2412 = vadd.f32 %v2411, 1.0
    %v2413 = vrcp.pop %v2412
    %v2414 = vmul.f32 1.0, %v2413
    %v2415 = vld [vmem:[#allocation2 + $0x30] sm:$0xff]
    %2416 = vmatprep.subr.bf16.mxu0 0
    %2417 = vmatpush1.bf16.msra.mxu0 %v2077
    %2418 = vmatprep.subr.bf16.mxu0 0
    %2419 = vmatpush1.bf16.msra.mxu0 %v2078
    %2420 = vmatprep.subr.bf16.mxu0 0
    %2421 = vmatpush1.bf16.msra.mxu0 %v2079
    %2422 = vmatprep.subr.bf16.mxu0 0
    %2423 = vmatpush1.bf16.msra.mxu0 %v2080
    %2424 = vmatprep.subr.bf16.mxu0 0
    %2425 = vmatpush1.bf16.msra.mxu0 %v2081
    %2426 = vmatprep.subr.bf16.mxu0 0
    %2427 = vmatpush1.bf16.msra.mxu0 %v2082
    %2428 = vmatprep.subr.bf16.mxu0 0
    %2429 = vmatpush1.bf16.msra.mxu0 %v2083
    %2430 = vmatprep.subr.bf16.mxu0 0
    %2431 = vmatpush1.bf16.msra.mxu0 %v2084
    %2432 = vmatprep.subr.bf16.mxu0 0
    %2433 = vmatpush1.bf16.msra.mxu0 0
    %2434 = vmatprep.subr.bf16.mxu0 0
    %2435 = vmatpush1.bf16.msra.mxu0 0
    %2436 = vmatprep.subr.bf16.mxu0 0
    %2437 = vmatpush1.bf16.msra.mxu0 0
    %2438 = vmatprep.subr.bf16.mxu0 0
    %2439 = vmatpush1.bf16.msra.mxu0 0
    %2440 = vmatprep.subr.bf16.mxu0 0
    %2441 = vmatpush1.bf16.msra.mxu0 0
    %2442 = vmatprep.subr.bf16.mxu0 0
    %2443 = vmatpush1.bf16.msra.mxu0 0
    %2444 = vmatprep.subr.bf16.mxu0 0
    %2445 = vmatpush1.bf16.msra.mxu0 0
    %2446 = vmatprep.subr.bf16.mxu0 0
    %2447 = vmatpush1.bf16.msra.mxu0 0
    %2448 = vmatprep.mubr.bf16.mxu0 0
    %2449 = vmatmul.mubr.bf16.gmra.mrb[0].mxu0 %v2366
    %v2450 = vpop.f32.mrb[0].mxu0
    %v2451 = vadd.f32 0.0, %v2450
    %v2452 = vpop.f32.mrb[0].mxu0
    %v2453 = vpop.f32.mrb[0].mxu0
    %v2454 = vpop.f32.mrb[0].mxu0
    %2455 = vdwg.mxu0
    %v2456 = vadd.f32 %v2415, %v2451
    %v2457 = vtanh.pop %v2456
    %v2458 = vmul.f32 %v2414, %v2457
    %v2459 = vld [vmem:[#allocation2 + $0x28] sm:$0xff]
    %2460 = vmatprep.subr.bf16.mxu0 0
    %2461 = vmatpush1.bf16.msra.mxu0 %v2186
    %2462 = vmatprep.subr.bf16.mxu0 0
    %2463 = vmatpush1.bf16.msra.mxu0 %v2187
    %2464 = vmatprep.subr.bf16.mxu0 0
    %2465 = vmatpush1.bf16.msra.mxu0 %v2188
    %2466 = vmatprep.subr.bf16.mxu0 0
    %2467 = vmatpush1.bf16.msra.mxu0 %v2189
    %2468 = vmatprep.subr.bf16.mxu0 0
    %2469 = vmatpush1.bf16.msra.mxu0 %v2190
    %2470 = vmatprep.subr.bf16.mxu0 0
    %2471 = vmatpush1.bf16.msra.mxu0 %v2191
    %2472 = vmatprep.subr.bf16.mxu0 0
    %2473 = vmatpush1.bf16.msra.mxu0 %v2192
    %2474 = vmatprep.subr.bf16.mxu0 0
    %2475 = vmatpush1.bf16.msra.mxu0 %v2193
    %2476 = vmatprep.subr.bf16.mxu0 0
    %2477 = vmatpush1.bf16.msra.mxu0 0
    %2478 = vmatprep.subr.bf16.mxu0 0
    %2479 = vmatpush1.bf16.msra.mxu0 0
    %2480 = vmatprep.subr.bf16.mxu0 0
    %2481 = vmatpush1.bf16.msra.mxu0 0
    %2482 = vmatprep.subr.bf16.mxu0 0
    %2483 = vmatpush1.bf16.msra.mxu0 0
    %2484 = vmatprep.subr.bf16.mxu0 0
    %2485 = vmatpush1.bf16.msra.mxu0 0
    %2486 = vmatprep.subr.bf16.mxu0 0
    %2487 = vmatpush1.bf16.msra.mxu0 0
    %2488 = vmatprep.subr.bf16.mxu0 0
    %2489 = vmatpush1.bf16.msra.mxu0 0
    %2490 = vmatprep.subr.bf16.mxu0 0
    %2491 = vmatpush1.bf16.msra.mxu0 0
    %2492 = vmatprep.mubr.bf16.mxu0 0
    %2493 = vmatmul.mubr.bf16.gmra.mrb[0].mxu0 %v2366
    %v2494 = vpop.f32.mrb[0].mxu0
    %v2495 = vadd.f32 0.0, %v2494
    %v2496 = vpop.f32.mrb[0].mxu0
    %v2497 = vpop.f32.mrb[0].mxu0
    %v2498 = vpop.f32.mrb[0].mxu0
    %2499 = vdwg.mxu0
    %v2500 = vadd.f32 %v2459, %v2495
    %v2501 = vxor.u32 %v2500, 2147483648
    %v2502 = vmul.f32 %v2501, 1.442695
    %v2503 = vpow.pop %v2502
    %v2504 = vadd.f32 %v2503, 1.0
    %v2505 = vrcp.pop %v2504
    %v2506 = vmul.f32 1.0, %v2505
    %v2507 = vmul.f32 %v2506, %v2250
    %v2508 = vadd.f32 %v2507, %v2458
    %v2509 = vld [vmem:[#allocation2 + $0x38] sm:$0xff]
    %2510 = vmatprep.subr.bf16.mxu0 0
    %2511 = vmatpush1.bf16.msra.mxu0 %v2301
    %2512 = vmatprep.subr.bf16.mxu0 0
    %2513 = vmatpush1.bf16.msra.mxu0 %v2302
    %2514 = vmatprep.subr.bf16.mxu0 0
    %2515 = vmatpush1.bf16.msra.mxu0 %v2303
    %2516 = vmatprep.subr.bf16.mxu0 0
    %2517 = vmatpush1.bf16.msra.mxu0 %v2304
    %2518 = vmatprep.subr.bf16.mxu0 0
    %2519 = vmatpush1.bf16.msra.mxu0 %v2305
    %2520 = vmatprep.subr.bf16.mxu0 0
    %2521 = vmatpush1.bf16.msra.mxu0 %v2306
    %2522 = vmatprep.subr.bf16.mxu0 0
    %2523 = vmatpush1.bf16.msra.mxu0 %v2307
    %2524 = vmatprep.subr.bf16.mxu0 0
    %2525 = vmatpush1.bf16.msra.mxu0 %v2308
    %2526 = vmatprep.subr.bf16.mxu0 0
    %2527 = vmatpush1.bf16.msra.mxu0 0
    %2528 = vmatprep.subr.bf16.mxu0 0
    %2529 = vmatpush1.bf16.msra.mxu0 0
    %2530 = vmatprep.subr.bf16.mxu0 0
    %2531 = vmatpush1.bf16.msra.mxu0 0
    %2532 = vmatprep.subr.bf16.mxu0 0
    %2533 = vmatpush1.bf16.msra.mxu0 0
    %2534 = vmatprep.subr.bf16.mxu0 0
    %2535 = vmatpush1.bf16.msra.mxu0 0
    %2536 = vmatprep.subr.bf16.mxu0 0
    %2537 = vmatpush1.bf16.msra.mxu0 0
    %2538 = vmatprep.subr.bf16.mxu0 0
    %2539 = vmatpush1.bf16.msra.mxu0 0
    %2540 = vmatprep.subr.bf16.mxu0 0
    %2541 = vmatpush1.bf16.msra.mxu0 0
    %2542 = vmatprep.mubr.bf16.mxu0 0
    %2543 = vmatmul.mubr.bf16.gmra.mrb[0].mxu0 %v2366
    %v2544 = vpop.f32.mrb[0].mxu0
    %v2545 = vadd.f32 0.0, %v2544
    %v2546 = vpop.f32.mrb[0].mxu0
    %v2547 = vpop.f32.mrb[0].mxu0
    %v2548 = vpop.f32.mrb[0].mxu0
    %2549 = vdwg.mxu0
    %v2550 = vadd.f32 %v2509, %v2545
    %v2551 = vxor.u32 %v2550, 2147483648
    %v2552 = vmul.f32 %v2551, 1.442695
    %v2553 = vpow.pop %v2552
    %v2554 = vadd.f32 %v2553, 1.0
    %v2555 = vrcp.pop %v2554
    %v2556 = vmul.f32 1.0, %v2555
    %v2557 = vtanh.pop %v2508
    %v2558 = vmul.f32 %v2556, %v2557
    %v2559 = vpack.c.bf16 %v2558, %v2558
    %v2560 = vld [vmem:[#allocation2 + $0x40] sm:$0xff]
    %2561 = vmatprep.subr.bf16.mxu0 0
    %2562 = vmatpush1.bf16.msra.mxu0 %v1964
    %2563 = vmatprep.subr.bf16.mxu0 0
    %2564 = vmatpush1.bf16.msra.mxu0 %v1965
    %2565 = vmatprep.subr.bf16.mxu0 0
    %2566 = vmatpush1.bf16.msra.mxu0 %v1966
    %2567 = vmatprep.subr.bf16.mxu0 0
    %2568 = vmatpush1.bf16.msra.mxu0 %v1967
    %2569 = vmatprep.subr.bf16.mxu0 0
    %2570 = vmatpush1.bf16.msra.mxu0 %v1968
    %2571 = vmatprep.subr.bf16.mxu0 0
    %2572 = vmatpush1.bf16.msra.mxu0 %v1969
    %2573 = vmatprep.subr.bf16.mxu0 0
    %2574 = vmatpush1.bf16.msra.mxu0 %v1970
    %2575 = vmatprep.subr.bf16.mxu0 0
    %2576 = vmatpush1.bf16.msra.mxu0 %v1971
    %2577 = vmatprep.subr.bf16.mxu0 0
    %2578 = vmatpush1.bf16.msra.mxu0 0
    %2579 = vmatprep.subr.bf16.mxu0 0
    %2580 = vmatpush1.bf16.msra.mxu0 0
    %2581 = vmatprep.subr.bf16.mxu0 0
    %2582 = vmatpush1.bf16.msra.mxu0 0
    %2583 = vmatprep.subr.bf16.mxu0 0
    %2584 = vmatpush1.bf16.msra.mxu0 0
    %2585 = vmatprep.subr.bf16.mxu0 0
    %2586 = vmatpush1.bf16.msra.mxu0 0
    %2587 = vmatprep.subr.bf16.mxu0 0
    %2588 = vmatpush1.bf16.msra.mxu0 0
    %2589 = vmatprep.subr.bf16.mxu0 0
    %2590 = vmatpush1.bf16.msra.mxu0 0
    %2591 = vmatprep.subr.bf16.mxu0 0
    %2592 = vmatpush1.bf16.msra.mxu0 0
    %2593 = vmatprep.mubr.bf16.mxu0 0
    %2594 = vmatmul.mubr.bf16.gmra.mrb[0].mxu0 %v2559
    %v2595 = vpop.f32.mrb[0].mxu0
    %v2596 = vadd.f32 0.0, %v2595
    %v2597 = vpop.f32.mrb[0].mxu0
    %v2598 = vpop.f32.mrb[0].mxu0
    %v2599 = vpop.f32.mrb[0].mxu0
    %2600 = vdwg.mxu0
    %v2601 = vadd.f32 %v2560, %v2596
    %v2602 = vxor.u32 %v2601, 2147483648
    %v2603 = vmul.f32 %v2602, 1.442695
    %v2604 = vpow.pop %v2603
    %v2605 = vadd.f32 %v2604, 1.0
    %v2606 = vrcp.pop %v2605
    %v2607 = vmul.f32 1.0, %v2606
    %v2608 = vld [vmem:[#allocation2 + $0x50] sm:$0xff]
    %2609 = vmatprep.subr.bf16.mxu0 0
    %2610 = vmatpush1.bf16.msra.mxu0 %v2077
    %2611 = vmatprep.subr.bf16.mxu0 0
    %2612 = vmatpush1.bf16.msra.mxu0 %v2078
    %2613 = vmatprep.subr.bf16.mxu0 0
    %2614 = vmatpush1.bf16.msra.mxu0 %v2079
    %2615 = vmatprep.subr.bf16.mxu0 0
    %2616 = vmatpush1.bf16.msra.mxu0 %v2080
    %2617 = vmatprep.subr.bf16.mxu0 0
    %2618 = vmatpush1.bf16.msra.mxu0 %v2081
    %2619 = vmatprep.subr.bf16.mxu0 0
    %2620 = vmatpush1.bf16.msra.mxu0 %v2082
    %2621 = vmatprep.subr.bf16.mxu0 0
    %2622 = vmatpush1.bf16.msra.mxu0 %v2083
    %2623 = vmatprep.subr.bf16.mxu0 0
    %2624 = vmatpush1.bf16.msra.mxu0 %v2084
    %2625 = vmatprep.subr.bf16.mxu0 0
    %2626 = vmatpush1.bf16.msra.mxu0 0
    %2627 = vmatprep.subr.bf16.mxu0 0
    %2628 = vmatpush1.bf16.msra.mxu0 0
    %2629 = vmatprep.subr.bf16.mxu0 0
    %2630 = vmatpush1.bf16.msra.mxu0 0
    %2631 = vmatprep.subr.bf16.mxu0 0
    %2632 = vmatpush1.bf16.msra.mxu0 0
    %2633 = vmatprep.subr.bf16.mxu0 0
    %2634 = vmatpush1.bf16.msra.mxu0 0
    %2635 = vmatprep.subr.bf16.mxu0 0
    %2636 = vmatpush1.bf16.msra.mxu0 0
    %2637 = vmatprep.subr.bf16.mxu0 0
    %2638 = vmatpush1.bf16.msra.mxu0 0
    %2639 = vmatprep.subr.bf16.mxu0 0
    %2640 = vmatpush1.bf16.msra.mxu0 0
    %2641 = vmatprep.mubr.bf16.mxu0 0
    %2642 = vmatmul.mubr.bf16.gmra.mrb[0].mxu0 %v2559
    %v2643 = vpop.f32.mrb[0].mxu0
    %v2644 = vadd.f32 0.0, %v2643
    %v2645 = vpop.f32.mrb[0].mxu0
    %v2646 = vpop.f32.mrb[0].mxu0
    %v2647 = vpop.f32.mrb[0].mxu0
    %2648 = vdwg.mxu0
    %v2649 = vadd.f32 %v2608, %v2644
    %v2650 = vtanh.pop %v2649
    %v2651 = vmul.f32 %v2607, %v2650
    %v2652 = vld [vmem:[#allocation2 + $0x48] sm:$0xff]
    %2653 = vmatprep.subr.bf16.mxu0 0
    %2654 = vmatpush1.bf16.msra.mxu0 %v2186
    %2655 = vmatprep.subr.bf16.mxu0 0
    %2656 = vmatpush1.bf16.msra.mxu0 %v2187
    %2657 = vmatprep.subr.bf16.mxu0 0
    %2658 = vmatpush1.bf16.msra.mxu0 %v2188
    %2659 = vmatprep.subr.bf16.mxu0 0
    %2660 = vmatpush1.bf16.msra.mxu0 %v2189
    %2661 = vmatprep.subr.bf16.mxu0 0
    %2662 = vmatpush1.bf16.msra.mxu0 %v2190
    %2663 = vmatprep.subr.bf16.mxu0 0
    %2664 = vmatpush1.bf16.msra.mxu0 %v2191
    %2665 = vmatprep.subr.bf16.mxu0 0
    %2666 = vmatpush1.bf16.msra.mxu0 %v2192
    %2667 = vmatprep.subr.bf16.mxu0 0
    %2668 = vmatpush1.bf16.msra.mxu0 %v2193
    %2669 = vmatprep.subr.bf16.mxu0 0
    %2670 = vmatpush1.bf16.msra.mxu0 0
    %2671 = vmatprep.subr.bf16.mxu0 0
    %2672 = vmatpush1.bf16.msra.mxu0 0
    %2673 = vmatprep.subr.bf16.mxu0 0
    %2674 = vmatpush1.bf16.msra.mxu0 0
    %2675 = vmatprep.subr.bf16.mxu0 0
    %2676 = vmatpush1.bf16.msra.mxu0 0
    %2677 = vmatprep.subr.bf16.mxu0 0
    %2678 = vmatpush1.bf16.msra.mxu0 0
    %2679 = vmatprep.subr.bf16.mxu0 0
    %2680 = vmatpush1.bf16.msra.mxu0 0
    %2681 = vmatprep.subr.bf16.mxu0 0
    %2682 = vmatpush1.bf16.msra.mxu0 0
    %2683 = vmatprep.subr.bf16.mxu0 0
    %2684 = vmatpush1.bf16.msra.mxu0 0
    %2685 = vmatprep.mubr.bf16.mxu0 0
    %2686 = vmatmul.mubr.bf16.gmra.mrb[0].mxu0 %v2559
    %v2687 = vpop.f32.mrb[0].mxu0
    %v2688 = vadd.f32 0.0, %v2687
    %v2689 = vpop.f32.mrb[0].mxu0
    %v2690 = vpop.f32.mrb[0].mxu0
    %v2691 = vpop.f32.mrb[0].mxu0
    %2692 = vdwg.mxu0
    %v2693 = vadd.f32 %v2652, %v2688
    %v2694 = vxor.u32 %v2693, 2147483648
    %v2695 = vmul.f32 %v2694, 1.442695
    %v2696 = vpow.pop %v2695
    %v2697 = vadd.f32 %v2696, 1.0
    %v2698 = vrcp.pop %v2697
    %v2699 = vmul.f32 1.0, %v2698
    %v2700 = vmul.f32 %v2699, %v2508
    %v2701 = vadd.f32 %v2700, %v2651
    %v2702 = vld [vmem:[#allocation2 + $0x58] sm:$0xff]
    %2703 = vmatprep.subr.bf16.mxu0 0
    %2704 = vmatpush1.bf16.msra.mxu0 %v2301
    %2705 = vmatprep.subr.bf16.mxu0 0
    %2706 = vmatpush1.bf16.msra.mxu0 %v2302
    %2707 = vmatprep.subr.bf16.mxu0 0
    %2708 = vmatpush1.bf16.msra.mxu0 %v2303
    %2709 = vmatprep.subr.bf16.mxu0 0
    %2710 = vmatpush1.bf16.msra.mxu0 %v2304
    %2711 = vmatprep.subr.bf16.mxu0 0
    %2712 = vmatpush1.bf16.msra.mxu0 %v2305
    %2713 = vmatprep.subr.bf16.mxu0 0
    %2714 = vmatpush1.bf16.msra.mxu0 %v2306
    %2715 = vmatprep.subr.bf16.mxu0 0
    %2716 = vmatpush1.bf16.msra.mxu0 %v2307
    %2717 = vmatprep.subr.bf16.mxu0 0
    %2718 = vmatpush1.bf16.msra.mxu0 %v2308
    %2719 = vmatprep.subr.bf16.mxu0 0
    %2720 = vmatpush1.bf16.msra.mxu0 0
    %2721 = vmatprep.subr.bf16.mxu0 0
    %2722 = vmatpush1.bf16.msra.mxu0 0
    %2723 = vmatprep.subr.bf16.mxu0 0
    %2724 = vmatpush1.bf16.msra.mxu0 0
    %2725 = vmatprep.subr.bf16.mxu0 0
    %2726 = vmatpush1.bf16.msra.mxu0 0
    %2727 = vmatprep.subr.bf16.mxu0 0
    %2728 = vmatpush1.bf16.msra.mxu0 0
    %2729 = vmatprep.subr.bf16.mxu0 0
    %2730 = vmatpush1.bf16.msra.mxu0 0
    %2731 = vmatprep.subr.bf16.mxu0 0
    %2732 = vmatpush1.bf16.msra.mxu0 0
    %2733 = vmatprep.subr.bf16.mxu0 0
    %2734 = vmatpush1.bf16.msra.mxu0 0
    %2735 = vmatprep.mubr.bf16.mxu0 0
    %2736 = vmatmul.mubr.bf16.gmra.mrb[0].mxu0 %v2559
    %v2737 = vpop.f32.mrb[0].mxu0
    %v2738 = vadd.f32 0.0, %v2737
    %v2739 = vpop.f32.mrb[0].mxu0
    %v2740 = vpop.f32.mrb[0].mxu0
    %v2741 = vpop.f32.mrb[0].mxu0
    %2742 = vdwg.mxu0
    %v2743 = vadd.f32 %v2702, %v2738
    %v2744 = vxor.u32 %v2743, 2147483648
    %v2745 = vmul.f32 %v2744, 1.442695
    %v2746 = vpow.pop %v2745
    %v2747 = vadd.f32 %v2746, 1.0
    %v2748 = vrcp.pop %v2747
    %v2749 = vmul.f32 1.0, %v2748
    %v2750 = vtanh.pop %v2701
    %v2751 = vmul.f32 %v2749, %v2750
    %v2752 = vpack.c.bf16 %v2751, %v2751
    %v2753 = vld [vmem:[#allocation2 + $0x60] sm:$0xff]
    %2754 = vmatprep.subr.bf16.mxu0 0
    %2755 = vmatpush1.bf16.msra.mxu0 %v1964
    %2756 = vmatprep.subr.bf16.mxu0 0
    %2757 = vmatpush1.bf16.msra.mxu0 %v1965
    %2758 = vmatprep.subr.bf16.mxu0 0
    %2759 = vmatpush1.bf16.msra.mxu0 %v1966
    %2760 = vmatprep.subr.bf16.mxu0 0
    %2761 = vmatpush1.bf16.msra.mxu0 %v1967
    %2762 = vmatprep.subr.bf16.mxu0 0
    %2763 = vmatpush1.bf16.msra.mxu0 %v1968
    %2764 = vmatprep.subr.bf16.mxu0 0
    %2765 = vmatpush1.bf16.msra.mxu0 %v1969
    %2766 = vmatprep.subr.bf16.mxu0 0
    %2767 = vmatpush1.bf16.msra.mxu0 %v1970
    %2768 = vmatprep.subr.bf16.mxu0 0
    %2769 = vmatpush1.bf16.msra.mxu0 %v1971
    %2770 = vmatprep.subr.bf16.mxu0 0
    %2771 = vmatpush1.bf16.msra.mxu0 0
    %2772 = vmatprep.subr.bf16.mxu0 0
    %2773 = vmatpush1.bf16.msra.mxu0 0
    %2774 = vmatprep.subr.bf16.mxu0 0
    %2775 = vmatpush1.bf16.msra.mxu0 0
    %2776 = vmatprep.subr.bf16.mxu0 0
    %2777 = vmatpush1.bf16.msra.mxu0 0
    %2778 = vmatprep.subr.bf16.mxu0 0
    %2779 = vmatpush1.bf16.msra.mxu0 0
    %2780 = vmatprep.subr.bf16.mxu0 0
    %2781 = vmatpush1.bf16.msra.mxu0 0
    %2782 = vmatprep.subr.bf16.mxu0 0
    %2783 = vmatpush1.bf16.msra.mxu0 0
    %2784 = vmatprep.subr.bf16.mxu0 0
    %2785 = vmatpush1.bf16.msra.mxu0 0
    %2786 = vmatprep.mubr.bf16.mxu0 0
    %2787 = vmatmul.mubr.bf16.gmra.mrb[0].mxu0 %v2752
    %v2788 = vpop.f32.mrb[0].mxu0
    %v2789 = vadd.f32 0.0, %v2788
    %v2790 = vpop.f32.mrb[0].mxu0
    %v2791 = vpop.f32.mrb[0].mxu0
    %v2792 = vpop.f32.mrb[0].mxu0
    %2793 = vdwg.mxu0
    %v2794 = vadd.f32 %v2753, %v2789
    %v2795 = vxor.u32 %v2794, 2147483648
    %v2796 = vmul.f32 %v2795, 1.442695
    %v2797 = vpow.pop %v2796
    %v2798 = vadd.f32 %v2797, 1.0
    %v2799 = vrcp.pop %v2798
    %v2800 = vmul.f32 1.0, %v2799
    %v2801 = vld [vmem:[#allocation2 + $0x70] sm:$0xff]
    %2802 = vmatprep.subr.bf16.mxu0 0
    %2803 = vmatpush1.bf16.msra.mxu0 %v2077
    %2804 = vmatprep.subr.bf16.mxu0 0
    %2805 = vmatpush1.bf16.msra.mxu0 %v2078
    %2806 = vmatprep.subr.bf16.mxu0 0
    %2807 = vmatpush1.bf16.msra.mxu0 %v2079
    %2808 = vmatprep.subr.bf16.mxu0 0
    %2809 = vmatpush1.bf16.msra.mxu0 %v2080
    %2810 = vmatprep.subr.bf16.mxu0 0
    %2811 = vmatpush1.bf16.msra.mxu0 %v2081
    %2812 = vmatprep.subr.bf16.mxu0 0
    %2813 = vmatpush1.bf16.msra.mxu0 %v2082
    %2814 = vmatprep.subr.bf16.mxu0 0
    %2815 = vmatpush1.bf16.msra.mxu0 %v2083
    %2816 = vmatprep.subr.bf16.mxu0 0
    %2817 = vmatpush1.bf16.msra.mxu0 %v2084
    %2818 = vmatprep.subr.bf16.mxu0 0
    %2819 = vmatpush1.bf16.msra.mxu0 0
    %2820 = vmatprep.subr.bf16.mxu0 0
    %2821 = vmatpush1.bf16.msra.mxu0 0
    %2822 = vmatprep.subr.bf16.mxu0 0
    %2823 = vmatpush1.bf16.msra.mxu0 0
    %2824 = vmatprep.subr.bf16.mxu0 0
    %2825 = vmatpush1.bf16.msra.mxu0 0
    %2826 = vmatprep.subr.bf16.mxu0 0
    %2827 = vmatpush1.bf16.msra.mxu0 0
    %2828 = vmatprep.subr.bf16.mxu0 0
    %2829 = vmatpush1.bf16.msra.mxu0 0
    %2830 = vmatprep.subr.bf16.mxu0 0
    %2831 = vmatpush1.bf16.msra.mxu0 0
    %2832 = vmatprep.subr.bf16.mxu0 0
    %2833 = vmatpush1.bf16.msra.mxu0 0
    %2834 = vmatprep.mubr.bf16.mxu0 0
    %2835 = vmatmul.mubr.bf16.gmra.mrb[0].mxu0 %v2752
    %v2836 = vpop.f32.mrb[0].mxu0
    %v2837 = vadd.f32 0.0, %v2836
    %v2838 = vpop.f32.mrb[0].mxu0
    %v2839 = vpop.f32.mrb[0].mxu0
    %v2840 = vpop.f32.mrb[0].mxu0
    %2841 = vdwg.mxu0
    %v2842 = vadd.f32 %v2801, %v2837
    %v2843 = vtanh.pop %v2842
    %v2844 = vmul.f32 %v2800, %v2843
    %v2845 = vld [vmem:[#allocation2 + $0x68] sm:$0xff]
    %2846 = vmatprep.subr.bf16.mxu0 0
    %2847 = vmatpush1.bf16.msra.mxu0 %v2186
    %2848 = vmatprep.subr.bf16.mxu0 0
    %2849 = vmatpush1.bf16.msra.mxu0 %v2187
    %2850 = vmatprep.subr.bf16.mxu0 0
    %2851 = vmatpush1.bf16.msra.mxu0 %v2188
    %2852 = vmatprep.subr.bf16.mxu0 0
    %2853 = vmatpush1.bf16.msra.mxu0 %v2189
    %2854 = vmatprep.subr.bf16.mxu0 0
    %2855 = vmatpush1.bf16.msra.mxu0 %v2190
    %2856 = vmatprep.subr.bf16.mxu0 0
    %2857 = vmatpush1.bf16.msra.mxu0 %v2191
    %2858 = vmatprep.subr.bf16.mxu0 0
    %2859 = vmatpush1.bf16.msra.mxu0 %v2192
    %2860 = vmatprep.subr.bf16.mxu0 0
    %2861 = vmatpush1.bf16.msra.mxu0 %v2193
    %2862 = vmatprep.subr.bf16.mxu0 0
    %2863 = vmatpush1.bf16.msra.mxu0 0
    %2864 = vmatprep.subr.bf16.mxu0 0
    %2865 = vmatpush1.bf16.msra.mxu0 0
    %2866 = vmatprep.subr.bf16.mxu0 0
    %2867 = vmatpush1.bf16.msra.mxu0 0
    %2868 = vmatprep.subr.bf16.mxu0 0
    %2869 = vmatpush1.bf16.msra.mxu0 0
    %2870 = vmatprep.subr.bf16.mxu0 0
    %2871 = vmatpush1.bf16.msra.mxu0 0
    %2872 = vmatprep.subr.bf16.mxu0 0
    %2873 = vmatpush1.bf16.msra.mxu0 0
    %2874 = vmatprep.subr.bf16.mxu0 0
    %2875 = vmatpush1.bf16.msra.mxu0 0
    %2876 = vmatprep.subr.bf16.mxu0 0
    %2877 = vmatpush1.bf16.msra.mxu0 0
    %2878 = vmatprep.mubr.bf16.mxu0 0
    %2879 = vmatmul.mubr.bf16.gmra.mrb[0].mxu0 %v2752
    %v2880 = vpop.f32.mrb[0].mxu0
    %v2881 = vadd.f32 0.0, %v2880
    %v2882 = vpop.f32.mrb[0].mxu0
    %v2883 = vpop.f32.mrb[0].mxu0
    %v2884 = vpop.f32.mrb[0].mxu0
    %2885 = vdwg.mxu0
    %v2886 = vadd.f32 %v2845, %v2881
    %v2887 = vxor.u32 %v2886, 2147483648
    %v2888 = vmul.f32 %v2887, 1.442695
    %v2889 = vpow.pop %v2888
    %v2890 = vadd.f32 %v2889, 1.0
    %v2891 = vrcp.pop %v2890
    %v2892 = vmul.f32 1.0, %v2891
    %v2893 = vmul.f32 %v2892, %v2701
    %v2894 = vadd.f32 %v2893, %v2844
    %v2895 = vld [vmem:[#allocation2 + $0x78] sm:$0xff]
    %2896 = vmatprep.subr.bf16.mxu0 0
    %2897 = vmatpush1.bf16.msra.mxu0 %v2301
    %2898 = vmatprep.subr.bf16.mxu0 0
    %2899 = vmatpush1.bf16.msra.mxu0 %v2302
    %2900 = vmatprep.subr.bf16.mxu0 0
    %2901 = vmatpush1.bf16.msra.mxu0 %v2303
    %2902 = vmatprep.subr.bf16.mxu0 0
    %2903 = vmatpush1.bf16.msra.mxu0 %v2304
    %2904 = vmatprep.subr.bf16.mxu0 0
    %2905 = vmatpush1.bf16.msra.mxu0 %v2305
    %2906 = vmatprep.subr.bf16.mxu0 0
    %2907 = vmatpush1.bf16.msra.mxu0 %v2306
    %2908 = vmatprep.subr.bf16.mxu0 0
    %2909 = vmatpush1.bf16.msra.mxu0 %v2307
    %2910 = vmatprep.subr.bf16.mxu0 0
    %2911 = vmatpush1.bf16.msra.mxu0 %v2308
    %2912 = vmatprep.subr.bf16.mxu0 0
    %2913 = vmatpush1.bf16.msra.mxu0 0
    %2914 = vmatprep.subr.bf16.mxu0 0
    %2915 = vmatpush1.bf16.msra.mxu0 0
    %2916 = vmatprep.subr.bf16.mxu0 0
    %2917 = vmatpush1.bf16.msra.mxu0 0
    %2918 = vmatprep.subr.bf16.mxu0 0
    %2919 = vmatpush1.bf16.msra.mxu0 0
    %2920 = vmatprep.subr.bf16.mxu0 0
    %2921 = vmatpush1.bf16.msra.mxu0 0
    %2922 = vmatprep.subr.bf16.mxu0 0
    %2923 = vmatpush1.bf16.msra.mxu0 0
    %2924 = vmatprep.subr.bf16.mxu0 0
    %2925 = vmatpush1.bf16.msra.mxu0 0
    %2926 = vmatprep.subr.bf16.mxu0 0
    %2927 = vmatpush1.bf16.msra.mxu0 0
    %2928 = vmatprep.mubr.bf16.mxu0 0
    %2929 = vmatmul.mubr.bf16.gmra.mrb[0].mxu0 %v2752
    %v2930 = vpop.f32.mrb[0].mxu0
    %v2931 = vadd.f32 0.0, %v2930
    %v2932 = vpop.f32.mrb[0].mxu0
    %v2933 = vpop.f32.mrb[0].mxu0
    %v2934 = vpop.f32.mrb[0].mxu0
    %2935 = vdwg.mxu0
    %v2936 = vadd.f32 %v2895, %v2931
    %v2937 = vxor.u32 %v2936, 2147483648
    %v2938 = vmul.f32 %v2937, 1.442695
    %v2939 = vpow.pop %v2938
    %v2940 = vadd.f32 %v2939, 1.0
    %v2941 = vrcp.pop %v2940
    %v2942 = vmul.f32 1.0, %v2941
    %v2943 = vtanh.pop %v2894
    %v2944 = vmul.f32 %v2942, %v2943
    %v2945 = vpack.c.bf16 %v2944, %v2944
    %v2946 = vld [vmem:[#allocation2 + $0x80] sm:$0xff]
    %2947 = vmatprep.subr.bf16.mxu0 0
    %2948 = vmatpush1.bf16.msra.mxu0 %v1964
    %2949 = vmatprep.subr.bf16.mxu0 0
    %2950 = vmatpush1.bf16.msra.mxu0 %v1965
    %2951 = vmatprep.subr.bf16.mxu0 0
    %2952 = vmatpush1.bf16.msra.mxu0 %v1966
    %2953 = vmatprep.subr.bf16.mxu0 0
    %2954 = vmatpush1.bf16.msra.mxu0 %v1967
    %2955 = vmatprep.subr.bf16.mxu0 0
    %2956 = vmatpush1.bf16.msra.mxu0 %v1968
    %2957 = vmatprep.subr.bf16.mxu0 0
    %2958 = vmatpush1.bf16.msra.mxu0 %v1969
    %2959 = vmatprep.subr.bf16.mxu0 0
    %2960 = vmatpush1.bf16.msra.mxu0 %v1970
    %2961 = vmatprep.subr.bf16.mxu0 0
    %2962 = vmatpush1.bf16.msra.mxu0 %v1971
    %2963 = vmatprep.subr.bf16.mxu0 0
    %2964 = vmatpush1.bf16.msra.mxu0 0
    %2965 = vmatprep.subr.bf16.mxu0 0
    %2966 = vmatpush1.bf16.msra.mxu0 0
    %2967 = vmatprep.subr.bf16.mxu0 0
    %2968 = vmatpush1.bf16.msra.mxu0 0
    %2969 = vmatprep.subr.bf16.mxu0 0
    %2970 = vmatpush1.bf16.msra.mxu0 0
    %2971 = vmatprep.subr.bf16.mxu0 0
    %2972 = vmatpush1.bf16.msra.mxu0 0
    %2973 = vmatprep.subr.bf16.mxu0 0
    %2974 = vmatpush1.bf16.msra.mxu0 0
    %2975 = vmatprep.subr.bf16.mxu0 0
    %2976 = vmatpush1.bf16.msra.mxu0 0
    %2977 = vmatprep.subr.bf16.mxu0 0
    %2978 = vmatpush1.bf16.msra.mxu0 0
    %2979 = vmatprep.mubr.bf16.mxu0 0
    %2980 = vmatmul.mubr.bf16.gmra.mrb[0].mxu0 %v2945
    %v2981 = vpop.f32.mrb[0].mxu0
    %v2982 = vadd.f32 0.0, %v2981
    %v2983 = vpop.f32.mrb[0].mxu0
    %v2984 = vpop.f32.mrb[0].mxu0
    %v2985 = vpop.f32.mrb[0].mxu0
    %2986 = vdwg.mxu0
    %v2987 = vadd.f32 %v2946, %v2982
    %v2988 = vxor.u32 %v2987, 2147483648
    %v2989 = vmul.f32 %v2988, 1.442695
    %v2990 = vpow.pop %v2989
    %v2991 = vadd.f32 %v2990, 1.0
    %v2992 = vrcp.pop %v2991
    %v2993 = vmul.f32 1.0, %v2992
    %v2994 = vld [vmem:[#allocation2 + $0x90] sm:$0xff]
    %2995 = vmatprep.subr.bf16.mxu0 0
    %2996 = vmatpush1.bf16.msra.mxu0 %v2077
    %2997 = vmatprep.subr.bf16.mxu0 0
    %2998 = vmatpush1.bf16.msra.mxu0 %v2078
    %2999 = vmatprep.subr.bf16.mxu0 0
    %3000 = vmatpush1.bf16.msra.mxu0 %v2079
    %3001 = vmatprep.subr.bf16.mxu0 0
    %3002 = vmatpush1.bf16.msra.mxu0 %v2080
    %3003 = vmatprep.subr.bf16.mxu0 0
    %3004 = vmatpush1.bf16.msra.mxu0 %v2081
    %3005 = vmatprep.subr.bf16.mxu0 0
    %3006 = vmatpush1.bf16.msra.mxu0 %v2082
    %3007 = vmatprep.subr.bf16.mxu0 0
    %3008 = vmatpush1.bf16.msra.mxu0 %v2083
    %3009 = vmatprep.subr.bf16.mxu0 0
    %3010 = vmatpush1.bf16.msra.mxu0 %v2084
    %3011 = vmatprep.subr.bf16.mxu0 0
    %3012 = vmatpush1.bf16.msra.mxu0 0
    %3013 = vmatprep.subr.bf16.mxu0 0
    %3014 = vmatpush1.bf16.msra.mxu0 0
    %3015 = vmatprep.subr.bf16.mxu0 0
    %3016 = vmatpush1.bf16.msra.mxu0 0
    %3017 = vmatprep.subr.bf16.mxu0 0
    %3018 = vmatpush1.bf16.msra.mxu0 0
    %3019 = vmatprep.subr.bf16.mxu0 0
    %3020 = vmatpush1.bf16.msra.mxu0 0
    %3021 = vmatprep.subr.bf16.mxu0 0
    %3022 = vmatpush1.bf16.msra.mxu0 0
    %3023 = vmatprep.subr.bf16.mxu0 0
    %3024 = vmatpush1.bf16.msra.mxu0 0
    %3025 = vmatprep.subr.bf16.mxu0 0
    %3026 = vmatpush1.bf16.msra.mxu0 0
    %3027 = vmatprep.mubr.bf16.mxu0 0
    %3028 = vmatmul.mubr.bf16.gmra.mrb[0].mxu0 %v2945
    %v3029 = vpop.f32.mrb[0].mxu0
    %v3030 = vadd.f32 0.0, %v3029
    %v3031 = vpop.f32.mrb[0].mxu0
    %v3032 = vpop.f32.mrb[0].mxu0
    %v3033 = vpop.f32.mrb[0].mxu0
    %3034 = vdwg.mxu0
    %v3035 = vadd.f32 %v2994, %v3030
    %v3036 = vtanh.pop %v3035
    %v3037 = vmul.f32 %v2993, %v3036
    %v3038 = vld [vmem:[#allocation2 + $0x88] sm:$0xff]
    %3039 = vmatprep.subr.bf16.mxu0 0
    %3040 = vmatpush1.bf16.msra.mxu0 %v2186
    %3041 = vmatprep.subr.bf16.mxu0 0
    %3042 = vmatpush1.bf16.msra.mxu0 %v2187
    %3043 = vmatprep.subr.bf16.mxu0 0
    %3044 = vmatpush1.bf16.msra.mxu0 %v2188
    %3045 = vmatprep.subr.bf16.mxu0 0
    %3046 = vmatpush1.bf16.msra.mxu0 %v2189
    %3047 = vmatprep.subr.bf16.mxu0 0
    %3048 = vmatpush1.bf16.msra.mxu0 %v2190
    %3049 = vmatprep.subr.bf16.mxu0 0
    %3050 = vmatpush1.bf16.msra.mxu0 %v2191
    %3051 = vmatprep.subr.bf16.mxu0 0
    %3052 = vmatpush1.bf16.msra.mxu0 %v2192
    %3053 = vmatprep.subr.bf16.mxu0 0
    %3054 = vmatpush1.bf16.msra.mxu0 %v2193
    %3055 = vmatprep.subr.bf16.mxu0 0
    %3056 = vmatpush1.bf16.msra.mxu0 0
    %3057 = vmatprep.subr.bf16.mxu0 0
    %3058 = vmatpush1.bf16.msra.mxu0 0
    %3059 = vmatprep.subr.bf16.mxu0 0
    %3060 = vmatpush1.bf16.msra.mxu0 0
    %3061 = vmatprep.subr.bf16.mxu0 0
    %3062 = vmatpush1.bf16.msra.mxu0 0
    %3063 = vmatprep.subr.bf16.mxu0 0
    %3064 = vmatpush1.bf16.msra.mxu0 0
    %3065 = vmatprep.subr.bf16.mxu0 0
    %3066 = vmatpush1.bf16.msra.mxu0 0
    %3067 = vmatprep.subr.bf16.mxu0 0
    %3068 = vmatpush1.bf16.msra.mxu0 0
    %3069 = vmatprep.subr.bf16.mxu0 0
    %3070 = vmatpush1.bf16.msra.mxu0 0
    %3071 = vmatprep.mubr.bf16.mxu0 0
    %3072 = vmatmul.mubr.bf16.gmra.mrb[0].mxu0 %v2945
    %v3073 = vpop.f32.mrb[0].mxu0
    %v3074 = vadd.f32 0.0, %v3073
    %v3075 = vpop.f32.mrb[0].mxu0
    %v3076 = vpop.f32.mrb[0].mxu0
    %v3077 = vpop.f32.mrb[0].mxu0
    %3078 = vdwg.mxu0
    %v3079 = vadd.f32 %v3038, %v3074
    %v3080 = vxor.u32 %v3079, 2147483648
    %v3081 = vmul.f32 %v3080, 1.442695
    %v3082 = vpow.pop %v3081
    %v3083 = vadd.f32 %v3082, 1.0
    %v3084 = vrcp.pop %v3083
    %v3085 = vmul.f32 1.0, %v3084
    %v3086 = vmul.f32 %v3085, %v2894
    %v3087 = vadd.f32 %v3086, %v3037
    %v3088 = vld [vmem:[#allocation2 + $0x98] sm:$0xff]
    %3089 = vmatprep.subr.bf16.mxu0 0
    %3090 = vmatpush1.bf16.msra.mxu0 %v2301
    %3091 = vmatprep.subr.bf16.mxu0 0
    %3092 = vmatpush1.bf16.msra.mxu0 %v2302
    %3093 = vmatprep.subr.bf16.mxu0 0
    %3094 = vmatpush1.bf16.msra.mxu0 %v2303
    %3095 = vmatprep.subr.bf16.mxu0 0
    %3096 = vmatpush1.bf16.msra.mxu0 %v2304
    %3097 = vmatprep.subr.bf16.mxu0 0
    %3098 = vmatpush1.bf16.msra.mxu0 %v2305
    %3099 = vmatprep.subr.bf16.mxu0 0
    %3100 = vmatpush1.bf16.msra.mxu0 %v2306
    %3101 = vmatprep.subr.bf16.mxu0 0
    %3102 = vmatpush1.bf16.msra.mxu0 %v2307
    %3103 = vmatprep.subr.bf16.mxu0 0
    %3104 = vmatpush1.bf16.msra.mxu0 %v2308
    %3105 = vmatprep.subr.bf16.mxu0 0
    %3106 = vmatpush1.bf16.msra.mxu0 0
    %3107 = vmatprep.subr.bf16.mxu0 0
    %3108 = vmatpush1.bf16.msra.mxu0 0
    %3109 = vmatprep.subr.bf16.mxu0 0
    %3110 = vmatpush1.bf16.msra.mxu0 0
    %3111 = vmatprep.subr.bf16.mxu0 0
    %3112 = vmatpush1.bf16.msra.mxu0 0
    %3113 = vmatprep.subr.bf16.mxu0 0
    %3114 = vmatpush1.bf16.msra.mxu0 0
    %3115 = vmatprep.subr.bf16.mxu0 0
    %3116 = vmatpush1.bf16.msra.mxu0 0
    %3117 = vmatprep.subr.bf16.mxu0 0
    %3118 = vmatpush1.bf16.msra.mxu0 0
    %3119 = vmatprep.subr.bf16.mxu0 0
    %3120 = vmatpush1.bf16.msra.mxu0 0
    %3121 = vmatprep.mubr.bf16.mxu0 0
    %3122 = vmatmul.mubr.bf16.gmra.mrb[0].mxu0 %v2945
    %v3123 = vpop.f32.mrb[0].mxu0
    %v3124 = vadd.f32 0.0, %v3123
    %v3125 = vpop.f32.mrb[0].mxu0
    %v3126 = vpop.f32.mrb[0].mxu0
    %v3127 = vpop.f32.mrb[0].mxu0
    %3128 = vdwg.mxu0
    %v3129 = vadd.f32 %v3088, %v3124
    %v3130 = vxor.u32 %v3129, 2147483648
    %v3131 = vmul.f32 %v3130, 1.442695
    %v3132 = vpow.pop %v3131
    %v3133 = vadd.f32 %v3132, 1.0
    %v3134 = vrcp.pop %v3133
    %v3135 = vmul.f32 1.0, %v3134
    %v3136 = vtanh.pop %v3087
    %v3137 = vmul.f32 %v3135, %v3136
    %v3138 = vpack.c.bf16 %v3137, %v3137
    %v3139 = vld [vmem:[#allocation2 + $0xa0] sm:$0xff]
    %3140 = vmatprep.subr.bf16.mxu0 0
    %3141 = vmatpush1.bf16.msra.mxu0 %v1964
    %3142 = vmatprep.subr.bf16.mxu0 0
    %3143 = vmatpush1.bf16.msra.mxu0 %v1965
    %3144 = vmatprep.subr.bf16.mxu0 0
    %3145 = vmatpush1.bf16.msra.mxu0 %v1966
    %3146 = vmatprep.subr.bf16.mxu0 0
    %3147 = vmatpush1.bf16.msra.mxu0 %v1967
    %3148 = vmatprep.subr.bf16.mxu0 0
    %3149 = vmatpush1.bf16.msra.mxu0 %v1968
    %3150 = vmatprep.subr.bf16.mxu0 0
    %3151 = vmatpush1.bf16.msra.mxu0 %v1969
    %3152 = vmatprep.subr.bf16.mxu0 0
    %3153 = vmatpush1.bf16.msra.mxu0 %v1970
    %3154 = vmatprep.subr.bf16.mxu0 0
    %3155 = vmatpush1.bf16.msra.mxu0 %v1971
    %3156 = vmatprep.subr.bf16.mxu0 0
    %3157 = vmatpush1.bf16.msra.mxu0 0
    %3158 = vmatprep.subr.bf16.mxu0 0
    %3159 = vmatpush1.bf16.msra.mxu0 0
    %3160 = vmatprep.subr.bf16.mxu0 0
    %3161 = vmatpush1.bf16.msra.mxu0 0
    %3162 = vmatprep.subr.bf16.mxu0 0
    %3163 = vmatpush1.bf16.msra.mxu0 0
    %3164 = vmatprep.subr.bf16.mxu0 0
    %3165 = vmatpush1.bf16.msra.mxu0 0
    %3166 = vmatprep.subr.bf16.mxu0 0
    %3167 = vmatpush1.bf16.msra.mxu0 0
    %3168 = vmatprep.subr.bf16.mxu0 0
    %3169 = vmatpush1.bf16.msra.mxu0 0
    %3170 = vmatprep.subr.bf16.mxu0 0
    %3171 = vmatpush1.bf16.msra.mxu0 0
    %3172 = vmatprep.mubr.bf16.mxu0 0
    %3173 = vmatmul.mubr.bf16.gmra.mrb[0].mxu0 %v3138
    %v3174 = vpop.f32.mrb[0].mxu0
    %v3175 = vadd.f32 0.0, %v3174
    %v3176 = vpop.f32.mrb[0].mxu0
    %v3177 = vpop.f32.mrb[0].mxu0
    %v3178 = vpop.f32.mrb[0].mxu0
    %3179 = vdwg.mxu0
    %v3180 = vadd.f32 %v3139, %v3175
    %v3181 = vxor.u32 %v3180, 2147483648
    %v3182 = vmul.f32 %v3181, 1.442695
    %v3183 = vpow.pop %v3182
    %v3184 = vadd.f32 %v3183, 1.0
    %v3185 = vrcp.pop %v3184
    %v3186 = vmul.f32 1.0, %v3185
    %v3187 = vld [vmem:[#allocation2 + $0xb0] sm:$0xff]
    %3188 = vmatprep.subr.bf16.mxu0 0
    %3189 = vmatpush1.bf16.msra.mxu0 %v2077
    %3190 = vmatprep.subr.bf16.mxu0 0
    %3191 = vmatpush1.bf16.msra.mxu0 %v2078
    %3192 = vmatprep.subr.bf16.mxu0 0
    %3193 = vmatpush1.bf16.msra.mxu0 %v2079
    %3194 = vmatprep.subr.bf16.mxu0 0
    %3195 = vmatpush1.bf16.msra.mxu0 %v2080
    %3196 = vmatprep.subr.bf16.mxu0 0
    %3197 = vmatpush1.bf16.msra.mxu0 %v2081
    %3198 = vmatprep.subr.bf16.mxu0 0
    %3199 = vmatpush1.bf16.msra.mxu0 %v2082
    %3200 = vmatprep.subr.bf16.mxu0 0
    %3201 = vmatpush1.bf16.msra.mxu0 %v2083
    %3202 = vmatprep.subr.bf16.mxu0 0
    %3203 = vmatpush1.bf16.msra.mxu0 %v2084
    %3204 = vmatprep.subr.bf16.mxu0 0
    %3205 = vmatpush1.bf16.msra.mxu0 0
    %3206 = vmatprep.subr.bf16.mxu0 0
    %3207 = vmatpush1.bf16.msra.mxu0 0
    %3208 = vmatprep.subr.bf16.mxu0 0
    %3209 = vmatpush1.bf16.msra.mxu0 0
    %3210 = vmatprep.subr.bf16.mxu0 0
    %3211 = vmatpush1.bf16.msra.mxu0 0
    %3212 = vmatprep.subr.bf16.mxu0 0
    %3213 = vmatpush1.bf16.msra.mxu0 0
    %3214 = vmatprep.subr.bf16.mxu0 0
    %3215 = vmatpush1.bf16.msra.mxu0 0
    %3216 = vmatprep.subr.bf16.mxu0 0
    %3217 = vmatpush1.bf16.msra.mxu0 0
    %3218 = vmatprep.subr.bf16.mxu0 0
    %3219 = vmatpush1.bf16.msra.mxu0 0
    %3220 = vmatprep.mubr.bf16.mxu0 0
    %3221 = vmatmul.mubr.bf16.gmra.mrb[0].mxu0 %v3138
    %v3222 = vpop.f32.mrb[0].mxu0
    %v3223 = vadd.f32 0.0, %v3222
    %v3224 = vpop.f32.mrb[0].mxu0
    %v3225 = vpop.f32.mrb[0].mxu0
    %v3226 = vpop.f32.mrb[0].mxu0
    %3227 = vdwg.mxu0
    %v3228 = vadd.f32 %v3187, %v3223
    %v3229 = vtanh.pop %v3228
    %v3230 = vmul.f32 %v3186, %v3229
    %v3231 = vld [vmem:[#allocation2 + $0xa8] sm:$0xff]
    %3232 = vmatprep.subr.bf16.mxu0 0
    %3233 = vmatpush1.bf16.msra.mxu0 %v2186
    %3234 = vmatprep.subr.bf16.mxu0 0
    %3235 = vmatpush1.bf16.msra.mxu0 %v2187
    %3236 = vmatprep.subr.bf16.mxu0 0
    %3237 = vmatpush1.bf16.msra.mxu0 %v2188
    %3238 = vmatprep.subr.bf16.mxu0 0
    %3239 = vmatpush1.bf16.msra.mxu0 %v2189
    %3240 = vmatprep.subr.bf16.mxu0 0
    %3241 = vmatpush1.bf16.msra.mxu0 %v2190
    %3242 = vmatprep.subr.bf16.mxu0 0
    %3243 = vmatpush1.bf16.msra.mxu0 %v2191
    %3244 = vmatprep.subr.bf16.mxu0 0
    %3245 = vmatpush1.bf16.msra.mxu0 %v2192
    %3246 = vmatprep.subr.bf16.mxu0 0
    %3247 = vmatpush1.bf16.msra.mxu0 %v2193
    %3248 = vmatprep.subr.bf16.mxu0 0
    %3249 = vmatpush1.bf16.msra.mxu0 0
    %3250 = vmatprep.subr.bf16.mxu0 0
    %3251 = vmatpush1.bf16.msra.mxu0 0
    %3252 = vmatprep.subr.bf16.mxu0 0
    %3253 = vmatpush1.bf16.msra.mxu0 0
    %3254 = vmatprep.subr.bf16.mxu0 0
    %3255 = vmatpush1.bf16.msra.mxu0 0
    %3256 = vmatprep.subr.bf16.mxu0 0
    %3257 = vmatpush1.bf16.msra.mxu0 0
    %3258 = vmatprep.subr.bf16.mxu0 0
    %3259 = vmatpush1.bf16.msra.mxu0 0
    %3260 = vmatprep.subr.bf16.mxu0 0
    %3261 = vmatpush1.bf16.msra.mxu0 0
    %3262 = vmatprep.subr.bf16.mxu0 0
    %3263 = vmatpush1.bf16.msra.mxu0 0
    %3264 = vmatprep.mubr.bf16.mxu0 0
    %3265 = vmatmul.mubr.bf16.gmra.mrb[0].mxu0 %v3138
    %v3266 = vpop.f32.mrb[0].mxu0
    %v3267 = vadd.f32 0.0, %v3266
    %v3268 = vpop.f32.mrb[0].mxu0
    %v3269 = vpop.f32.mrb[0].mxu0
    %v3270 = vpop.f32.mrb[0].mxu0
    %3271 = vdwg.mxu0
    %v3272 = vadd.f32 %v3231, %v3267
    %v3273 = vxor.u32 %v3272, 2147483648
    %v3274 = vmul.f32 %v3273, 1.442695
    %v3275 = vpow.pop %v3274
    %v3276 = vadd.f32 %v3275, 1.0
    %v3277 = vrcp.pop %v3276
    %v3278 = vmul.f32 1.0, %v3277
    %v3279 = vmul.f32 %v3278, %v3087
    %v3280 = vadd.f32 %v3279, %v3230
    %v3281 = vld [vmem:[#allocation2 + $0xb8] sm:$0xff]
    %3282 = vmatprep.subr.bf16.mxu0 0
    %3283 = vmatpush1.bf16.msra.mxu0 %v2301
    %3284 = vmatprep.subr.bf16.mxu0 0
    %3285 = vmatpush1.bf16.msra.mxu0 %v2302
    %3286 = vmatprep.subr.bf16.mxu0 0
    %3287 = vmatpush1.bf16.msra.mxu0 %v2303
    %3288 = vmatprep.subr.bf16.mxu0 0
    %3289 = vmatpush1.bf16.msra.mxu0 %v2304
    %3290 = vmatprep.subr.bf16.mxu0 0
    %3291 = vmatpush1.bf16.msra.mxu0 %v2305
    %3292 = vmatprep.subr.bf16.mxu0 0
    %3293 = vmatpush1.bf16.msra.mxu0 %v2306
    %3294 = vmatprep.subr.bf16.mxu0 0
    %3295 = vmatpush1.bf16.msra.mxu0 %v2307
    %3296 = vmatprep.subr.bf16.mxu0 0
    %3297 = vmatpush1.bf16.msra.mxu0 %v2308
    %3298 = vmatprep.subr.bf16.mxu0 0
    %3299 = vmatpush1.bf16.msra.mxu0 0
    %3300 = vmatprep.subr.bf16.mxu0 0
    %3301 = vmatpush1.bf16.msra.mxu0 0
    %3302 = vmatprep.subr.bf16.mxu0 0
    %3303 = vmatpush1.bf16.msra.mxu0 0
    %3304 = vmatprep.subr.bf16.mxu0 0
    %3305 = vmatpush1.bf16.msra.mxu0 0
    %3306 = vmatprep.subr.bf16.mxu0 0
    %3307 = vmatpush1.bf16.msra.mxu0 0
    %3308 = vmatprep.subr.bf16.mxu0 0
    %3309 = vmatpush1.bf16.msra.mxu0 0
    %3310 = vmatprep.subr.bf16.mxu0 0
    %3311 = vmatpush1.bf16.msra.mxu0 0
    %3312 = vmatprep.subr.bf16.mxu0 0
    %3313 = vmatpush1.bf16.msra.mxu0 0
    %3314 = vmatprep.mubr.bf16.mxu0 0
    %3315 = vmatmul.mubr.bf16.gmra.mrb[0].mxu0 %v3138
    %v3316 = vpop.f32.mrb[0].mxu0
    %v3317 = vadd.f32 0.0, %v3316
    %v3318 = vpop.f32.mrb[0].mxu0
    %v3319 = vpop.f32.mrb[0].mxu0
    %v3320 = vpop.f32.mrb[0].mxu0
    %3321 = vdwg.mxu0
    %v3322 = vadd.f32 %v3281, %v3317
    %v3323 = vxor.u32 %v3322, 2147483648
    %v3324 = vmul.f32 %v3323, 1.442695
    %v3325 = vpow.pop %v3324
    %v3326 = vadd.f32 %v3325, 1.0
    %v3327 = vrcp.pop %v3326
    %v3328 = vmul.f32 1.0, %v3327
    %v3329 = vtanh.pop %v3280
    %v3330 = vmul.f32 %v3328, %v3329
    %v3331 = vpack.c.bf16 %v3330, %v3330
    %v3332 = vld [vmem:[#allocation2 + $0xc0] sm:$0xff]
    %3333 = vmatprep.subr.bf16.mxu0 0
    %3334 = vmatpush1.bf16.msra.mxu0 %v1964
    %3335 = vmatprep.subr.bf16.mxu0 0
    %3336 = vmatpush1.bf16.msra.mxu0 %v1965
    %3337 = vmatprep.subr.bf16.mxu0 0
    %3338 = vmatpush1.bf16.msra.mxu0 %v1966
    %3339 = vmatprep.subr.bf16.mxu0 0
    %3340 = vmatpush1.bf16.msra.mxu0 %v1967
    %3341 = vmatprep.subr.bf16.mxu0 0
    %3342 = vmatpush1.bf16.msra.mxu0 %v1968
    %3343 = vmatprep.subr.bf16.mxu0 0
    %3344 = vmatpush1.bf16.msra.mxu0 %v1969
    %3345 = vmatprep.subr.bf16.mxu0 0
    %3346 = vmatpush1.bf16.msra.mxu0 %v1970
    %3347 = vmatprep.subr.bf16.mxu0 0
    %3348 = vmatpush1.bf16.msra.mxu0 %v1971
    %3349 = vmatprep.subr.bf16.mxu0 0
    %3350 = vmatpush1.bf16.msra.mxu0 0
    %3351 = vmatprep.subr.bf16.mxu0 0
    %3352 = vmatpush1.bf16.msra.mxu0 0
    %3353 = vmatprep.subr.bf16.mxu0 0
    %3354 = vmatpush1.bf16.msra.mxu0 0
    %3355 = vmatprep.subr.bf16.mxu0 0
    %3356 = vmatpush1.bf16.msra.mxu0 0
    %3357 = vmatprep.subr.bf16.mxu0 0
    %3358 = vmatpush1.bf16.msra.mxu0 0
    %3359 = vmatprep.subr.bf16.mxu0 0
    %3360 = vmatpush1.bf16.msra.mxu0 0
    %3361 = vmatprep.subr.bf16.mxu0 0
    %3362 = vmatpush1.bf16.msra.mxu0 0
    %3363 = vmatprep.subr.bf16.mxu0 0
    %3364 = vmatpush1.bf16.msra.mxu0 0
    %3365 = vmatprep.mubr.bf16.mxu0 0
    %3366 = vmatmul.mubr.bf16.gmra.mrb[0].mxu0 %v3331
    %v3367 = vpop.f32.mrb[0].mxu0
    %v3368 = vadd.f32 0.0, %v3367
    %v3369 = vpop.f32.mrb[0].mxu0
    %v3370 = vpop.f32.mrb[0].mxu0
    %v3371 = vpop.f32.mrb[0].mxu0
    %3372 = vdwg.mxu0
    %v3373 = vadd.f32 %v3332, %v3368
    %v3374 = vxor.u32 %v3373, 2147483648
    %v3375 = vmul.f32 %v3374, 1.442695
    %v3376 = vpow.pop %v3375
    %v3377 = vadd.f32 %v3376, 1.0
    %v3378 = vrcp.pop %v3377
    %v3379 = vmul.f32 1.0, %v3378
    %v3380 = vld [vmem:[#allocation2 + $0xd0] sm:$0xff]
    %3381 = vmatprep.subr.bf16.mxu0 0
    %3382 = vmatpush1.bf16.msra.mxu0 %v2077
    %3383 = vmatprep.subr.bf16.mxu0 0
    %3384 = vmatpush1.bf16.msra.mxu0 %v2078
    %3385 = vmatprep.subr.bf16.mxu0 0
    %3386 = vmatpush1.bf16.msra.mxu0 %v2079
    %3387 = vmatprep.subr.bf16.mxu0 0
    %3388 = vmatpush1.bf16.msra.mxu0 %v2080
    %3389 = vmatprep.subr.bf16.mxu0 0
    %3390 = vmatpush1.bf16.msra.mxu0 %v2081
    %3391 = vmatprep.subr.bf16.mxu0 0
    %3392 = vmatpush1.bf16.msra.mxu0 %v2082
    %3393 = vmatprep.subr.bf16.mxu0 0
    %3394 = vmatpush1.bf16.msra.mxu0 %v2083
    %3395 = vmatprep.subr.bf16.mxu0 0
    %3396 = vmatpush1.bf16.msra.mxu0 %v2084
    %3397 = vmatprep.subr.bf16.mxu0 0
    %3398 = vmatpush1.bf16.msra.mxu0 0
    %3399 = vmatprep.subr.bf16.mxu0 0
    %3400 = vmatpush1.bf16.msra.mxu0 0
    %3401 = vmatprep.subr.bf16.mxu0 0
    %3402 = vmatpush1.bf16.msra.mxu0 0
    %3403 = vmatprep.subr.bf16.mxu0 0
    %3404 = vmatpush1.bf16.msra.mxu0 0
    %3405 = vmatprep.subr.bf16.mxu0 0
    %3406 = vmatpush1.bf16.msra.mxu0 0
    %3407 = vmatprep.subr.bf16.mxu0 0
    %3408 = vmatpush1.bf16.msra.mxu0 0
    %3409 = vmatprep.subr.bf16.mxu0 0
    %3410 = vmatpush1.bf16.msra.mxu0 0
    %3411 = vmatprep.subr.bf16.mxu0 0
    %3412 = vmatpush1.bf16.msra.mxu0 0
    %3413 = vmatprep.mubr.bf16.mxu0 0
    %3414 = vmatmul.mubr.bf16.gmra.mrb[0].mxu0 %v3331
    %v3415 = vpop.f32.mrb[0].mxu0
    %v3416 = vadd.f32 0.0, %v3415
    %v3417 = vpop.f32.mrb[0].mxu0
    %v3418 = vpop.f32.mrb[0].mxu0
    %v3419 = vpop.f32.mrb[0].mxu0
    %3420 = vdwg.mxu0
    %v3421 = vadd.f32 %v3380, %v3416
    %v3422 = vtanh.pop %v3421
    %v3423 = vmul.f32 %v3379, %v3422
    %v3424 = vld [vmem:[#allocation2 + $0xc8] sm:$0xff]
    %3425 = vmatprep.subr.bf16.mxu0 0
    %3426 = vmatpush1.bf16.msra.mxu0 %v2186
    %3427 = vmatprep.subr.bf16.mxu0 0
    %3428 = vmatpush1.bf16.msra.mxu0 %v2187
    %3429 = vmatprep.subr.bf16.mxu0 0
    %3430 = vmatpush1.bf16.msra.mxu0 %v2188
    %3431 = vmatprep.subr.bf16.mxu0 0
    %3432 = vmatpush1.bf16.msra.mxu0 %v2189
    %3433 = vmatprep.subr.bf16.mxu0 0
    %3434 = vmatpush1.bf16.msra.mxu0 %v2190
    %3435 = vmatprep.subr.bf16.mxu0 0
    %3436 = vmatpush1.bf16.msra.mxu0 %v2191
    %3437 = vmatprep.subr.bf16.mxu0 0
    %3438 = vmatpush1.bf16.msra.mxu0 %v2192
    %3439 = vmatprep.subr.bf16.mxu0 0
    %3440 = vmatpush1.bf16.msra.mxu0 %v2193
    %3441 = vmatprep.subr.bf16.mxu0 0
    %3442 = vmatpush1.bf16.msra.mxu0 0
    %3443 = vmatprep.subr.bf16.mxu0 0
    %3444 = vmatpush1.bf16.msra.mxu0 0
    %3445 = vmatprep.subr.bf16.mxu0 0
    %3446 = vmatpush1.bf16.msra.mxu0 0
    %3447 = vmatprep.subr.bf16.mxu0 0
    %3448 = vmatpush1.bf16.msra.mxu0 0
    %3449 = vmatprep.subr.bf16.mxu0 0
    %3450 = vmatpush1.bf16.msra.mxu0 0
    %3451 = vmatprep.subr.bf16.mxu0 0
    %3452 = vmatpush1.bf16.msra.mxu0 0
    %3453 = vmatprep.subr.bf16.mxu0 0
    %3454 = vmatpush1.bf16.msra.mxu0 0
    %3455 = vmatprep.subr.bf16.mxu0 0
    %3456 = vmatpush1.bf16.msra.mxu0 0
    %3457 = vmatprep.mubr.bf16.mxu0 0
    %3458 = vmatmul.mubr.bf16.gmra.mrb[0].mxu0 %v3331
    %v3459 = vpop.f32.mrb[0].mxu0
    %v3460 = vadd.f32 0.0, %v3459
    %v3461 = vpop.f32.mrb[0].mxu0
    %v3462 = vpop.f32.mrb[0].mxu0
    %v3463 = vpop.f32.mrb[0].mxu0
    %3464 = vdwg.mxu0
    %v3465 = vadd.f32 %v3424, %v3460
    %v3466 = vxor.u32 %v3465, 2147483648
    %v3467 = vmul.f32 %v3466, 1.442695
    %v3468 = vpow.pop %v3467
    %v3469 = vadd.f32 %v3468, 1.0
    %v3470 = vrcp.pop %v3469
    %v3471 = vmul.f32 1.0, %v3470
    %v3472 = vmul.f32 %v3471, %v3280
    %v3473 = vadd.f32 %v3472, %v3423
    %v3474 = vld [vmem:[#allocation2 + $0xd8] sm:$0xff]
    %3475 = vmatprep.subr.bf16.mxu0 0
    %3476 = vmatpush1.bf16.msra.mxu0 %v2301
    %3477 = vmatprep.subr.bf16.mxu0 0
    %3478 = vmatpush1.bf16.msra.mxu0 %v2302
    %3479 = vmatprep.subr.bf16.mxu0 0
    %3480 = vmatpush1.bf16.msra.mxu0 %v2303
    %3481 = vmatprep.subr.bf16.mxu0 0
    %3482 = vmatpush1.bf16.msra.mxu0 %v2304
    %3483 = vmatprep.subr.bf16.mxu0 0
    %3484 = vmatpush1.bf16.msra.mxu0 %v2305
    %3485 = vmatprep.subr.bf16.mxu0 0
    %3486 = vmatpush1.bf16.msra.mxu0 %v2306
    %3487 = vmatprep.subr.bf16.mxu0 0
    %3488 = vmatpush1.bf16.msra.mxu0 %v2307
    %3489 = vmatprep.subr.bf16.mxu0 0
    %3490 = vmatpush1.bf16.msra.mxu0 %v2308
    %3491 = vmatprep.subr.bf16.mxu0 0
    %3492 = vmatpush1.bf16.msra.mxu0 0
    %3493 = vmatprep.subr.bf16.mxu0 0
    %3494 = vmatpush1.bf16.msra.mxu0 0
    %3495 = vmatprep.subr.bf16.mxu0 0
    %3496 = vmatpush1.bf16.msra.mxu0 0
    %3497 = vmatprep.subr.bf16.mxu0 0
    %3498 = vmatpush1.bf16.msra.mxu0 0
    %3499 = vmatprep.subr.bf16.mxu0 0
    %3500 = vmatpush1.bf16.msra.mxu0 0
    %3501 = vmatprep.subr.bf16.mxu0 0
    %3502 = vmatpush1.bf16.msra.mxu0 0
    %3503 = vmatprep.subr.bf16.mxu0 0
    %3504 = vmatpush1.bf16.msra.mxu0 0
    %3505 = vmatprep.subr.bf16.mxu0 0
    %3506 = vmatpush1.bf16.msra.mxu0 0
    %3507 = vmatprep.mubr.bf16.mxu0 0
    %3508 = vmatmul.mubr.bf16.gmra.mrb[0].mxu0 %v3331
    %v3509 = vpop.f32.mrb[0].mxu0
    %v3510 = vadd.f32 0.0, %v3509
    %v3511 = vpop.f32.mrb[0].mxu0
    %v3512 = vpop.f32.mrb[0].mxu0
    %v3513 = vpop.f32.mrb[0].mxu0
    %3514 = vdwg.mxu0
    %v3515 = vadd.f32 %v3474, %v3510
    %v3516 = vxor.u32 %v3515, 2147483648
    %v3517 = vmul.f32 %v3516, 1.442695
    %v3518 = vpow.pop %v3517
    %v3519 = vadd.f32 %v3518, 1.0
    %v3520 = vrcp.pop %v3519
    %v3521 = vmul.f32 1.0, %v3520
    %v3522 = vtanh.pop %v3473
    %v3523 = vmul.f32 %v3521, %v3522
    %v3524 = vpack.c.bf16 %v3523, %v3523
    %v3525 = vld [vmem:[#allocation2 + $0xe0] sm:$0xff]
    %3526 = vmatprep.subr.bf16.mxu0 0
    %3527 = vmatpush1.bf16.msra.mxu0 %v1964
    %3528 = vmatprep.subr.bf16.mxu0 0
    %3529 = vmatpush1.bf16.msra.mxu0 %v1965
    %3530 = vmatprep.subr.bf16.mxu0 0
    %3531 = vmatpush1.bf16.msra.mxu0 %v1966
    %3532 = vmatprep.subr.bf16.mxu0 0
    %3533 = vmatpush1.bf16.msra.mxu0 %v1967
    %3534 = vmatprep.subr.bf16.mxu0 0
    %3535 = vmatpush1.bf16.msra.mxu0 %v1968
    %3536 = vmatprep.subr.bf16.mxu0 0
    %3537 = vmatpush1.bf16.msra.mxu0 %v1969
    %3538 = vmatprep.subr.bf16.mxu0 0
    %3539 = vmatpush1.bf16.msra.mxu0 %v1970
    %3540 = vmatprep.subr.bf16.mxu0 0
    %3541 = vmatpush1.bf16.msra.mxu0 %v1971
    %3542 = vmatprep.subr.bf16.mxu0 0
    %3543 = vmatpush1.bf16.msra.mxu0 0
    %3544 = vmatprep.subr.bf16.mxu0 0
    %3545 = vmatpush1.bf16.msra.mxu0 0
    %3546 = vmatprep.subr.bf16.mxu0 0
    %3547 = vmatpush1.bf16.msra.mxu0 0
    %3548 = vmatprep.subr.bf16.mxu0 0
    %3549 = vmatpush1.bf16.msra.mxu0 0
    %3550 = vmatprep.subr.bf16.mxu0 0
    %3551 = vmatpush1.bf16.msra.mxu0 0
    %3552 = vmatprep.subr.bf16.mxu0 0
    %3553 = vmatpush1.bf16.msra.mxu0 0
    %3554 = vmatprep.subr.bf16.mxu0 0
    %3555 = vmatpush1.bf16.msra.mxu0 0
    %3556 = vmatprep.subr.bf16.mxu0 0
    %3557 = vmatpush1.bf16.msra.mxu0 0
    %3558 = vmatprep.mubr.bf16.mxu0 0
    %3559 = vmatmul.mubr.bf16.gmra.mrb[0].mxu0 %v3524
    %v3560 = vpop.f32.mrb[0].mxu0
    %v3561 = vadd.f32 0.0, %v3560
    %v3562 = vpop.f32.mrb[0].mxu0
    %v3563 = vpop.f32.mrb[0].mxu0
    %v3564 = vpop.f32.mrb[0].mxu0
    %3565 = vdwg.mxu0
    %v3566 = vadd.f32 %v3525, %v3561
    %v3567 = vxor.u32 %v3566, 2147483648
    %v3568 = vmul.f32 %v3567, 1.442695
    %v3569 = vpow.pop %v3568
    %v3570 = vadd.f32 %v3569, 1.0
    %v3571 = vrcp.pop %v3570
    %v3572 = vmul.f32 1.0, %v3571
    %v3573 = vld [vmem:[#allocation2 + $0xf0] sm:$0xff]
    %3574 = vmatprep.subr.bf16.mxu0 0
    %3575 = vmatpush1.bf16.msra.mxu0 %v2077
    %3576 = vmatprep.subr.bf16.mxu0 0
    %3577 = vmatpush1.bf16.msra.mxu0 %v2078
    %3578 = vmatprep.subr.bf16.mxu0 0
    %3579 = vmatpush1.bf16.msra.mxu0 %v2079
    %3580 = vmatprep.subr.bf16.mxu0 0
    %3581 = vmatpush1.bf16.msra.mxu0 %v2080
    %3582 = vmatprep.subr.bf16.mxu0 0
    %3583 = vmatpush1.bf16.msra.mxu0 %v2081
    %3584 = vmatprep.subr.bf16.mxu0 0
    %3585 = vmatpush1.bf16.msra.mxu0 %v2082
    %3586 = vmatprep.subr.bf16.mxu0 0
    %3587 = vmatpush1.bf16.msra.mxu0 %v2083
    %3588 = vmatprep.subr.bf16.mxu0 0
    %3589 = vmatpush1.bf16.msra.mxu0 %v2084
    %3590 = vmatprep.subr.bf16.mxu0 0
    %3591 = vmatpush1.bf16.msra.mxu0 0
    %3592 = vmatprep.subr.bf16.mxu0 0
    %3593 = vmatpush1.bf16.msra.mxu0 0
    %3594 = vmatprep.subr.bf16.mxu0 0
    %3595 = vmatpush1.bf16.msra.mxu0 0
    %3596 = vmatprep.subr.bf16.mxu0 0
    %3597 = vmatpush1.bf16.msra.mxu0 0
    %3598 = vmatprep.subr.bf16.mxu0 0
    %3599 = vmatpush1.bf16.msra.mxu0 0
    %3600 = vmatprep.subr.bf16.mxu0 0
    %3601 = vmatpush1.bf16.msra.mxu0 0
    %3602 = vmatprep.subr.bf16.mxu0 0
    %3603 = vmatpush1.bf16.msra.mxu0 0
    %3604 = vmatprep.subr.bf16.mxu0 0
    %3605 = vmatpush1.bf16.msra.mxu0 0
    %3606 = vmatprep.mubr.bf16.mxu0 0
    %3607 = vmatmul.mubr.bf16.gmra.mrb[0].mxu0 %v3524
    %v3608 = vpop.f32.mrb[0].mxu0
    %v3609 = vadd.f32 0.0, %v3608
    %v3610 = vpop.f32.mrb[0].mxu0
    %v3611 = vpop.f32.mrb[0].mxu0
    %v3612 = vpop.f32.mrb[0].mxu0
    %3613 = vdwg.mxu0
    %v3614 = vadd.f32 %v3573, %v3609
    %v3615 = vtanh.pop %v3614
    %v3616 = vmul.f32 %v3572, %v3615
    %v3617 = vld [vmem:[#allocation2 + $0xe8] sm:$0xff]
    %3618 = vmatprep.subr.bf16.mxu0 0
    %3619 = vmatpush1.bf16.msra.mxu0 %v2186
    %3620 = vmatprep.subr.bf16.mxu0 0
    %3621 = vmatpush1.bf16.msra.mxu0 %v2187
    %3622 = vmatprep.subr.bf16.mxu0 0
    %3623 = vmatpush1.bf16.msra.mxu0 %v2188
    %3624 = vmatprep.subr.bf16.mxu0 0
    %3625 = vmatpush1.bf16.msra.mxu0 %v2189
    %3626 = vmatprep.subr.bf16.mxu0 0
    %3627 = vmatpush1.bf16.msra.mxu0 %v2190
    %3628 = vmatprep.subr.bf16.mxu0 0
    %3629 = vmatpush1.bf16.msra.mxu0 %v2191
    %3630 = vmatprep.subr.bf16.mxu0 0
    %3631 = vmatpush1.bf16.msra.mxu0 %v2192
    %3632 = vmatprep.subr.bf16.mxu0 0
    %3633 = vmatpush1.bf16.msra.mxu0 %v2193
    %3634 = vmatprep.subr.bf16.mxu0 0
    %3635 = vmatpush1.bf16.msra.mxu0 0
    %3636 = vmatprep.subr.bf16.mxu0 0
    %3637 = vmatpush1.bf16.msra.mxu0 0
    %3638 = vmatprep.subr.bf16.mxu0 0
    %3639 = vmatpush1.bf16.msra.mxu0 0
    %3640 = vmatprep.subr.bf16.mxu0 0
    %3641 = vmatpush1.bf16.msra.mxu0 0
    %3642 = vmatprep.subr.bf16.mxu0 0
    %3643 = vmatpush1.bf16.msra.mxu0 0
    %3644 = vmatprep.subr.bf16.mxu0 0
    %3645 = vmatpush1.bf16.msra.mxu0 0
    %3646 = vmatprep.subr.bf16.mxu0 0
    %3647 = vmatpush1.bf16.msra.mxu0 0
    %3648 = vmatprep.subr.bf16.mxu0 0
    %3649 = vmatpush1.bf16.msra.mxu0 0
    %3650 = vmatprep.mubr.bf16.mxu0 0
    %3651 = vmatmul.mubr.bf16.gmra.mrb[0].mxu0 %v3524
    %v3652 = vpop.f32.mrb[0].mxu0
    %v3653 = vadd.f32 0.0, %v3652
    %v3654 = vpop.f32.mrb[0].mxu0
    %v3655 = vpop.f32.mrb[0].mxu0
    %v3656 = vpop.f32.mrb[0].mxu0
    %3657 = vdwg.mxu0
    %v3658 = vadd.f32 %v3617, %v3653
    %v3659 = vxor.u32 %v3658, 2147483648
    %v3660 = vmul.f32 %v3659, 1.442695
    %v3661 = vpow.pop %v3660
    %v3662 = vadd.f32 %v3661, 1.0
    %v3663 = vrcp.pop %v3662
    %v3664 = vmul.f32 1.0, %v3663
    %v3665 = vmul.f32 %v3664, %v3473
    %v3666 = vadd.f32 %v3665, %v3616
    %3667 = vst [vmem:[#allocation14] sm:$0xff] %v3666
    // Predicated region
    $region58: #{tpu_custom_call.1} parent=1 // pred_check
      _
    $region59: #{tpu_custom_call.1} parent=1 // pred_check_branch
      %3669 = sbr.rel (0) target = $region61
    $region60: #{tpu_custom_call.1} parent=1 // pred_region
      %s3671 = ssub.s32 128, 128
      %3672 = vsyncadd [#allocation5], %s3671
      %s3674 = sshll.u32 [#allocation14], 4
      %s3675 = int_to_ptr.vmem [resolvable:$true] %s3674
      %3677 = dma.vmem_to_hbm [thread:$0]  %s3675, 128, %s8, [#allocation5]
    $region61: #{tpu_custom_call.1} parent=1 // pred_fallthru
      _
    // Predicated region
    $region62: #{tpu_custom_call.1} parent=1 // pred_check
      _
    $region63: #{tpu_custom_call.1} parent=1 // pred_check_branch
      %3679 = sbr.rel (0) target = $region65
    $region64: #{tpu_custom_call.1} parent=1 // pred_region
      %3680 = dma.done [#allocation5], 128
    $region65: #{tpu_custom_call.1} parent=1 // pred_fallthru
      _
    %3681 = vsyncpa [#allocation4], 1
    %3682 = vsyncpa [#allocation7], 1
    %3683 = vsyncpa [#allocation10], 1
    %3684 = vsyncpa [#allocation13], 1
    %3685 = vsyncpa [#allocation5], 1

</llo_original>
